<compile_context>
chip_gen: v5e
topology: v5e:2x2
jax: 0.10.0
libtpu: 0.0.40
codegen_flags: <defaults>
</compile_context>

<pallas_src>
import math

import jax
import jax.numpy as jnp
import jax.scipy.linalg
from jax.experimental import pallas as pl
from jax.experimental.pallas import tpu as pltpu


# Order of weight operands handed to the kernel.  All are stacked over a leading
# direction axis of size 2 = [forward, backward], except b_out (shared).
_WEIGHT_NAMES = (
    'w_in', 'b_in', 'g_cs', 'be_cs',
    'w_ig_h', 'w_ig_c', 'b_ig', 'g_ig', 'be_ig',
    'w_fg_h', 'w_fg_c', 'b_fg', 'g_fg', 'be_fg',
    'w_h1_h', 'w_h1_c', 'b_h1', 'w_h2', 'b_h2',
    'w_og_h', 'w_og_c', 'b_og', 'init_c',
    'w_out', 'b_out',
)

_BF16_WEIGHTS = frozenset({
    'w_in', 'w_ig_h', 'w_ig_c', 'w_fg_h', 'w_fg_c',
    'w_h1_h', 'w_h1_c', 'w_h2', 'w_og_h', 'w_og_c', 'w_out',
})


# ----------------------------- Pallas kernel ---------------------------------

def _make_kernel(S, i_half, o_half, eps=1e-5):
    """Fused BiHPLSTM + trans_output + residual, block of `block_b` sequences per step."""
    i_tot = 2 * i_half          # LN width of the cumulative-sum feature (both directions)
    g_tot = 4 * o_half          # LN width of the [i|f]-gate feature (both directions)
    pad = S                     # zero padding rows for the shift scratch (max shift < S)
    n_w = len(_WEIGHT_NAMES)

    def kernel(x_ref, mask_ref, prev_ref, *refs):
        w = {name: refs[i] for i, name in enumerate(_WEIGHT_NAMES)}
        out_ref = refs[n_w]
        scr = refs[n_w + 1]                               # (R + 2S, max(i_half, o_half)) f32

        R = x_ref.shape[0]                                # block_b * S rows (batch-major)
        x = x_ref[...]                                    # (R, E)  f32
        bmask = mask_ref[...]                             # (R, 1)  1 = valid backward step
        prev = prev_ref[...]                              # (R, R)  segment-wise time reversal

        t_idx = jax.lax.broadcasted_iota(jnp.int32, (R, 1), 0) % S   # time within sequence

        # scratch padding rows must be zero (rows [0,pad) and [pad+R, pad+R+pad))
        scr[...] = jnp.zeros(scr.shape, scr.dtype)

        def shift(v, d):
            # zero-filled row shift: d > 0 -> result[r] = v[r-d]; d < 0 -> result[r] = v[r+|d|]
            W = v.shape[1]
            scr[pad:pad + R, 0:W] = v
            return scr[pad - d:pad - d + R, 0:W]

        def seg_cumsum_exclusive(v, reverse):
            # exclusive cumulative sum over time, independently per length-S sequence
            acc = v
            d = 1
            while d < S:                                   # log2(S) vectorised steps
                if reverse:
                    sh = shift(acc, -d)
                    m = t_idx < (S - d)
                else:
                    sh = shift(acc, d)
                    m = t_idx >= d
                acc = acc + jnp.where(m, sh, 0.0)
                d *= 2
            return acc - v

        def seg_linear_scan(f, v, reverse):
            # c_t = f_t * c_{t -/+ 1} + v_t per sequence; returns (cumprod_f, scan_zero_init)
            F, X = f, v
            d = 1
            while d < S:                                   # log2(S) vectorised steps
                if reverse:
                    Fs, Xs = shift(F, -d), shift(X, -d)
                    m = t_idx < (S - d)
                else:
                    Fs, Xs = shift(F, d), shift(X, d)
                    m = t_idx >= d
                X = jnp.where(m, X + F * Xs, X)            # uses pre-update F
                F = jnp.where(m, F * Fs, F)
                d *= 2
            return F, X

        def flip_rows(v):
            # per-sequence time reversal of per-row statistics (tiny (R,R)@(R,1) matmul)
            return jnp.dot(prev, v, preferred_element_type=jnp.float32)

        def mm(a, wref, d):
            return jnp.dot(a.astype(jnp.bfloat16), wref[d],
                           preferred_element_type=jnp.float32)

        # ---- trans_input: per-direction head projection (backward stays in forward time) ----
        h_f = mm(x, w['w_in'], 0) + w['b_in'][0]
        h_b = mm(x, w['w_in'], 1) + w['b_in'][1]

        # ---- exclusive "history" cumsum (backward direction accumulates over the future) ----
        cs_f = seg_cumsum_exclusive(h_f, reverse=False)
        cs_b = seg_cumsum_exclusive(h_b, reverse=True)

        # ---- joint LayerNorms.  In the reference the backward heads at sequence position t
        #      carry time (S-1-t) content, so the joint statistics pair forward time t with
        #      backward time S-1-t; reproduce that with flipped per-row stats.
        def joint_ln_stats(a_sum, a_sq, b_sum, b_sq, n):
            m1 = (a_sum + flip_rows(b_sum)) / n            # stats for the forward features
            q1 = (a_sq + flip_rows(b_sq)) / n
            r1 = jax.lax.rsqrt(jnp.maximum(q1 - m1 * m1, 0.0) + eps)
            return m1, r1, flip_rows(m1), flip_rows(r1)    # flipped stats for backward

        mcs1, rcs1, mcs2, rcs2 = joint_ln_stats(
            jnp.sum(cs_f, axis=-1, keepdims=True),
            jnp.sum(cs_f * cs_f, axis=-1, keepdims=True),
            jnp.sum(cs_b, axis=-1, keepdims=True),
            jnp.sum(cs_b * cs_b, axis=-1, keepdims=True), float(i_tot))
        cs_f = (cs_f - mcs1) * rcs1 * w['g_cs'][0] + w['be_cs'][0]
        cs_b = (cs_b - mcs2) * rcs2 * w['g_cs'][1] + w['be_cs'][1]

        # ---- input / forget gate pre-activations (grouped linears, concat-free row split) ----
        ig_f = mm(h_f, w['w_ig_h'], 0) + mm(cs_f, w['w_ig_c'], 0) + w['b_ig'][0]
        fg_f = mm(h_f, w['w_fg_h'], 0) + mm(cs_f, w['w_fg_c'], 0) + w['b_fg'][0]
        ig_b = mm(h_b, w['w_ig_h'], 1) + mm(cs_b, w['w_ig_c'], 1) + w['b_ig'][1]
        fg_b = mm(h_b, w['w_fg_h'], 1) + mm(cs_b, w['w_fg_c'], 1) + w['b_fg'][1]

        mif1, rif1, mif2, rif2 = joint_ln_stats(
            jnp.sum(ig_f, -1, keepdims=True) + jnp.sum(fg_f, -1, keepdims=True),
            jnp.sum(ig_f * ig_f, -1, keepdims=True) + jnp.sum(fg_f * fg_f, -1, keepdims=True),
            jnp.sum(ig_b, -1, keepdims=True) + jnp.sum(fg_b, -1, keepdims=True),
            jnp.sum(ig_b * ig_b, -1, keepdims=True) + jnp.sum(fg_b * fg_b, -1, keepdims=True),
            float(g_tot))
        igate_f = jax.nn.sigmoid((ig_f - mif1) * rif1 * w['g_ig'][0] + w['be_ig'][0])
        fgate_f = jax.nn.sigmoid((fg_f - mif1) * rif1 * w['g_fg'][0] + w['be_fg'][0])
        igate_b = jax.nn.sigmoid((ig_b - mif2) * rif2 * w['g_ig'][1] + w['be_ig'][1])
        fgate_b = jax.nn.sigmoid((fg_b - mif2) * rif2 * w['g_fg'][1] + w['be_fg'][1])

        # ---- hidden candidate: per-head 2-layer FFN ----
        h1_f = jnp.maximum(mm(h_f, w['w_h1_h'], 0) + mm(cs_f, w['w_h1_c'], 0) + w['b_h1'][0], 0.0)
        h1_b = jnp.maximum(mm(h_b, w['w_h1_h'], 1) + mm(cs_b, w['w_h1_c'], 1) + w['b_h1'][1], 0.0)
        hid_f = mm(h1_f, w['w_h2'], 0) + w['b_h2'][0]
        hid_b = mm(h1_b, w['w_h2'], 1) + w['b_h2'][1]

        igh_f = igate_f * hid_f
        igh_b = igate_b * hid_b

        # reversed-stream padding: pass the cell state through (fgate=1, input=0)
        # TODO(synk): verify exact masked_fill semantics of the reference when reversed_mask != None.
        fgate_b = fgate_b * bmask + (1.0 - bmask)
        igh_b = igh_b * bmask

        # ---- cell scan (forward dir past->future, backward dir future->past) ----
        Fp_f, c0_f = seg_linear_scan(fgate_f, igh_f, reverse=False)
        Fp_b, c0_b = seg_linear_scan(fgate_b, igh_b, reverse=True)
        cell_f = c0_f + Fp_f * w['init_c'][0]
        cell_b = c0_b + Fp_b * w['init_c'][1]

        # ---- output gate + gated cell output ----
        og_f = jax.nn.sigmoid(mm(h_f, w['w_og_h'], 0) + mm(cell_f, w['w_og_c'], 0) + w['b_og'][0])
        og_b = jax.nn.sigmoid(mm(h_b, w['w_og_h'], 1) + mm(cell_b, w['w_og_c'], 1) + w['b_og'][1])
        out_f = og_f * cell_f
        out_b = og_b * cell_b

        # ---- fused trans_output projection + residual (both halves already forward-time) ----
        y = mm(out_f, w['w_out'], 0) + mm(out_b, w['w_out'], 1) + w['b_out'][...] + x
        out_ref[...] = y.astype(out_ref.dtype)

    return kernel


# ----------------------------- parameter setup (glue) ------------------------

def init_encoder_layer_params(key, isize, num_head, fhsize=None, osize=None):
    osize = isize if osize is None else osize
    fhsize = 4 * isize if fhsize is None else fhsize
    H = num_head
    D = isize // H
    Do = osize // H
    F = fhsize // H
    i_half, o_half, f_half = H * D, H * Do, H * F

    def u(k, shape, fan_in):
        return jax.random.uniform(k, shape, jnp.float32, -1.0, 1.0) / math.sqrt(fan_in)

    def bd(stack):
        return jax.scipy.linalg.block_diag(*[stack[g] for g in range(stack.shape[0])])

    keys = iter(jax.random.split(key, 32))
    p = {}

    # trans_input (one dense projection per direction)
    p['w_in'] = jnp.stack([u(next(keys), (isize, i_half), isize),
                           u(next(keys), (isize, i_half), isize)])
    p['b_in'] = jnp.zeros((2, 1, i_half), jnp.float32)
    p['g_cs'] = jnp.ones((2, 1, i_half), jnp.float32)
    p['be_cs'] = jnp.zeros((2, 1, i_half), jnp.float32)

    # grouped input/forget gate linear: rows split [heads | csum], cols split [i | f]
    def gate_split():
        wg = u(next(keys), (H, 2 * D, 2 * Do), 2 * D)
        return (bd(wg[:, :D, :Do]), bd(wg[:, :D, Do:]),
                bd(wg[:, D:, :Do]), bd(wg[:, D:, Do:]))
    gf, gb = gate_split(), gate_split()
    p['w_ig_h'] = jnp.stack([gf[0], gb[0]])
    p['w_fg_h'] = jnp.stack([gf[1], gb[1]])
    p['w_ig_c'] = jnp.stack([gf[2], gb[2]])
    p['w_fg_c'] = jnp.stack([gf[3], gb[3]])
    bif = u(next(keys), (2, H, 2 * Do), 2 * D)
    p['b_ig'] = bif[:, :, :Do].reshape(2, 1, o_half)
    p['b_fg'] = bif[:, :, Do:].reshape(2, 1, o_half)
    p['g_ig'] = jnp.ones((2, 1, o_half), jnp.float32)
    p['be_ig'] = jnp.zeros((2, 1, o_half), jnp.float32)
    p['g_fg'] = jnp.ones((2, 1, o_half), jnp.float32)
    p['be_fg'] = jnp.zeros((2, 1, o_half), jnp.float32)

    # grouped 2-layer FFN for the hidden candidate (rows split [heads | csum])
    def h1_split():
        wh = u(next(keys), (H, 2 * D, F), 2 * D)
        return bd(wh[:, :D, :]), bd(wh[:, D:, :])
    hf, hb = h1_split(), h1_split()
    p['w_h1_h'] = jnp.stack([hf[0], hb[0]])
    p['w_h1_c'] = jnp.stack([hf[1], hb[1]])
    p['b_h1'] = u(next(keys), (2, H, F), 2 * D).reshape(2, 1, f_half)
    p['w_h2'] = jnp.stack([bd(u(next(keys), (H, F, Do), F)),
                           bd(u(next(keys), (H, F, Do), F))])
    p['b_h2'] = u(next(keys), (2, H, Do), F).reshape(2, 1, o_half)

    # grouped output-gate linear (rows split [heads | cell])
    def og_split():
        wo = u(next(keys), (H, D + Do, Do), D + Do)
        return bd(wo[:, :D, :]), bd(wo[:, D:, :])
    of, ob = og_split(), og_split()
    p['w_og_h'] = jnp.stack([of[0], ob[0]])
    p['w_og_c'] = jnp.stack([of[1], ob[1]])
    p['b_og'] = u(next(keys), (2, H, Do), D + Do).reshape(2, 1, o_half)

    # initial cell state (zeros, as in the module)
    p['init_c'] = jnp.zeros((2, 1, o_half), jnp.float32)

    # trans_output: (2*osize) -> osize, split into per-direction row blocks
    p['w_out'] = u(next(keys), (2, o_half, osize), 2 * o_half)
    p['b_out'] = jnp.zeros((1, osize), jnp.float32)
    return p


# ----------------------------- forward wrapper --------------------------------

def encoder_layer_forward(x, params, reversed_mask=None, block_b=None):
    """x: (B, S, E) float32 -> (B, S, E).  dropout==0.0 in this config -> identity."""
    B, S, E = x.shape
    p = params
    i_half = p['w_in'].shape[2]
    o_half = p['w_out'].shape[1]
    osize = p['w_out'].shape[2]

    Bb = B if block_b is None else block_b
    assert B % Bb == 0, "block_b must divide the batch size"
    nb = B // Bb
    R = Bb * S                                      # rows per grid step (batch-major)

    xf = x.reshape(B * S, E)

    if reversed_mask is None:
        bmask = jnp.ones((B * S, 1), jnp.float32)
    else:
        # reversed-stream padding mask brought back to forward-time order (1=valid, 0=pad)
        bmask = (1.0 - jnp.flip(reversed_mask.astype(jnp.float32), axis=1)).reshape(B * S, 1)

    # per-sequence time-reversal permutation (block-diagonal over the Bb sequences per block)
    prev = jnp.kron(jnp.eye(Bb, dtype=jnp.float32),
                    jnp.flip(jnp.eye(S, dtype=jnp.float32), axis=0))

    kernel = _make_kernel(S, i_half, o_half)

    def rep_spec(arr):
        nd = arr.ndim
        return pl.BlockSpec(arr.shape, lambda i, nd=nd: (0,) * nd)

    w_args, w_specs = [], []
    for name in _WEIGHT_NAMES:
        arr = p[name]
        if name in _BF16_WEIGHTS:                   # bf16 MXU operands, f32 accumulation
            arr = arr.astype(jnp.bfloat16)
        w_args.append(arr)
        w_specs.append(rep_spec(arr))

    in_specs = [
        pl.BlockSpec((R, E), lambda i: (i, 0)),     # x rows for this batch block
        pl.BlockSpec((R, 1), lambda i: (i, 0)),     # backward-stream validity mask
        pl.BlockSpec((R, R), lambda i: (0, 0)),     # time-reversal permutation
    ] + w_specs

    out = pl.pallas_call(
        kernel,
        out_shape=jax.ShapeDtypeStruct((B * S, osize), x.dtype),
        grid_spec=pltpu.PrefetchScalarGridSpec(
            num_scalar_prefetch=0,
            grid=(nb,),
            in_specs=in_specs,
            out_specs=pl.BlockSpec((R, osize), lambda i: (i, 0)),
            scratch_shapes=[pltpu.VMEM((R + 2 * S, max(i_half, o_half)), jnp.float32)],
        ),
        compiler_params=pltpu.CompilerParams(
            dimension_semantics=("parallel",),
            vmem_limit_bytes=64 * 1024 * 1024,
        ),
        # TODO(synk): at production isize / S, add K- and S-tiling grid axes (weights do not
        # all fit VMEM on v7x) and switch the block-diagonal fold to per-head matmuls.
    )(xf, bmask, prev, *w_args)

    return out.reshape(B, S, osize)


# ----------------------------- demo ------------------------------------------

if __name__ == "__main__":
    key = jax.random.PRNGKey(0)
    B, S, isize, num_head = 2, 8, 32, 8            # small shapes consistent with the module
    pk, xk = jax.random.split(key)

    params = init_encoder_layer_params(pk, isize, num_head)   # fhsize defaults to 4*isize
    x = jax.random.normal(xk, (B, S, isize), jnp.float32)

    y = encoder_layer_forward(x, params, reversed_mask=None)
    y = jax.block_until_ready(y)

    assert y.shape == (B, S, isize)
    assert bool(jnp.all(jnp.isfinite(y)))
    print("KERNEL_OK")
</pallas_src>

<mosaic_0001>
module attributes {stable_mosaic.version = 11 : i64} {
  func.func @kernel(%arg0: i32, %arg1: memref<16x32xf32, #tpu.memory_space<vmem>>, %arg2: memref<16x1xf32, #tpu.memory_space<vmem>>, %arg3: memref<16x16xf32, #tpu.memory_space<vmem>>, %arg4: memref<2x32x32xbf16, #tpu.memory_space<vmem>>, %arg5: memref<2x1x32xf32, #tpu.memory_space<vmem>>, %arg6: memref<2x1x32xf32, #tpu.memory_space<vmem>>, %arg7: memref<2x1x32xf32, #tpu.memory_space<vmem>>, %arg8: memref<2x32x32xbf16, #tpu.memory_space<vmem>>, %arg9: memref<2x32x32xbf16, #tpu.memory_space<vmem>>, %arg10: memref<2x1x32xf32, #tpu.memory_space<vmem>>, %arg11: memref<2x1x32xf32, #tpu.memory_space<vmem>>, %arg12: memref<2x1x32xf32, #tpu.memory_space<vmem>>, %arg13: memref<2x32x32xbf16, #tpu.memory_space<vmem>>, %arg14: memref<2x32x32xbf16, #tpu.memory_space<vmem>>, %arg15: memref<2x1x32xf32, #tpu.memory_space<vmem>>, %arg16: memref<2x1x32xf32, #tpu.memory_space<vmem>>, %arg17: memref<2x1x32xf32, #tpu.memory_space<vmem>>, %arg18: memref<2x32x128xbf16, #tpu.memory_space<vmem>>, %arg19: memref<2x32x128xbf16, #tpu.memory_space<vmem>>, %arg20: memref<2x1x128xf32, #tpu.memory_space<vmem>>, %arg21: memref<2x128x32xbf16, #tpu.memory_space<vmem>>, %arg22: memref<2x1x32xf32, #tpu.memory_space<vmem>>, %arg23: memref<2x32x32xbf16, #tpu.memory_space<vmem>>, %arg24: memref<2x32x32xbf16, #tpu.memory_space<vmem>>, %arg25: memref<2x1x32xf32, #tpu.memory_space<vmem>>, %arg26: memref<2x1x32xf32, #tpu.memory_space<vmem>>, %arg27: memref<2x32x32xbf16, #tpu.memory_space<vmem>>, %arg28: memref<1x32xf32, #tpu.memory_space<vmem>>, %arg29: memref<16x32xf32, #tpu.memory_space<vmem>>, %arg30: memref<32x32xf32, #tpu.memory_space<vmem>>) attributes {dimension_semantics = [#tpu.dimension_semantics<parallel>], iteration_bounds = array<i64: 1>, scalar_prefetch = 0 : i64, scratch_operands = 1 : i64, tpu.core_type = #tpu.core_type<tc>, window_params = [{transform_indices = @transform_0, window_bounds = array<i64: 16, 32>}, {transform_indices = @transform_1, window_bounds = array<i64: 16, 1>}, {pipeline_mode = #tpu.pipeline_mode<synchronous>, transform_indices = @transform_2, window_bounds = array<i64: 16, 16>}, {pipeline_mode = #tpu.pipeline_mode<synchronous>, transform_indices = @transform_3, window_bounds = array<i64: 2, 32, 32>}, {pipeline_mode = #tpu.pipeline_mode<synchronous>, transform_indices = @transform_4, window_bounds = array<i64: 2, 1, 32>}, {pipeline_mode = #tpu.pipeline_mode<synchronous>, transform_indices = @transform_5, window_bounds = array<i64: 2, 1, 32>}, {pipeline_mode = #tpu.pipeline_mode<synchronous>, transform_indices = @transform_6, window_bounds = array<i64: 2, 1, 32>}, {pipeline_mode = #tpu.pipeline_mode<synchronous>, transform_indices = @transform_7, window_bounds = array<i64: 2, 32, 32>}, {pipeline_mode = #tpu.pipeline_mode<synchronous>, transform_indices = @transform_8, window_bounds = array<i64: 2, 32, 32>}, {pipeline_mode = #tpu.pipeline_mode<synchronous>, transform_indices = @transform_9, window_bounds = array<i64: 2, 1, 32>}, {pipeline_mode = #tpu.pipeline_mode<synchronous>, transform_indices = @transform_10, window_bounds = array<i64: 2, 1, 32>}, {pipeline_mode = #tpu.pipeline_mode<synchronous>, transform_indices = @transform_11, window_bounds = array<i64: 2, 1, 32>}, {pipeline_mode = #tpu.pipeline_mode<synchronous>, transform_indices = @transform_12, window_bounds = array<i64: 2, 32, 32>}, {pipeline_mode = #tpu.pipeline_mode<synchronous>, transform_indices = @transform_13, window_bounds = array<i64: 2, 32, 32>}, {pipeline_mode = #tpu.pipeline_mode<synchronous>, transform_indices = @transform_14, window_bounds = array<i64: 2, 1, 32>}, {pipeline_mode = #tpu.pipeline_mode<synchronous>, transform_indices = @transform_15, window_bounds = array<i64: 2, 1, 32>}, {pipeline_mode = #tpu.pipeline_mode<synchronous>, transform_indices = @transform_16, window_bounds = array<i64: 2, 1, 32>}, {pipeline_mode = #tpu.pipeline_mode<synchronous>, transform_indices = @transform_17, window_bounds = array<i64: 2, 32, 128>}, {pipeline_mode = #tpu.pipeline_mode<synchronous>, transform_indices = @transform_18, window_bounds = array<i64: 2, 32, 128>}, {pipeline_mode = #tpu.pipeline_mode<synchronous>, transform_indices = @transform_19, window_bounds = array<i64: 2, 1, 128>}, {pipeline_mode = #tpu.pipeline_mode<synchronous>, transform_indices = @transform_20, window_bounds = array<i64: 2, 128, 32>}, {pipeline_mode = #tpu.pipeline_mode<synchronous>, transform_indices = @transform_21, window_bounds = array<i64: 2, 1, 32>}, {pipeline_mode = #tpu.pipeline_mode<synchronous>, transform_indices = @transform_22, window_bounds = array<i64: 2, 32, 32>}, {pipeline_mode = #tpu.pipeline_mode<synchronous>, transform_indices = @transform_23, window_bounds = array<i64: 2, 32, 32>}, {pipeline_mode = #tpu.pipeline_mode<synchronous>, transform_indices = @transform_24, window_bounds = array<i64: 2, 1, 32>}, {pipeline_mode = #tpu.pipeline_mode<synchronous>, transform_indices = @transform_25, window_bounds = array<i64: 2, 1, 32>}, {pipeline_mode = #tpu.pipeline_mode<synchronous>, transform_indices = @transform_26, window_bounds = array<i64: 2, 32, 32>}, {pipeline_mode = #tpu.pipeline_mode<synchronous>, transform_indices = @transform_27, window_bounds = array<i64: 1, 32>}, {transform_indices = @transform_28, window_bounds = array<i64: 16, 32>}]} {
    %c0 = arith.constant 0 : index
    %c0_0 = arith.constant 0 : index
    %0 = vector.load %arg1[%c0, %c0_0] : memref<16x32xf32, #tpu.memory_space<vmem>>, vector<16x32xf32>
    %c0_1 = arith.constant 0 : index
    %c0_2 = arith.constant 0 : index
    %1 = vector.load %arg2[%c0_1, %c0_2] : memref<16x1xf32, #tpu.memory_space<vmem>>, vector<16x1xf32>
    %c0_3 = arith.constant 0 : index
    %c0_4 = arith.constant 0 : index
    %2 = vector.load %arg3[%c0_3, %c0_4] : memref<16x16xf32, #tpu.memory_space<vmem>>, vector<16x16xf32>
    %3 = tpu.iota {dimensions = array<i32: 0>} : vector<16x1xi32>
    %c8_i32 = arith.constant 8 : i32
    %c0_i32 = arith.constant 0 : i32
    %4 = arith.cmpi eq, %c8_i32, %c0_i32 : i32
    %c1_i32 = arith.constant 1 : i32
    %5 = arith.select %4, %c1_i32, %c8_i32 : i32
    %6 = vector.broadcast %5 : i32 to vector<16x1xi32>
    %7 = arith.remsi %3, %6 : vector<16x1xi32>
    %c0_i32_5 = arith.constant 0 : i32
    %8 = vector.broadcast %c0_i32_5 : i32 to vector<16x1xi32>
    %9 = arith.cmpi ne, %7, %8 : vector<16x1xi32>
    %c0_i32_6 = arith.constant 0 : i32
    %10 = vector.broadcast %c0_i32_6 : i32 to vector<16x1xi32>
    %11 = arith.cmpi slt, %7, %10 : vector<16x1xi32>
    %c0_i32_7 = arith.constant 0 : i32
    %12 = arith.cmpi slt, %5, %c0_i32_7 : i32
    %13 = vector.broadcast %12 : i1 to vector<16x1xi1>
    %14 = vector.broadcast %13 : vector<16x1xi1> to vector<16x1xi1>
    %15 = arith.xori %11, %14 : vector<16x1xi1>
    %16 = arith.andi %15, %9 : vector<16x1xi1>
    %17 = vector.broadcast %5 : i32 to vector<16x1xi32>
    %18 = arith.addi %7, %17 : vector<16x1xi32>
    %19 = arith.select %16, %18, %7 : vector<16x1xi1>, vector<16x1xi32>
    %cst = arith.constant 0.000000e+00 : f32
    %20 = vector.broadcast %cst : f32 to vector<32x32xf32>
    %c0_8 = arith.constant 0 : index
    %c0_9 = arith.constant 0 : index
    %21 = vector.load %arg30[%c0_8, %c0_9] : memref<32x32xf32, #tpu.memory_space<vmem>>, vector<32x32xf32>
    tpu.vector_store %arg30[%c0_8, %c0_9], %20 {strides = array<i32>} : memref<32x32xf32, #tpu.memory_space<vmem>>, vector<32x32xf32>,
    %22 = arith.truncf %0 : vector<16x32xf32> to vector<16x32xbf16>
    %c0_10 = arith.constant 0 : index
    %c0_11 = arith.constant 0 : index
    %c0_12 = arith.constant 0 : index
    %23 = vector.load %arg4[%c0_10, %c0_11, %c0_12] : memref<2x32x32xbf16, #tpu.memory_space<vmem>>, vector<1x32x32xbf16>
    %24 = vector.shape_cast %23 : vector<1x32x32xbf16> to vector<32x32xbf16>
    %cst_13 = arith.constant dense<0.000000e+00> : vector<16x32xf32>
    %25 = tpu.matmul %22, %24, %cst_13 {dimension_numbers = #tpu.dot_dimension_numbers<[1], [0], [0], [1], [0, 0, 1, 1], [], []>} : vector<16x32xbf16>, vector<32x32xbf16>, vector<16x32xf32> -> vector<16x32xf32>
    %c0_14 = arith.constant 0 : index
    %c0_15 = arith.constant 0 : index
    %c0_16 = arith.constant 0 : index
    %26 = vector.load %arg5[%c0_14, %c0_15, %c0_16] : memref<2x1x32xf32, #tpu.memory_space<vmem>>, vector<1x1x32xf32>
    %27 = vector.shape_cast %26 : vector<1x1x32xf32> to vector<1x32xf32>
    %28 = vector.broadcast %27 : vector<1x32xf32> to vector<16x32xf32>
    %29 = arith.addf %25, %28 : vector<16x32xf32>
    %30 = arith.truncf %0 : vector<16x32xf32> to vector<16x32xbf16>
    %c1 = arith.constant 1 : index
    %c0_17 = arith.constant 0 : index
    %c0_18 = arith.constant 0 : index
    %31 = vector.load %arg4[%c1, %c0_17, %c0_18] : memref<2x32x32xbf16, #tpu.memory_space<vmem>>, vector<1x32x32xbf16>
    %32 = vector.shape_cast %31 : vector<1x32x32xbf16> to vector<32x32xbf16>
    %cst_19 = arith.constant dense<0.000000e+00> : vector<16x32xf32>
    %33 = tpu.matmul %30, %32, %cst_19 {dimension_numbers = #tpu.dot_dimension_numbers<[1], [0], [0], [1], [0, 0, 1, 1], [], []>} : vector<16x32xbf16>, vector<32x32xbf16>, vector<16x32xf32> -> vector<16x32xf32>
    %c1_20 = arith.constant 1 : index
    %c0_21 = arith.constant 0 : index
    %c0_22 = arith.constant 0 : index
    %34 = vector.load %arg5[%c1_20, %c0_21, %c0_22] : memref<2x1x32xf32, #tpu.memory_space<vmem>>, vector<1x1x32xf32>
    %35 = vector.shape_cast %34 : vector<1x1x32xf32> to vector<1x32xf32>
    %36 = vector.broadcast %35 : vector<1x32xf32> to vector<16x32xf32>
    %37 = arith.addf %33, %36 : vector<16x32xf32>
    %c8 = arith.constant 8 : index
    %c0_23 = arith.constant 0 : index
    %38 = vector.load %arg30[%c8, %c0_23] : memref<32x32xf32, #tpu.memory_space<vmem>>, vector<16x32xf32>
    tpu.vector_store %arg30[%c8, %c0_23], %29 {strides = array<i32>} : memref<32x32xf32, #tpu.memory_space<vmem>>, vector<16x32xf32>,
    %c7 = arith.constant 7 : index
    %c0_24 = arith.constant 0 : index
    %39 = vector.load %arg30[%c7, %c0_24] : memref<32x32xf32, #tpu.memory_space<vmem>>, vector<16x32xf32>
    %c1_i32_25 = arith.constant 1 : i32
    %40 = vector.broadcast %c1_i32_25 : i32 to vector<16x1xi32>
    %41 = arith.cmpi sge, %19, %40 : vector<16x1xi32>
    %cst_26 = arith.constant 0.000000e+00 : f32
    %42 = vector.shape_cast %41 : vector<16x1xi1> to vector<16x1xi1>
    %43 = vector.broadcast %42 : vector<16x1xi1> to vector<16x32xi1>
    %44 = vector.broadcast %cst_26 : f32 to vector<16x32xf32>
    %45 = arith.select %43, %39, %44 : vector<16x32xi1>, vector<16x32xf32>
    %46 = arith.addf %29, %45 : vector<16x32xf32>
    %c8_27 = arith.constant 8 : index
    %c0_28 = arith.constant 0 : index
    %47 = vector.load %arg30[%c8_27, %c0_28] : memref<32x32xf32, #tpu.memory_space<vmem>>, vector<16x32xf32>
    tpu.vector_store %arg30[%c8_27, %c0_28], %46 {strides = array<i32>} : memref<32x32xf32, #tpu.memory_space<vmem>>, vector<16x32xf32>,
    %c6 = arith.constant 6 : index
    %c0_29 = arith.constant 0 : index
    %48 = vector.load %arg30[%c6, %c0_29] : memref<32x32xf32, #tpu.memory_space<vmem>>, vector<16x32xf32>
    %c2_i32 = arith.constant 2 : i32
    %49 = vector.broadcast %c2_i32 : i32 to vector<16x1xi32>
    %50 = arith.cmpi sge, %19, %49 : vector<16x1xi32>
    %cst_30 = arith.constant 0.000000e+00 : f32
    %51 = vector.shape_cast %50 : vector<16x1xi1> to vector<16x1xi1>
    %52 = vector.broadcast %51 : vector<16x1xi1> to vector<16x32xi1>
    %53 = vector.broadcast %cst_30 : f32 to vector<16x32xf32>
    %54 = arith.select %52, %48, %53 : vector<16x32xi1>, vector<16x32xf32>
    %55 = arith.addf %46, %54 : vector<16x32xf32>
    %c8_31 = arith.constant 8 : index
    %c0_32 = arith.constant 0 : index
    %56 = vector.load %arg30[%c8_31, %c0_32] : memref<32x32xf32, #tpu.memory_space<vmem>>, vector<16x32xf32>
    tpu.vector_store %arg30[%c8_31, %c0_32], %55 {strides = array<i32>} : memref<32x32xf32, #tpu.memory_space<vmem>>, vector<16x32xf32>,
    %c4 = arith.constant 4 : index
    %c0_33 = arith.constant 0 : index
    %57 = vector.load %arg30[%c4, %c0_33] : memref<32x32xf32, #tpu.memory_space<vmem>>, vector<16x32xf32>
    %c4_i32 = arith.constant 4 : i32
    %58 = vector.broadcast %c4_i32 : i32 to vector<16x1xi32>
    %59 = arith.cmpi sge, %19, %58 : vector<16x1xi32>
    %cst_34 = arith.constant 0.000000e+00 : f32
    %60 = vector.shape_cast %59 : vector<16x1xi1> to vector<16x1xi1>
    %61 = vector.broadcast %60 : vector<16x1xi1> to vector<16x32xi1>
    %62 = vector.broadcast %cst_34 : f32 to vector<16x32xf32>
    %63 = arith.select %61, %57, %62 : vector<16x32xi1>, vector<16x32xf32>
    %64 = arith.addf %55, %63 : vector<16x32xf32>
    %65 = arith.subf %64, %29 : vector<16x32xf32>
    %c8_35 = arith.constant 8 : index
    %c0_36 = arith.constant 0 : index
    %66 = vector.load %arg30[%c8_35, %c0_36] : memref<32x32xf32, #tpu.memory_space<vmem>>, vector<16x32xf32>
    tpu.vector_store %arg30[%c8_35, %c0_36], %37 {strides = array<i32>} : memref<32x32xf32, #tpu.memory_space<vmem>>, vector<16x32xf32>,
    %c9 = arith.constant 9 : index
    %c0_37 = arith.constant 0 : index
    %67 = vector.load %arg30[%c9, %c0_37] : memref<32x32xf32, #tpu.memory_space<vmem>>, vector<16x32xf32>
    %c7_i32 = arith.constant 7 : i32
    %68 = vector.broadcast %c7_i32 : i32 to vector<16x1xi32>
    %69 = arith.cmpi slt, %19, %68 : vector<16x1xi32>
    %cst_38 = arith.constant 0.000000e+00 : f32
    %70 = vector.shape_cast %69 : vector<16x1xi1> to vector<16x1xi1>
    %71 = vector.broadcast %70 : vector<16x1xi1> to vector<16x32xi1>
    %72 = vector.broadcast %cst_38 : f32 to vector<16x32xf32>
    %73 = arith.select %71, %67, %72 : vector<16x32xi1>, vector<16x32xf32>
    %74 = arith.addf %37, %73 : vector<16x32xf32>
    %c8_39 = arith.constant 8 : index
    %c0_40 = arith.constant 0 : index
    %75 = vector.load %arg30[%c8_39, %c0_40] : memref<32x32xf32, #tpu.memory_space<vmem>>, vector<16x32xf32>
    tpu.vector_store %arg30[%c8_39, %c0_40], %74 {strides = array<i32>} : memref<32x32xf32, #tpu.memory_space<vmem>>, vector<16x32xf32>,
    %c10 = arith.constant 10 : index
    %c0_41 = arith.constant 0 : index
    %76 = vector.load %arg30[%c10, %c0_41] : memref<32x32xf32, #tpu.memory_space<vmem>>, vector<16x32xf32>
    %c6_i32 = arith.constant 6 : i32
    %77 = vector.broadcast %c6_i32 : i32 to vector<16x1xi32>
    %78 = arith.cmpi slt, %19, %77 : vector<16x1xi32>
    %cst_42 = arith.constant 0.000000e+00 : f32
    %79 = vector.shape_cast %78 : vector<16x1xi1> to vector<16x1xi1>
    %80 = vector.broadcast %79 : vector<16x1xi1> to vector<16x32xi1>
    %81 = vector.broadcast %cst_42 : f32 to vector<16x32xf32>
    %82 = arith.select %80, %76, %81 : vector<16x32xi1>, vector<16x32xf32>
    %83 = arith.addf %74, %82 : vector<16x32xf32>
    %c8_43 = arith.constant 8 : index
    %c0_44 = arith.constant 0 : index
    %84 = vector.load %arg30[%c8_43, %c0_44] : memref<32x32xf32, #tpu.memory_space<vmem>>, vector<16x32xf32>
    tpu.vector_store %arg30[%c8_43, %c0_44], %83 {strides = array<i32>} : memref<32x32xf32, #tpu.memory_space<vmem>>, vector<16x32xf32>,
    %c12 = arith.constant 12 : index
    %c0_45 = arith.constant 0 : index
    %85 = vector.load %arg30[%c12, %c0_45] : memref<32x32xf32, #tpu.memory_space<vmem>>, vector<16x32xf32>
    %c4_i32_46 = arith.constant 4 : i32
    %86 = vector.broadcast %c4_i32_46 : i32 to vector<16x1xi32>
    %87 = arith.cmpi slt, %19, %86 : vector<16x1xi32>
    %cst_47 = arith.constant 0.000000e+00 : f32
    %88 = vector.shape_cast %87 : vector<16x1xi1> to vector<16x1xi1>
    %89 = vector.broadcast %88 : vector<16x1xi1> to vector<16x32xi1>
    %90 = vector.broadcast %cst_47 : f32 to vector<16x32xf32>
    %91 = arith.select %89, %85, %90 : vector<16x32xi1>, vector<16x32xf32>
    %92 = arith.addf %83, %91 : vector<16x32xf32>
    %93 = arith.subf %92, %37 : vector<16x32xf32>
    %cst_48 = arith.constant dense<0.000000e+00> : vector<16xf32>
    %94 = vector.multi_reduction <add>, %65, %cst_48 [1] : vector<16x32xf32> to vector<16xf32>
    %95 = vector.shape_cast %94 : vector<16xf32> to vector<16x1xf32>
    %96 = arith.mulf %65, %65 : vector<16x32xf32>
    %cst_49 = arith.constant dense<0.000000e+00> : vector<16xf32>
    %97 = vector.multi_reduction <add>, %96, %cst_49 [1] : vector<16x32xf32> to vector<16xf32>
    %98 = vector.shape_cast %97 : vector<16xf32> to vector<16x1xf32>
    %cst_50 = arith.constant dense<0.000000e+00> : vector<16xf32>
    %99 = vector.multi_reduction <add>, %93, %cst_50 [1] : vector<16x32xf32> to vector<16xf32>
    %100 = vector.shape_cast %99 : vector<16xf32> to vector<16x1xf32>
    %101 = arith.mulf %93, %93 : vector<16x32xf32>
    %cst_51 = arith.constant dense<0.000000e+00> : vector<16xf32>
    %102 = vector.multi_reduction <add>, %101, %cst_51 [1] : vector<16x32xf32> to vector<16xf32>
    %103 = vector.shape_cast %102 : vector<16xf32> to vector<16x1xf32>
    %cst_52 = arith.constant dense<0.000000e+00> : vector<16x1xf32>
    %104 = tpu.matmul %2, %100, %cst_52 {dimension_numbers = #tpu.dot_dimension_numbers<[1], [0], [0], [1], [0, 0, 1, 1], [], []>} : vector<16x16xf32>, vector<16x1xf32>, vector<16x1xf32> -> vector<16x1xf32>
    %105 = arith.addf %95, %104 : vector<16x1xf32>
    %cst_53 = arith.constant 6.400000e+01 : f32
    %106 = vector.broadcast %cst_53 : f32 to vector<16x1xf32>
    %107 = arith.divf %105, %106 : vector<16x1xf32>
    %cst_54 = arith.constant dense<0.000000e+00> : vector<16x1xf32>
    %108 = tpu.matmul %2, %103, %cst_54 {dimension_numbers = #tpu.dot_dimension_numbers<[1], [0], [0], [1], [0, 0, 1, 1], [], []>} : vector<16x16xf32>, vector<16x1xf32>, vector<16x1xf32> -> vector<16x1xf32>
    %109 = arith.addf %98, %108 : vector<16x1xf32>
    %cst_55 = arith.constant 6.400000e+01 : f32
    %110 = vector.broadcast %cst_55 : f32 to vector<16x1xf32>
    %111 = arith.divf %109, %110 : vector<16x1xf32>
    %112 = arith.mulf %107, %107 : vector<16x1xf32>
    %113 = arith.subf %111, %112 : vector<16x1xf32>
    %cst_56 = arith.constant 0.000000e+00 : f32
    %114 = vector.broadcast %cst_56 : f32 to vector<16x1xf32>
    %115 = arith.maximumf %113, %114 : vector<16x1xf32>
    %cst_57 = arith.constant 9.99999974E-6 : f32
    %116 = vector.broadcast %cst_57 : f32 to vector<16x1xf32>
    %117 = arith.addf %115, %116 : vector<16x1xf32>
    %118 = math.rsqrt %117 : vector<16x1xf32>
    %cst_58 = arith.constant dense<0.000000e+00> : vector<16x1xf32>
    %119 = tpu.matmul %2, %107, %cst_58 {dimension_numbers = #tpu.dot_dimension_numbers<[1], [0], [0], [1], [0, 0, 1, 1], [], []>} : vector<16x16xf32>, vector<16x1xf32>, vector<16x1xf32> -> vector<16x1xf32>
    %cst_59 = arith.constant dense<0.000000e+00> : vector<16x1xf32>
    %120 = tpu.matmul %2, %118, %cst_59 {dimension_numbers = #tpu.dot_dimension_numbers<[1], [0], [0], [1], [0, 0, 1, 1], [], []>} : vector<16x16xf32>, vector<16x1xf32>, vector<16x1xf32> -> vector<16x1xf32>
    %121 = vector.broadcast %107 : vector<16x1xf32> to vector<16x32xf32>
    %122 = arith.subf %65, %121 : vector<16x32xf32>
    %123 = vector.broadcast %118 : vector<16x1xf32> to vector<16x32xf32>
    %124 = arith.mulf %122, %123 : vector<16x32xf32>
    %c0_60 = arith.constant 0 : index
    %c0_61 = arith.constant 0 : index
    %c0_62 = arith.constant 0 : index
    %125 = vector.load %arg6[%c0_60, %c0_61, %c0_62] : memref<2x1x32xf32, #tpu.memory_space<vmem>>, vector<1x1x32xf32>
    %126 = vector.shape_cast %125 : vector<1x1x32xf32> to vector<1x32xf32>
    %127 = vector.broadcast %126 : vector<1x32xf32> to vector<16x32xf32>
    %128 = arith.mulf %124, %127 : vector<16x32xf32>
    %c0_63 = arith.constant 0 : index
    %c0_64 = arith.constant 0 : index
    %c0_65 = arith.constant 0 : index
    %129 = vector.load %arg7[%c0_63, %c0_64, %c0_65] : memref<2x1x32xf32, #tpu.memory_space<vmem>>, vector<1x1x32xf32>
    %130 = vector.shape_cast %129 : vector<1x1x32xf32> to vector<1x32xf32>
    %131 = vector.broadcast %130 : vector<1x32xf32> to vector<16x32xf32>
    %132 = arith.addf %128, %131 : vector<16x32xf32>
    %133 = vector.broadcast %119 : vector<16x1xf32> to vector<16x32xf32>
    %134 = arith.subf %93, %133 : vector<16x32xf32>
    %135 = vector.broadcast %120 : vector<16x1xf32> to vector<16x32xf32>
    %136 = arith.mulf %134, %135 : vector<16x32xf32>
    %c1_66 = arith.constant 1 : index
    %c0_67 = arith.constant 0 : index
    %c0_68 = arith.constant 0 : index
    %137 = vector.load %arg6[%c1_66, %c0_67, %c0_68] : memref<2x1x32xf32, #tpu.memory_space<vmem>>, vector<1x1x32xf32>
    %138 = vector.shape_cast %137 : vector<1x1x32xf32> to vector<1x32xf32>
    %139 = vector.broadcast %138 : vector<1x32xf32> to vector<16x32xf32>
    %140 = arith.mulf %136, %139 : vector<16x32xf32>
    %c1_69 = arith.constant 1 : index
    %c0_70 = arith.constant 0 : index
    %c0_71 = arith.constant 0 : index
    %141 = vector.load %arg7[%c1_69, %c0_70, %c0_71] : memref<2x1x32xf32, #tpu.memory_space<vmem>>, vector<1x1x32xf32>
    %142 = vector.shape_cast %141 : vector<1x1x32xf32> to vector<1x32xf32>
    %143 = vector.broadcast %142 : vector<1x32xf32> to vector<16x32xf32>
    %144 = arith.addf %140, %143 : vector<16x32xf32>
    %145 = arith.truncf %29 : vector<16x32xf32> to vector<16x32xbf16>
    %c0_72 = arith.constant 0 : index
    %c0_73 = arith.constant 0 : index
    %c0_74 = arith.constant 0 : index
    %146 = vector.load %arg8[%c0_72, %c0_73, %c0_74] : memref<2x32x32xbf16, #tpu.memory_space<vmem>>, vector<1x32x32xbf16>
    %147 = vector.shape_cast %146 : vector<1x32x32xbf16> to vector<32x32xbf16>
    %cst_75 = arith.constant dense<0.000000e+00> : vector<16x32xf32>
    %148 = tpu.matmul %145, %147, %cst_75 {dimension_numbers = #tpu.dot_dimension_numbers<[1], [0], [0], [1], [0, 0, 1, 1], [], []>} : vector<16x32xbf16>, vector<32x32xbf16>, vector<16x32xf32> -> vector<16x32xf32>
    %149 = arith.truncf %132 : vector<16x32xf32> to vector<16x32xbf16>
    %c0_76 = arith.constant 0 : index
    %c0_77 = arith.constant 0 : index
    %c0_78 = arith.constant 0 : index
    %150 = vector.load %arg9[%c0_76, %c0_77, %c0_78] : memref<2x32x32xbf16, #tpu.memory_space<vmem>>, vector<1x32x32xbf16>
    %151 = vector.shape_cast %150 : vector<1x32x32xbf16> to vector<32x32xbf16>
    %cst_79 = arith.constant dense<0.000000e+00> : vector<16x32xf32>
    %152 = tpu.matmul %149, %151, %cst_79 {dimension_numbers = #tpu.dot_dimension_numbers<[1], [0], [0], [1], [0, 0, 1, 1], [], []>} : vector<16x32xbf16>, vector<32x32xbf16>, vector<16x32xf32> -> vector<16x32xf32>
    %153 = arith.addf %148, %152 : vector<16x32xf32>
    %c0_80 = arith.constant 0 : index
    %c0_81 = arith.constant 0 : index
    %c0_82 = arith.constant 0 : index
    %154 = vector.load %arg10[%c0_80, %c0_81, %c0_82] : memref<2x1x32xf32, #tpu.memory_space<vmem>>, vector<1x1x32xf32>
    %155 = vector.shape_cast %154 : vector<1x1x32xf32> to vector<1x32xf32>
    %156 = vector.broadcast %155 : vector<1x32xf32> to vector<16x32xf32>
    %157 = arith.addf %153, %156 : vector<16x32xf32>
    %158 = arith.truncf %29 : vector<16x32xf32> to vector<16x32xbf16>
    %c0_83 = arith.constant 0 : index
    %c0_84 = arith.constant 0 : index
    %c0_85 = arith.constant 0 : index
    %159 = vector.load %arg13[%c0_83, %c0_84, %c0_85] : memref<2x32x32xbf16, #tpu.memory_space<vmem>>, vector<1x32x32xbf16>
    %160 = vector.shape_cast %159 : vector<1x32x32xbf16> to vector<32x32xbf16>
    %cst_86 = arith.constant dense<0.000000e+00> : vector<16x32xf32>
    %161 = tpu.matmul %158, %160, %cst_86 {dimension_numbers = #tpu.dot_dimension_numbers<[1], [0], [0], [1], [0, 0, 1, 1], [], []>} : vector<16x32xbf16>, vector<32x32xbf16>, vector<16x32xf32> -> vector<16x32xf32>
    %162 = arith.truncf %132 : vector<16x32xf32> to vector<16x32xbf16>
    %c0_87 = arith.constant 0 : index
    %c0_88 = arith.constant 0 : index
    %c0_89 = arith.constant 0 : index
    %163 = vector.load %arg14[%c0_87, %c0_88, %c0_89] : memref<2x32x32xbf16, #tpu.memory_space<vmem>>, vector<1x32x32xbf16>
    %164 = vector.shape_cast %163 : vector<1x32x32xbf16> to vector<32x32xbf16>
    %cst_90 = arith.constant dense<0.000000e+00> : vector<16x32xf32>
    %165 = tpu.matmul %162, %164, %cst_90 {dimension_numbers = #tpu.dot_dimension_numbers<[1], [0], [0], [1], [0, 0, 1, 1], [], []>} : vector<16x32xbf16>, vector<32x32xbf16>, vector<16x32xf32> -> vector<16x32xf32>
    %166 = arith.addf %161, %165 : vector<16x32xf32>
    %c0_91 = arith.constant 0 : index
    %c0_92 = arith.constant 0 : index
    %c0_93 = arith.constant 0 : index
    %167 = vector.load %arg15[%c0_91, %c0_92, %c0_93] : memref<2x1x32xf32, #tpu.memory_space<vmem>>, vector<1x1x32xf32>
    %168 = vector.shape_cast %167 : vector<1x1x32xf32> to vector<1x32xf32>
    %169 = vector.broadcast %168 : vector<1x32xf32> to vector<16x32xf32>
    %170 = arith.addf %166, %169 : vector<16x32xf32>
    %171 = arith.truncf %37 : vector<16x32xf32> to vector<16x32xbf16>
    %c1_94 = arith.constant 1 : index
    %c0_95 = arith.constant 0 : index
    %c0_96 = arith.constant 0 : index
    %172 = vector.load %arg8[%c1_94, %c0_95, %c0_96] : memref<2x32x32xbf16, #tpu.memory_space<vmem>>, vector<1x32x32xbf16>
    %173 = vector.shape_cast %172 : vector<1x32x32xbf16> to vector<32x32xbf16>
    %cst_97 = arith.constant dense<0.000000e+00> : vector<16x32xf32>
    %174 = tpu.matmul %171, %173, %cst_97 {dimension_numbers = #tpu.dot_dimension_numbers<[1], [0], [0], [1], [0, 0, 1, 1], [], []>} : vector<16x32xbf16>, vector<32x32xbf16>, vector<16x32xf32> -> vector<16x32xf32>
    %175 = arith.truncf %144 : vector<16x32xf32> to vector<16x32xbf16>
    %c1_98 = arith.constant 1 : index
    %c0_99 = arith.constant 0 : index
    %c0_100 = arith.constant 0 : index
    %176 = vector.load %arg9[%c1_98, %c0_99, %c0_100] : memref<2x32x32xbf16, #tpu.memory_space<vmem>>, vector<1x32x32xbf16>
    %177 = vector.shape_cast %176 : vector<1x32x32xbf16> to vector<32x32xbf16>
    %cst_101 = arith.constant dense<0.000000e+00> : vector<16x32xf32>
    %178 = tpu.matmul %175, %177, %cst_101 {dimension_numbers = #tpu.dot_dimension_numbers<[1], [0], [0], [1], [0, 0, 1, 1], [], []>} : vector<16x32xbf16>, vector<32x32xbf16>, vector<16x32xf32> -> vector<16x32xf32>
    %179 = arith.addf %174, %178 : vector<16x32xf32>
    %c1_102 = arith.constant 1 : index
    %c0_103 = arith.constant 0 : index
    %c0_104 = arith.constant 0 : index
    %180 = vector.load %arg10[%c1_102, %c0_103, %c0_104] : memref<2x1x32xf32, #tpu.memory_space<vmem>>, vector<1x1x32xf32>
    %181 = vector.shape_cast %180 : vector<1x1x32xf32> to vector<1x32xf32>
    %182 = vector.broadcast %181 : vector<1x32xf32> to vector<16x32xf32>
    %183 = arith.addf %179, %182 : vector<16x32xf32>
    %184 = arith.truncf %37 : vector<16x32xf32> to vector<16x32xbf16>
    %c1_105 = arith.constant 1 : index
    %c0_106 = arith.constant 0 : index
    %c0_107 = arith.constant 0 : index
    %185 = vector.load %arg13[%c1_105, %c0_106, %c0_107] : memref<2x32x32xbf16, #tpu.memory_space<vmem>>, vector<1x32x32xbf16>
    %186 = vector.shape_cast %185 : vector<1x32x32xbf16> to vector<32x32xbf16>
    %cst_108 = arith.constant dense<0.000000e+00> : vector<16x32xf32>
    %187 = tpu.matmul %184, %186, %cst_108 {dimension_numbers = #tpu.dot_dimension_numbers<[1], [0], [0], [1], [0, 0, 1, 1], [], []>} : vector<16x32xbf16>, vector<32x32xbf16>, vector<16x32xf32> -> vector<16x32xf32>
    %188 = arith.truncf %144 : vector<16x32xf32> to vector<16x32xbf16>
    %c1_109 = arith.constant 1 : index
    %c0_110 = arith.constant 0 : index
    %c0_111 = arith.constant 0 : index
    %189 = vector.load %arg14[%c1_109, %c0_110, %c0_111] : memref<2x32x32xbf16, #tpu.memory_space<vmem>>, vector<1x32x32xbf16>
    %190 = vector.shape_cast %189 : vector<1x32x32xbf16> to vector<32x32xbf16>
    %cst_112 = arith.constant dense<0.000000e+00> : vector<16x32xf32>
    %191 = tpu.matmul %188, %190, %cst_112 {dimension_numbers = #tpu.dot_dimension_numbers<[1], [0], [0], [1], [0, 0, 1, 1], [], []>} : vector<16x32xbf16>, vector<32x32xbf16>, vector<16x32xf32> -> vector<16x32xf32>
    %192 = arith.addf %187, %191 : vector<16x32xf32>
    %c1_113 = arith.constant 1 : index
    %c0_114 = arith.constant 0 : index
    %c0_115 = arith.constant 0 : index
    %193 = vector.load %arg15[%c1_113, %c0_114, %c0_115] : memref<2x1x32xf32, #tpu.memory_space<vmem>>, vector<1x1x32xf32>
    %194 = vector.shape_cast %193 : vector<1x1x32xf32> to vector<1x32xf32>
    %195 = vector.broadcast %194 : vector<1x32xf32> to vector<16x32xf32>
    %196 = arith.addf %192, %195 : vector<16x32xf32>
    %cst_116 = arith.constant dense<0.000000e+00> : vector<16xf32>
    %197 = vector.multi_reduction <add>, %157, %cst_116 [1] : vector<16x32xf32> to vector<16xf32>
    %198 = vector.shape_cast %197 : vector<16xf32> to vector<16x1xf32>
    %cst_117 = arith.constant dense<0.000000e+00> : vector<16xf32>
    %199 = vector.multi_reduction <add>, %170, %cst_117 [1] : vector<16x32xf32> to vector<16xf32>
    %200 = vector.shape_cast %199 : vector<16xf32> to vector<16x1xf32>
    %201 = arith.addf %198, %200 : vector<16x1xf32>
    %202 = arith.mulf %157, %157 : vector<16x32xf32>
    %cst_118 = arith.constant dense<0.000000e+00> : vector<16xf32>
    %203 = vector.multi_reduction <add>, %202, %cst_118 [1] : vector<16x32xf32> to vector<16xf32>
    %204 = vector.shape_cast %203 : vector<16xf32> to vector<16x1xf32>
    %205 = arith.mulf %170, %170 : vector<16x32xf32>
    %cst_119 = arith.constant dense<0.000000e+00> : vector<16xf32>
    %206 = vector.multi_reduction <add>, %205, %cst_119 [1] : vector<16x32xf32> to vector<16xf32>
    %207 = vector.shape_cast %206 : vector<16xf32> to vector<16x1xf32>
    %208 = arith.addf %204, %207 : vector<16x1xf32>
    %cst_120 = arith.constant dense<0.000000e+00> : vector<16xf32>
    %209 = vector.multi_reduction <add>, %183, %cst_120 [1] : vector<16x32xf32> to vector<16xf32>
    %210 = vector.shape_cast %209 : vector<16xf32> to vector<16x1xf32>
    %cst_121 = arith.constant dense<0.000000e+00> : vector<16xf32>
    %211 = vector.multi_reduction <add>, %196, %cst_121 [1] : vector<16x32xf32> to vector<16xf32>
    %212 = vector.shape_cast %211 : vector<16xf32> to vector<16x1xf32>
    %213 = arith.addf %210, %212 : vector<16x1xf32>
    %214 = arith.mulf %183, %183 : vector<16x32xf32>
    %cst_122 = arith.constant dense<0.000000e+00> : vector<16xf32>
    %215 = vector.multi_reduction <add>, %214, %cst_122 [1] : vector<16x32xf32> to vector<16xf32>
    %216 = vector.shape_cast %215 : vector<16xf32> to vector<16x1xf32>
    %217 = arith.mulf %196, %196 : vector<16x32xf32>
    %cst_123 = arith.constant dense<0.000000e+00> : vector<16xf32>
    %218 = vector.multi_reduction <add>, %217, %cst_123 [1] : vector<16x32xf32> to vector<16xf32>
    %219 = vector.shape_cast %218 : vector<16xf32> to vector<16x1xf32>
    %220 = arith.addf %216, %219 : vector<16x1xf32>
    %cst_124 = arith.constant dense<0.000000e+00> : vector<16x1xf32>
    %221 = tpu.matmul %2, %213, %cst_124 {dimension_numbers = #tpu.dot_dimension_numbers<[1], [0], [0], [1], [0, 0, 1, 1], [], []>} : vector<16x16xf32>, vector<16x1xf32>, vector<16x1xf32> -> vector<16x1xf32>
    %222 = arith.addf %201, %221 : vector<16x1xf32>
    %cst_125 = arith.constant 1.280000e+02 : f32
    %223 = vector.broadcast %cst_125 : f32 to vector<16x1xf32>
    %224 = arith.divf %222, %223 : vector<16x1xf32>
    %cst_126 = arith.constant dense<0.000000e+00> : vector<16x1xf32>
    %225 = tpu.matmul %2, %220, %cst_126 {dimension_numbers = #tpu.dot_dimension_numbers<[1], [0], [0], [1], [0, 0, 1, 1], [], []>} : vector<16x16xf32>, vector<16x1xf32>, vector<16x1xf32> -> vector<16x1xf32>
    %226 = arith.addf %208, %225 : vector<16x1xf32>
    %cst_127 = arith.constant 1.280000e+02 : f32
    %227 = vector.broadcast %cst_127 : f32 to vector<16x1xf32>
    %228 = arith.divf %226, %227 : vector<16x1xf32>
    %229 = arith.mulf %224, %224 : vector<16x1xf32>
    %230 = arith.subf %228, %229 : vector<16x1xf32>
    %cst_128 = arith.constant 0.000000e+00 : f32
    %231 = vector.broadcast %cst_128 : f32 to vector<16x1xf32>
    %232 = arith.maximumf %230, %231 : vector<16x1xf32>
    %cst_129 = arith.constant 9.99999974E-6 : f32
    %233 = vector.broadcast %cst_129 : f32 to vector<16x1xf32>
    %234 = arith.addf %232, %233 : vector<16x1xf32>
    %235 = math.rsqrt %234 : vector<16x1xf32>
    %cst_130 = arith.constant dense<0.000000e+00> : vector<16x1xf32>
    %236 = tpu.matmul %2, %224, %cst_130 {dimension_numbers = #tpu.dot_dimension_numbers<[1], [0], [0], [1], [0, 0, 1, 1], [], []>} : vector<16x16xf32>, vector<16x1xf32>, vector<16x1xf32> -> vector<16x1xf32>
    %cst_131 = arith.constant dense<0.000000e+00> : vector<16x1xf32>
    %237 = tpu.matmul %2, %235, %cst_131 {dimension_numbers = #tpu.dot_dimension_numbers<[1], [0], [0], [1], [0, 0, 1, 1], [], []>} : vector<16x16xf32>, vector<16x1xf32>, vector<16x1xf32> -> vector<16x1xf32>
    %238 = vector.broadcast %224 : vector<16x1xf32> to vector<16x32xf32>
    %239 = arith.subf %157, %238 : vector<16x32xf32>
    %240 = vector.broadcast %235 : vector<16x1xf32> to vector<16x32xf32>
    %241 = arith.mulf %239, %240 : vector<16x32xf32>
    %c0_132 = arith.constant 0 : index
    %c0_133 = arith.constant 0 : index
    %c0_134 = arith.constant 0 : index
    %242 = vector.load %arg11[%c0_132, %c0_133, %c0_134] : memref<2x1x32xf32, #tpu.memory_space<vmem>>, vector<1x1x32xf32>
    %243 = vector.shape_cast %242 : vector<1x1x32xf32> to vector<1x32xf32>
    %244 = vector.broadcast %243 : vector<1x32xf32> to vector<16x32xf32>
    %245 = arith.mulf %241, %244 : vector<16x32xf32>
    %c0_135 = arith.constant 0 : index
    %c0_136 = arith.constant 0 : index
    %c0_137 = arith.constant 0 : index
    %246 = vector.load %arg12[%c0_135, %c0_136, %c0_137] : memref<2x1x32xf32, #tpu.memory_space<vmem>>, vector<1x1x32xf32>
    %247 = vector.shape_cast %246 : vector<1x1x32xf32> to vector<1x32xf32>
    %248 = vector.broadcast %247 : vector<1x32xf32> to vector<16x32xf32>
    %249 = arith.addf %245, %248 : vector<16x32xf32>
    %250 = arith.negf %249 : vector<16x32xf32>
    %251 = math.exp %250 : vector<16x32xf32>
    %cst_138 = arith.constant 1.000000e+00 : f32
    %252 = vector.broadcast %cst_138 : f32 to vector<16x32xf32>
    %253 = arith.addf %252, %251 : vector<16x32xf32>
    %254 = arith.divf %252, %253 : vector<16x32xf32>
    %255 = vector.broadcast %224 : vector<16x1xf32> to vector<16x32xf32>
    %256 = arith.subf %170, %255 : vector<16x32xf32>
    %257 = vector.broadcast %235 : vector<16x1xf32> to vector<16x32xf32>
    %258 = arith.mulf %256, %257 : vector<16x32xf32>
    %c0_139 = arith.constant 0 : index
    %c0_140 = arith.constant 0 : index
    %c0_141 = arith.constant 0 : index
    %259 = vector.load %arg16[%c0_139, %c0_140, %c0_141] : memref<2x1x32xf32, #tpu.memory_space<vmem>>, vector<1x1x32xf32>
    %260 = vector.shape_cast %259 : vector<1x1x32xf32> to vector<1x32xf32>
    %261 = vector.broadcast %260 : vector<1x32xf32> to vector<16x32xf32>
    %262 = arith.mulf %258, %261 : vector<16x32xf32>
    %c0_142 = arith.constant 0 : index
    %c0_143 = arith.constant 0 : index
    %c0_144 = arith.constant 0 : index
    %263 = vector.load %arg17[%c0_142, %c0_143, %c0_144] : memref<2x1x32xf32, #tpu.memory_space<vmem>>, vector<1x1x32xf32>
    %264 = vector.shape_cast %263 : vector<1x1x32xf32> to vector<1x32xf32>
    %265 = vector.broadcast %264 : vector<1x32xf32> to vector<16x32xf32>
    %266 = arith.addf %262, %265 : vector<16x32xf32>
    %267 = arith.negf %266 : vector<16x32xf32>
    %268 = math.exp %267 : vector<16x32xf32>
    %cst_145 = arith.constant 1.000000e+00 : f32
    %269 = vector.broadcast %cst_145 : f32 to vector<16x32xf32>
    %270 = arith.addf %269, %268 : vector<16x32xf32>
    %271 = arith.divf %269, %270 : vector<16x32xf32>
    %272 = vector.broadcast %236 : vector<16x1xf32> to vector<16x32xf32>
    %273 = arith.subf %183, %272 : vector<16x32xf32>
    %274 = vector.broadcast %237 : vector<16x1xf32> to vector<16x32xf32>
    %275 = arith.mulf %273, %274 : vector<16x32xf32>
    %c1_146 = arith.constant 1 : index
    %c0_147 = arith.constant 0 : index
    %c0_148 = arith.constant 0 : index
    %276 = vector.load %arg11[%c1_146, %c0_147, %c0_148] : memref<2x1x32xf32, #tpu.memory_space<vmem>>, vector<1x1x32xf32>
    %277 = vector.shape_cast %276 : vector<1x1x32xf32> to vector<1x32xf32>
    %278 = vector.broadcast %277 : vector<1x32xf32> to vector<16x32xf32>
    %279 = arith.mulf %275, %278 : vector<16x32xf32>
    %c1_149 = arith.constant 1 : index
    %c0_150 = arith.constant 0 : index
    %c0_151 = arith.constant 0 : index
    %280 = vector.load %arg12[%c1_149, %c0_150, %c0_151] : memref<2x1x32xf32, #tpu.memory_space<vmem>>, vector<1x1x32xf32>
    %281 = vector.shape_cast %280 : vector<1x1x32xf32> to vector<1x32xf32>
    %282 = vector.broadcast %281 : vector<1x32xf32> to vector<16x32xf32>
    %283 = arith.addf %279, %282 : vector<16x32xf32>
    %284 = arith.negf %283 : vector<16x32xf32>
    %285 = math.exp %284 : vector<16x32xf32>
    %cst_152 = arith.constant 1.000000e+00 : f32
    %286 = vector.broadcast %cst_152 : f32 to vector<16x32xf32>
    %287 = arith.addf %286, %285 : vector<16x32xf32>
    %288 = arith.divf %286, %287 : vector<16x32xf32>
    %289 = vector.broadcast %236 : vector<16x1xf32> to vector<16x32xf32>
    %290 = arith.subf %196, %289 : vector<16x32xf32>
    %291 = vector.broadcast %237 : vector<16x1xf32> to vector<16x32xf32>
    %292 = arith.mulf %290, %291 : vector<16x32xf32>
    %c1_153 = arith.constant 1 : index
    %c0_154 = arith.constant 0 : index
    %c0_155 = arith.constant 0 : index
    %293 = vector.load %arg16[%c1_153, %c0_154, %c0_155] : memref<2x1x32xf32, #tpu.memory_space<vmem>>, vector<1x1x32xf32>
    %294 = vector.shape_cast %293 : vector<1x1x32xf32> to vector<1x32xf32>
    %295 = vector.broadcast %294 : vector<1x32xf32> to vector<16x32xf32>
    %296 = arith.mulf %292, %295 : vector<16x32xf32>
    %c1_156 = arith.constant 1 : index
    %c0_157 = arith.constant 0 : index
    %c0_158 = arith.constant 0 : index
    %297 = vector.load %arg17[%c1_156, %c0_157, %c0_158] : memref<2x1x32xf32, #tpu.memory_space<vmem>>, vector<1x1x32xf32>
    %298 = vector.shape_cast %297 : vector<1x1x32xf32> to vector<1x32xf32>
    %299 = vector.broadcast %298 : vector<1x32xf32> to vector<16x32xf32>
    %300 = arith.addf %296, %299 : vector<16x32xf32>
    %301 = arith.negf %300 : vector<16x32xf32>
    %302 = math.exp %301 : vector<16x32xf32>
    %cst_159 = arith.constant 1.000000e+00 : f32
    %303 = vector.broadcast %cst_159 : f32 to vector<16x32xf32>
    %304 = arith.addf %303, %302 : vector<16x32xf32>
    %305 = arith.divf %303, %304 : vector<16x32xf32>
    %306 = arith.truncf %29 : vector<16x32xf32> to vector<16x32xbf16>
    %c0_160 = arith.constant 0 : index
    %c0_161 = arith.constant 0 : index
    %c0_162 = arith.constant 0 : index
    %307 = vector.load %arg18[%c0_160, %c0_161, %c0_162] : memref<2x32x128xbf16, #tpu.memory_space<vmem>>, vector<1x32x128xbf16>
    %308 = vector.shape_cast %307 : vector<1x32x128xbf16> to vector<32x128xbf16>
    %cst_163 = arith.constant dense<0.000000e+00> : vector<16x128xf32>
    %309 = tpu.matmul %306, %308, %cst_163 {dimension_numbers = #tpu.dot_dimension_numbers<[1], [0], [0], [1], [0, 0, 1, 1], [], []>} : vector<16x32xbf16>, vector<32x128xbf16>, vector<16x128xf32> -> vector<16x128xf32>
    %310 = arith.truncf %132 : vector<16x32xf32> to vector<16x32xbf16>
    %c0_164 = arith.constant 0 : index
    %c0_165 = arith.constant 0 : index
    %c0_166 = arith.constant 0 : index
    %311 = vector.load %arg19[%c0_164, %c0_165, %c0_166] : memref<2x32x128xbf16, #tpu.memory_space<vmem>>, vector<1x32x128xbf16>
    %312 = vector.shape_cast %311 : vector<1x32x128xbf16> to vector<32x128xbf16>
    %cst_167 = arith.constant dense<0.000000e+00> : vector<16x128xf32>
    %313 = tpu.matmul %310, %312, %cst_167 {dimension_numbers = #tpu.dot_dimension_numbers<[1], [0], [0], [1], [0, 0, 1, 1], [], []>} : vector<16x32xbf16>, vector<32x128xbf16>, vector<16x128xf32> -> vector<16x128xf32>
    %314 = arith.addf %309, %313 : vector<16x128xf32>
    %c0_168 = arith.constant 0 : index
    %c0_169 = arith.constant 0 : index
    %c0_170 = arith.constant 0 : index
    %315 = vector.load %arg20[%c0_168, %c0_169, %c0_170] : memref<2x1x128xf32, #tpu.memory_space<vmem>>, vector<1x1x128xf32>
    %316 = vector.shape_cast %315 : vector<1x1x128xf32> to vector<1x128xf32>
    %317 = vector.broadcast %316 : vector<1x128xf32> to vector<16x128xf32>
    %318 = arith.addf %314, %317 : vector<16x128xf32>
    %cst_171 = arith.constant 0.000000e+00 : f32
    %319 = vector.broadcast %cst_171 : f32 to vector<16x128xf32>
    %320 = arith.maximumf %318, %319 : vector<16x128xf32>
    %321 = arith.truncf %37 : vector<16x32xf32> to vector<16x32xbf16>
    %c1_172 = arith.constant 1 : index
    %c0_173 = arith.constant 0 : index
    %c0_174 = arith.constant 0 : index
    %322 = vector.load %arg18[%c1_172, %c0_173, %c0_174] : memref<2x32x128xbf16, #tpu.memory_space<vmem>>, vector<1x32x128xbf16>
    %323 = vector.shape_cast %322 : vector<1x32x128xbf16> to vector<32x128xbf16>
    %cst_175 = arith.constant dense<0.000000e+00> : vector<16x128xf32>
    %324 = tpu.matmul %321, %323, %cst_175 {dimension_numbers = #tpu.dot_dimension_numbers<[1], [0], [0], [1], [0, 0, 1, 1], [], []>} : vector<16x32xbf16>, vector<32x128xbf16>, vector<16x128xf32> -> vector<16x128xf32>
    %325 = arith.truncf %144 : vector<16x32xf32> to vector<16x32xbf16>
    %c1_176 = arith.constant 1 : index
    %c0_177 = arith.constant 0 : index
    %c0_178 = arith.constant 0 : index
    %326 = vector.load %arg19[%c1_176, %c0_177, %c0_178] : memref<2x32x128xbf16, #tpu.memory_space<vmem>>, vector<1x32x128xbf16>
    %327 = vector.shape_cast %326 : vector<1x32x128xbf16> to vector<32x128xbf16>
    %cst_179 = arith.constant dense<0.000000e+00> : vector<16x128xf32>
    %328 = tpu.matmul %325, %327, %cst_179 {dimension_numbers = #tpu.dot_dimension_numbers<[1], [0], [0], [1], [0, 0, 1, 1], [], []>} : vector<16x32xbf16>, vector<32x128xbf16>, vector<16x128xf32> -> vector<16x128xf32>
    %329 = arith.addf %324, %328 : vector<16x128xf32>
    %c1_180 = arith.constant 1 : index
    %c0_181 = arith.constant 0 : index
    %c0_182 = arith.constant 0 : index
    %330 = vector.load %arg20[%c1_180, %c0_181, %c0_182] : memref<2x1x128xf32, #tpu.memory_space<vmem>>, vector<1x1x128xf32>
    %331 = vector.shape_cast %330 : vector<1x1x128xf32> to vector<1x128xf32>
    %332 = vector.broadcast %331 : vector<1x128xf32> to vector<16x128xf32>
    %333 = arith.addf %329, %332 : vector<16x128xf32>
    %cst_183 = arith.constant 0.000000e+00 : f32
    %334 = vector.broadcast %cst_183 : f32 to vector<16x128xf32>
    %335 = arith.maximumf %333, %334 : vector<16x128xf32>
    %336 = arith.truncf %320 : vector<16x128xf32> to vector<16x128xbf16>
    %c0_184 = arith.constant 0 : index
    %c0_185 = arith.constant 0 : index
    %c0_186 = arith.constant 0 : index
    %337 = vector.load %arg21[%c0_184, %c0_185, %c0_186] : memref<2x128x32xbf16, #tpu.memory_space<vmem>>, vector<1x128x32xbf16>
    %338 = vector.shape_cast %337 : vector<1x128x32xbf16> to vector<128x32xbf16>
    %cst_187 = arith.constant dense<0.000000e+00> : vector<16x32xf32>
    %339 = tpu.matmul %336, %338, %cst_187 {dimension_numbers = #tpu.dot_dimension_numbers<[1], [0], [0], [1], [0, 0, 1, 1], [], []>} : vector<16x128xbf16>, vector<128x32xbf16>, vector<16x32xf32> -> vector<16x32xf32>
    %c0_188 = arith.constant 0 : index
    %c0_189 = arith.constant 0 : index
    %c0_190 = arith.constant 0 : index
    %340 = vector.load %arg22[%c0_188, %c0_189, %c0_190] : memref<2x1x32xf32, #tpu.memory_space<vmem>>, vector<1x1x32xf32>
    %341 = vector.shape_cast %340 : vector<1x1x32xf32> to vector<1x32xf32>
    %342 = vector.broadcast %341 : vector<1x32xf32> to vector<16x32xf32>
    %343 = arith.addf %339, %342 : vector<16x32xf32>
    %344 = arith.truncf %335 : vector<16x128xf32> to vector<16x128xbf16>
    %c1_191 = arith.constant 1 : index
    %c0_192 = arith.constant 0 : index
    %c0_193 = arith.constant 0 : index
    %345 = vector.load %arg21[%c1_191, %c0_192, %c0_193] : memref<2x128x32xbf16, #tpu.memory_space<vmem>>, vector<1x128x32xbf16>
    %346 = vector.shape_cast %345 : vector<1x128x32xbf16> to vector<128x32xbf16>
    %cst_194 = arith.constant dense<0.000000e+00> : vector<16x32xf32>
    %347 = tpu.matmul %344, %346, %cst_194 {dimension_numbers = #tpu.dot_dimension_numbers<[1], [0], [0], [1], [0, 0, 1, 1], [], []>} : vector<16x128xbf16>, vector<128x32xbf16>, vector<16x32xf32> -> vector<16x32xf32>
    %c1_195 = arith.constant 1 : index
    %c0_196 = arith.constant 0 : index
    %c0_197 = arith.constant 0 : index
    %348 = vector.load %arg22[%c1_195, %c0_196, %c0_197] : memref<2x1x32xf32, #tpu.memory_space<vmem>>, vector<1x1x32xf32>
    %349 = vector.shape_cast %348 : vector<1x1x32xf32> to vector<1x32xf32>
    %350 = vector.broadcast %349 : vector<1x32xf32> to vector<16x32xf32>
    %351 = arith.addf %347, %350 : vector<16x32xf32>
    %352 = arith.mulf %254, %343 : vector<16x32xf32>
    %353 = arith.mulf %288, %351 : vector<16x32xf32>
    %354 = vector.broadcast %1 : vector<16x1xf32> to vector<16x32xf32>
    %355 = arith.mulf %305, %354 : vector<16x32xf32>
    %cst_198 = arith.constant 1.000000e+00 : f32
    %356 = vector.broadcast %cst_198 : f32 to vector<16x1xf32>
    %357 = arith.subf %356, %1 : vector<16x1xf32>
    %358 = vector.broadcast %357 : vector<16x1xf32> to vector<16x32xf32>
    %359 = arith.addf %355, %358 : vector<16x32xf32>
    %360 = vector.broadcast %1 : vector<16x1xf32> to vector<16x32xf32>
    %361 = arith.mulf %353, %360 : vector<16x32xf32>
    %c8_199 = arith.constant 8 : index
    %c0_200 = arith.constant 0 : index
    %362 = vector.load %arg30[%c8_199, %c0_200] : memref<32x32xf32, #tpu.memory_space<vmem>>, vector<16x32xf32>
    tpu.vector_store %arg30[%c8_199, %c0_200], %271 {strides = array<i32>} : memref<32x32xf32, #tpu.memory_space<vmem>>, vector<16x32xf32>,
    %c7_201 = arith.constant 7 : index
    %c0_202 = arith.constant 0 : index
    %363 = vector.load %arg30[%c7_201, %c0_202] : memref<32x32xf32, #tpu.memory_space<vmem>>, vector<16x32xf32>
    %c8_203 = arith.constant 8 : index
    %c0_204 = arith.constant 0 : index
    %364 = vector.load %arg30[%c8_203, %c0_204] : memref<32x32xf32, #tpu.memory_space<vmem>>, vector<16x32xf32>
    tpu.vector_store %arg30[%c8_203, %c0_204], %352 {strides = array<i32>} : memref<32x32xf32, #tpu.memory_space<vmem>>, vector<16x32xf32>,
    %c7_205 = arith.constant 7 : index
    %c0_206 = arith.constant 0 : index
    %365 = vector.load %arg30[%c7_205, %c0_206] : memref<32x32xf32, #tpu.memory_space<vmem>>, vector<16x32xf32>
    %c1_i32_207 = arith.constant 1 : i32
    %366 = vector.broadcast %c1_i32_207 : i32 to vector<16x1xi32>
    %367 = arith.cmpi sge, %19, %366 : vector<16x1xi32>
    %368 = arith.mulf %271, %365 : vector<16x32xf32>
    %369 = arith.addf %352, %368 : vector<16x32xf32>
    %370 = vector.shape_cast %367 : vector<16x1xi1> to vector<16x1xi1>
    %371 = vector.broadcast %370 : vector<16x1xi1> to vector<16x32xi1>
    %372 = arith.select %371, %369, %352 : vector<16x32xi1>, vector<16x32xf32>
    %373 = arith.mulf %271, %363 : vector<16x32xf32>
    %374 = vector.shape_cast %367 : vector<16x1xi1> to vector<16x1xi1>
    %375 = vector.broadcast %374 : vector<16x1xi1> to vector<16x32xi1>
    %376 = arith.select %375, %373, %271 : vector<16x32xi1>, vector<16x32xf32>
    %c8_208 = arith.constant 8 : index
    %c0_209 = arith.constant 0 : index
    %377 = vector.load %arg30[%c8_208, %c0_209] : memref<32x32xf32, #tpu.memory_space<vmem>>, vector<16x32xf32>
    tpu.vector_store %arg30[%c8_208, %c0_209], %376 {strides = array<i32>} : memref<32x32xf32, #tpu.memory_space<vmem>>, vector<16x32xf32>,
    %c6_210 = arith.constant 6 : index
    %c0_211 = arith.constant 0 : index
    %378 = vector.load %arg30[%c6_210, %c0_211] : memref<32x32xf32, #tpu.memory_space<vmem>>, vector<16x32xf32>
    %c8_212 = arith.constant 8 : index
    %c0_213 = arith.constant 0 : index
    %379 = vector.load %arg30[%c8_212, %c0_213] : memref<32x32xf32, #tpu.memory_space<vmem>>, vector<16x32xf32>
    tpu.vector_store %arg30[%c8_212, %c0_213], %372 {strides = array<i32>} : memref<32x32xf32, #tpu.memory_space<vmem>>, vector<16x32xf32>,
    %c6_214 = arith.constant 6 : index
    %c0_215 = arith.constant 0 : index
    %380 = vector.load %arg30[%c6_214, %c0_215] : memref<32x32xf32, #tpu.memory_space<vmem>>, vector<16x32xf32>
    %c2_i32_216 = arith.constant 2 : i32
    %381 = vector.broadcast %c2_i32_216 : i32 to vector<16x1xi32>
    %382 = arith.cmpi sge, %19, %381 : vector<16x1xi32>
    %383 = arith.mulf %376, %380 : vector<16x32xf32>
    %384 = arith.addf %372, %383 : vector<16x32xf32>
    %385 = vector.shape_cast %382 : vector<16x1xi1> to vector<16x1xi1>
    %386 = vector.broadcast %385 : vector<16x1xi1> to vector<16x32xi1>
    %387 = arith.select %386, %384, %372 : vector<16x32xi1>, vector<16x32xf32>
    %388 = arith.mulf %376, %378 : vector<16x32xf32>
    %389 = vector.shape_cast %382 : vector<16x1xi1> to vector<16x1xi1>
    %390 = vector.broadcast %389 : vector<16x1xi1> to vector<16x32xi1>
    %391 = arith.select %390, %388, %376 : vector<16x32xi1>, vector<16x32xf32>
    %c8_217 = arith.constant 8 : index
    %c0_218 = arith.constant 0 : index
    %392 = vector.load %arg30[%c8_217, %c0_218] : memref<32x32xf32, #tpu.memory_space<vmem>>, vector<16x32xf32>
    tpu.vector_store %arg30[%c8_217, %c0_218], %391 {strides = array<i32>} : memref<32x32xf32, #tpu.memory_space<vmem>>, vector<16x32xf32>,
    %c4_219 = arith.constant 4 : index
    %c0_220 = arith.constant 0 : index
    %393 = vector.load %arg30[%c4_219, %c0_220] : memref<32x32xf32, #tpu.memory_space<vmem>>, vector<16x32xf32>
    %c8_221 = arith.constant 8 : index
    %c0_222 = arith.constant 0 : index
    %394 = vector.load %arg30[%c8_221, %c0_222] : memref<32x32xf32, #tpu.memory_space<vmem>>, vector<16x32xf32>
    tpu.vector_store %arg30[%c8_221, %c0_222], %387 {strides = array<i32>} : memref<32x32xf32, #tpu.memory_space<vmem>>, vector<16x32xf32>,
    %c4_223 = arith.constant 4 : index
    %c0_224 = arith.constant 0 : index
    %395 = vector.load %arg30[%c4_223, %c0_224] : memref<32x32xf32, #tpu.memory_space<vmem>>, vector<16x32xf32>
    %c4_i32_225 = arith.constant 4 : i32
    %396 = vector.broadcast %c4_i32_225 : i32 to vector<16x1xi32>
    %397 = arith.cmpi sge, %19, %396 : vector<16x1xi32>
    %398 = arith.mulf %391, %395 : vector<16x32xf32>
    %399 = arith.addf %387, %398 : vector<16x32xf32>
    %400 = vector.shape_cast %397 : vector<16x1xi1> to vector<16x1xi1>
    %401 = vector.broadcast %400 : vector<16x1xi1> to vector<16x32xi1>
    %402 = arith.select %401, %399, %387 : vector<16x32xi1>, vector<16x32xf32>
    %403 = arith.mulf %391, %393 : vector<16x32xf32>
    %404 = vector.shape_cast %397 : vector<16x1xi1> to vector<16x1xi1>
    %405 = vector.broadcast %404 : vector<16x1xi1> to vector<16x32xi1>
    %406 = arith.select %405, %403, %391 : vector<16x32xi1>, vector<16x32xf32>
    %c8_226 = arith.constant 8 : index
    %c0_227 = arith.constant 0 : index
    %407 = vector.load %arg30[%c8_226, %c0_227] : memref<32x32xf32, #tpu.memory_space<vmem>>, vector<16x32xf32>
    tpu.vector_store %arg30[%c8_226, %c0_227], %359 {strides = array<i32>} : memref<32x32xf32, #tpu.memory_space<vmem>>, vector<16x32xf32>,
    %c9_228 = arith.constant 9 : index
    %c0_229 = arith.constant 0 : index
    %408 = vector.load %arg30[%c9_228, %c0_229] : memref<32x32xf32, #tpu.memory_space<vmem>>, vector<16x32xf32>
    %c8_230 = arith.constant 8 : index
    %c0_231 = arith.constant 0 : index
    %409 = vector.load %arg30[%c8_230, %c0_231] : memref<32x32xf32, #tpu.memory_space<vmem>>, vector<16x32xf32>
    tpu.vector_store %arg30[%c8_230, %c0_231], %361 {strides = array<i32>} : memref<32x32xf32, #tpu.memory_space<vmem>>, vector<16x32xf32>,
    %c9_232 = arith.constant 9 : index
    %c0_233 = arith.constant 0 : index
    %410 = vector.load %arg30[%c9_232, %c0_233] : memref<32x32xf32, #tpu.memory_space<vmem>>, vector<16x32xf32>
    %c7_i32_234 = arith.constant 7 : i32
    %411 = vector.broadcast %c7_i32_234 : i32 to vector<16x1xi32>
    %412 = arith.cmpi slt, %19, %411 : vector<16x1xi32>
    %413 = arith.mulf %359, %410 : vector<16x32xf32>
    %414 = arith.addf %361, %413 : vector<16x32xf32>
    %415 = vector.shape_cast %412 : vector<16x1xi1> to vector<16x1xi1>
    %416 = vector.broadcast %415 : vector<16x1xi1> to vector<16x32xi1>
    %417 = arith.select %416, %414, %361 : vector<16x32xi1>, vector<16x32xf32>
    %418 = arith.mulf %359, %408 : vector<16x32xf32>
    %419 = vector.shape_cast %412 : vector<16x1xi1> to vector<16x1xi1>
    %420 = vector.broadcast %419 : vector<16x1xi1> to vector<16x32xi1>
    %421 = arith.select %420, %418, %359 : vector<16x32xi1>, vector<16x32xf32>
    %c8_235 = arith.constant 8 : index
    %c0_236 = arith.constant 0 : index
    %422 = vector.load %arg30[%c8_235, %c0_236] : memref<32x32xf32, #tpu.memory_space<vmem>>, vector<16x32xf32>
    tpu.vector_store %arg30[%c8_235, %c0_236], %421 {strides = array<i32>} : memref<32x32xf32, #tpu.memory_space<vmem>>, vector<16x32xf32>,
    %c10_237 = arith.constant 10 : index
    %c0_238 = arith.constant 0 : index
    %423 = vector.load %arg30[%c10_237, %c0_238] : memref<32x32xf32, #tpu.memory_space<vmem>>, vector<16x32xf32>
    %c8_239 = arith.constant 8 : index
    %c0_240 = arith.constant 0 : index
    %424 = vector.load %arg30[%c8_239, %c0_240] : memref<32x32xf32, #tpu.memory_space<vmem>>, vector<16x32xf32>
    tpu.vector_store %arg30[%c8_239, %c0_240], %417 {strides = array<i32>} : memref<32x32xf32, #tpu.memory_space<vmem>>, vector<16x32xf32>,
    %c10_241 = arith.constant 10 : index
    %c0_242 = arith.constant 0 : index
    %425 = vector.load %arg30[%c10_241, %c0_242] : memref<32x32xf32, #tpu.memory_space<vmem>>, vector<16x32xf32>
    %c6_i32_243 = arith.constant 6 : i32
    %426 = vector.broadcast %c6_i32_243 : i32 to vector<16x1xi32>
    %427 = arith.cmpi slt, %19, %426 : vector<16x1xi32>
    %428 = arith.mulf %421, %425 : vector<16x32xf32>
    %429 = arith.addf %417, %428 : vector<16x32xf32>
    %430 = vector.shape_cast %427 : vector<16x1xi1> to vector<16x1xi1>
    %431 = vector.broadcast %430 : vector<16x1xi1> to vector<16x32xi1>
    %432 = arith.select %431, %429, %417 : vector<16x32xi1>, vector<16x32xf32>
    %433 = arith.mulf %421, %423 : vector<16x32xf32>
    %434 = vector.shape_cast %427 : vector<16x1xi1> to vector<16x1xi1>
    %435 = vector.broadcast %434 : vector<16x1xi1> to vector<16x32xi1>
    %436 = arith.select %435, %433, %421 : vector<16x32xi1>, vector<16x32xf32>
    %c8_244 = arith.constant 8 : index
    %c0_245 = arith.constant 0 : index
    %437 = vector.load %arg30[%c8_244, %c0_245] : memref<32x32xf32, #tpu.memory_space<vmem>>, vector<16x32xf32>
    tpu.vector_store %arg30[%c8_244, %c0_245], %436 {strides = array<i32>} : memref<32x32xf32, #tpu.memory_space<vmem>>, vector<16x32xf32>,
    %c12_246 = arith.constant 12 : index
    %c0_247 = arith.constant 0 : index
    %438 = vector.load %arg30[%c12_246, %c0_247] : memref<32x32xf32, #tpu.memory_space<vmem>>, vector<16x32xf32>
    %c8_248 = arith.constant 8 : index
    %c0_249 = arith.constant 0 : index
    %439 = vector.load %arg30[%c8_248, %c0_249] : memref<32x32xf32, #tpu.memory_space<vmem>>, vector<16x32xf32>
    tpu.vector_store %arg30[%c8_248, %c0_249], %432 {strides = array<i32>} : memref<32x32xf32, #tpu.memory_space<vmem>>, vector<16x32xf32>,
    %c12_250 = arith.constant 12 : index
    %c0_251 = arith.constant 0 : index
    %440 = vector.load %arg30[%c12_250, %c0_251] : memref<32x32xf32, #tpu.memory_space<vmem>>, vector<16x32xf32>
    %c4_i32_252 = arith.constant 4 : i32
    %441 = vector.broadcast %c4_i32_252 : i32 to vector<16x1xi32>
    %442 = arith.cmpi slt, %19, %441 : vector<16x1xi32>
    %443 = arith.mulf %436, %440 : vector<16x32xf32>
    %444 = arith.addf %432, %443 : vector<16x32xf32>
    %445 = vector.shape_cast %442 : vector<16x1xi1> to vector<16x1xi1>
    %446 = vector.broadcast %445 : vector<16x1xi1> to vector<16x32xi1>
    %447 = arith.select %446, %444, %432 : vector<16x32xi1>, vector<16x32xf32>
    %448 = arith.mulf %436, %438 : vector<16x32xf32>
    %449 = vector.shape_cast %442 : vector<16x1xi1> to vector<16x1xi1>
    %450 = vector.broadcast %449 : vector<16x1xi1> to vector<16x32xi1>
    %451 = arith.select %450, %448, %436 : vector<16x32xi1>, vector<16x32xf32>
    %c0_253 = arith.constant 0 : index
    %c0_254 = arith.constant 0 : index
    %c0_255 = arith.constant 0 : index
    %452 = vector.load %arg26[%c0_253, %c0_254, %c0_255] : memref<2x1x32xf32, #tpu.memory_space<vmem>>, vector<1x1x32xf32>
    %453 = vector.shape_cast %452 : vector<1x1x32xf32> to vector<1x32xf32>
    %454 = vector.broadcast %453 : vector<1x32xf32> to vector<16x32xf32>
    %455 = arith.mulf %406, %454 : vector<16x32xf32>
    %456 = arith.addf %402, %455 : vector<16x32xf32>
    %c1_256 = arith.constant 1 : index
    %c0_257 = arith.constant 0 : index
    %c0_258 = arith.constant 0 : index
    %457 = vector.load %arg26[%c1_256, %c0_257, %c0_258] : memref<2x1x32xf32, #tpu.memory_space<vmem>>, vector<1x1x32xf32>
    %458 = vector.shape_cast %457 : vector<1x1x32xf32> to vector<1x32xf32>
    %459 = vector.broadcast %458 : vector<1x32xf32> to vector<16x32xf32>
    %460 = arith.mulf %451, %459 : vector<16x32xf32>
    %461 = arith.addf %447, %460 : vector<16x32xf32>
    %462 = arith.truncf %29 : vector<16x32xf32> to vector<16x32xbf16>
    %c0_259 = arith.constant 0 : index
    %c0_260 = arith.constant 0 : index
    %c0_261 = arith.constant 0 : index
    %463 = vector.load %arg23[%c0_259, %c0_260, %c0_261] : memref<2x32x32xbf16, #tpu.memory_space<vmem>>, vector<1x32x32xbf16>
    %464 = vector.shape_cast %463 : vector<1x32x32xbf16> to vector<32x32xbf16>
    %cst_262 = arith.constant dense<0.000000e+00> : vector<16x32xf32>
    %465 = tpu.matmul %462, %464, %cst_262 {dimension_numbers = #tpu.dot_dimension_numbers<[1], [0], [0], [1], [0, 0, 1, 1], [], []>} : vector<16x32xbf16>, vector<32x32xbf16>, vector<16x32xf32> -> vector<16x32xf32>
    %466 = arith.truncf %456 : vector<16x32xf32> to vector<16x32xbf16>
    %c0_263 = arith.constant 0 : index
    %c0_264 = arith.constant 0 : index
    %c0_265 = arith.constant 0 : index
    %467 = vector.load %arg24[%c0_263, %c0_264, %c0_265] : memref<2x32x32xbf16, #tpu.memory_space<vmem>>, vector<1x32x32xbf16>
    %468 = vector.shape_cast %467 : vector<1x32x32xbf16> to vector<32x32xbf16>
    %cst_266 = arith.constant dense<0.000000e+00> : vector<16x32xf32>
    %469 = tpu.matmul %466, %468, %cst_266 {dimension_numbers = #tpu.dot_dimension_numbers<[1], [0], [0], [1], [0, 0, 1, 1], [], []>} : vector<16x32xbf16>, vector<32x32xbf16>, vector<16x32xf32> -> vector<16x32xf32>
    %470 = arith.addf %465, %469 : vector<16x32xf32>
    %c0_267 = arith.constant 0 : index
    %c0_268 = arith.constant 0 : index
    %c0_269 = arith.constant 0 : index
    %471 = vector.load %arg25[%c0_267, %c0_268, %c0_269] : memref<2x1x32xf32, #tpu.memory_space<vmem>>, vector<1x1x32xf32>
    %472 = vector.shape_cast %471 : vector<1x1x32xf32> to vector<1x32xf32>
    %473 = vector.broadcast %472 : vector<1x32xf32> to vector<16x32xf32>
    %474 = arith.addf %470, %473 : vector<16x32xf32>
    %475 = arith.negf %474 : vector<16x32xf32>
    %476 = math.exp %475 : vector<16x32xf32>
    %cst_270 = arith.constant 1.000000e+00 : f32
    %477 = vector.broadcast %cst_270 : f32 to vector<16x32xf32>
    %478 = arith.addf %477, %476 : vector<16x32xf32>
    %479 = arith.divf %477, %478 : vector<16x32xf32>
    %480 = arith.truncf %37 : vector<16x32xf32> to vector<16x32xbf16>
    %c1_271 = arith.constant 1 : index
    %c0_272 = arith.constant 0 : index
    %c0_273 = arith.constant 0 : index
    %481 = vector.load %arg23[%c1_271, %c0_272, %c0_273] : memref<2x32x32xbf16, #tpu.memory_space<vmem>>, vector<1x32x32xbf16>
    %482 = vector.shape_cast %481 : vector<1x32x32xbf16> to vector<32x32xbf16>
    %cst_274 = arith.constant dense<0.000000e+00> : vector<16x32xf32>
    %483 = tpu.matmul %480, %482, %cst_274 {dimension_numbers = #tpu.dot_dimension_numbers<[1], [0], [0], [1], [0, 0, 1, 1], [], []>} : vector<16x32xbf16>, vector<32x32xbf16>, vector<16x32xf32> -> vector<16x32xf32>
    %484 = arith.truncf %461 : vector<16x32xf32> to vector<16x32xbf16>
    %c1_275 = arith.constant 1 : index
    %c0_276 = arith.constant 0 : index
    %c0_277 = arith.constant 0 : index
    %485 = vector.load %arg24[%c1_275, %c0_276, %c0_277] : memref<2x32x32xbf16, #tpu.memory_space<vmem>>, vector<1x32x32xbf16>
    %486 = vector.shape_cast %485 : vector<1x32x32xbf16> to vector<32x32xbf16>
    %cst_278 = arith.constant dense<0.000000e+00> : vector<16x32xf32>
    %487 = tpu.matmul %484, %486, %cst_278 {dimension_numbers = #tpu.dot_dimension_numbers<[1], [0], [0], [1], [0, 0, 1, 1], [], []>} : vector<16x32xbf16>, vector<32x32xbf16>, vector<16x32xf32> -> vector<16x32xf32>
    %488 = arith.addf %483, %487 : vector<16x32xf32>
    %c1_279 = arith.constant 1 : index
    %c0_280 = arith.constant 0 : index
    %c0_281 = arith.constant 0 : index
    %489 = vector.load %arg25[%c1_279, %c0_280, %c0_281] : memref<2x1x32xf32, #tpu.memory_space<vmem>>, vector<1x1x32xf32>
    %490 = vector.shape_cast %489 : vector<1x1x32xf32> to vector<1x32xf32>
    %491 = vector.broadcast %490 : vector<1x32xf32> to vector<16x32xf32>
    %492 = arith.addf %488, %491 : vector<16x32xf32>
    %493 = arith.negf %492 : vector<16x32xf32>
    %494 = math.exp %493 : vector<16x32xf32>
    %cst_282 = arith.constant 1.000000e+00 : f32
    %495 = vector.broadcast %cst_282 : f32 to vector<16x32xf32>
    %496 = arith.addf %495, %494 : vector<16x32xf32>
    %497 = arith.divf %495, %496 : vector<16x32xf32>
    %498 = arith.mulf %479, %456 : vector<16x32xf32>
    %499 = arith.mulf %497, %461 : vector<16x32xf32>
    %500 = arith.truncf %498 : vector<16x32xf32> to vector<16x32xbf16>
    %c0_283 = arith.constant 0 : index
    %c0_284 = arith.constant 0 : index
    %c0_285 = arith.constant 0 : index
    %501 = vector.load %arg27[%c0_283, %c0_284, %c0_285] : memref<2x32x32xbf16, #tpu.memory_space<vmem>>, vector<1x32x32xbf16>
    %502 = vector.shape_cast %501 : vector<1x32x32xbf16> to vector<32x32xbf16>
    %cst_286 = arith.constant dense<0.000000e+00> : vector<16x32xf32>
    %503 = tpu.matmul %500, %502, %cst_286 {dimension_numbers = #tpu.dot_dimension_numbers<[1], [0], [0], [1], [0, 0, 1, 1], [], []>} : vector<16x32xbf16>, vector<32x32xbf16>, vector<16x32xf32> -> vector<16x32xf32>
    %504 = arith.truncf %499 : vector<16x32xf32> to vector<16x32xbf16>
    %c1_287 = arith.constant 1 : index
    %c0_288 = arith.constant 0 : index
    %c0_289 = arith.constant 0 : index
    %505 = vector.load %arg27[%c1_287, %c0_288, %c0_289] : memref<2x32x32xbf16, #tpu.memory_space<vmem>>, vector<1x32x32xbf16>
    %506 = vector.shape_cast %505 : vector<1x32x32xbf16> to vector<32x32xbf16>
    %cst_290 = arith.constant dense<0.000000e+00> : vector<16x32xf32>
    %507 = tpu.matmul %504, %506, %cst_290 {dimension_numbers = #tpu.dot_dimension_numbers<[1], [0], [0], [1], [0, 0, 1, 1], [], []>} : vector<16x32xbf16>, vector<32x32xbf16>, vector<16x32xf32> -> vector<16x32xf32>
    %508 = arith.addf %503, %507 : vector<16x32xf32>
    %c0_291 = arith.constant 0 : index
    %c0_292 = arith.constant 0 : index
    %509 = vector.load %arg28[%c0_291, %c0_292] : memref<1x32xf32, #tpu.memory_space<vmem>>, vector<1x32xf32>
    %510 = vector.broadcast %509 : vector<1x32xf32> to vector<16x32xf32>
    %511 = arith.addf %508, %510 : vector<16x32xf32>
    %512 = arith.addf %511, %0 : vector<16x32xf32>
    %c0_293 = arith.constant 0 : index
    %c0_294 = arith.constant 0 : index
    %513 = vector.load %arg29[%c0_293, %c0_294] : memref<16x32xf32, #tpu.memory_space<vmem>>, vector<16x32xf32>
    tpu.vector_store %arg29[%c0_293, %c0_294], %512 {strides = array<i32>} : memref<16x32xf32, #tpu.memory_space<vmem>>, vector<16x32xf32>,
    return
  }
  func.func @transform_0(%arg0: i32) -> (i32, i32) {
    %c0_i32 = arith.constant 0 : i32
    %c0_i32_0 = arith.constant 0 : i32
    return %arg0, %c0_i32 : i32, i32
  }
  func.func @transform_1(%arg0: i32) -> (i32, i32) {
    %c0_i32 = arith.constant 0 : i32
    %c0_i32_0 = arith.constant 0 : i32
    return %arg0, %c0_i32 : i32, i32
  }
  func.func @transform_2(%arg0: i32) -> (i32, i32) {
    %c0_i32 = arith.constant 0 : i32
    %c0_i32_0 = arith.constant 0 : i32
    %c0_i32_1 = arith.constant 0 : i32
    return %c0_i32, %c0_i32_0 : i32, i32
  }
  func.func @transform_3(%arg0: i32) -> (i32, i32, i32) {
    %c0_i32 = arith.constant 0 : i32
    %c0_i32_0 = arith.constant 0 : i32
    %c0_i32_1 = arith.constant 0 : i32
    %c0_i32_2 = arith.constant 0 : i32
    return %c0_i32, %c0_i32_0, %c0_i32_1 : i32, i32, i32
  }
  func.func @transform_4(%arg0: i32) -> (i32, i32, i32) {
    %c0_i32 = arith.constant 0 : i32
    %c0_i32_0 = arith.constant 0 : i32
    %c0_i32_1 = arith.constant 0 : i32
    %c0_i32_2 = arith.constant 0 : i32
    return %c0_i32, %c0_i32_0, %c0_i32_1 : i32, i32, i32
  }
  func.func @transform_5(%arg0: i32) -> (i32, i32, i32) {
    %c0_i32 = arith.constant 0 : i32
    %c0_i32_0 = arith.constant 0 : i32
    %c0_i32_1 = arith.constant 0 : i32
    %c0_i32_2 = arith.constant 0 : i32
    return %c0_i32, %c0_i32_0, %c0_i32_1 : i32, i32, i32
  }
  func.func @transform_6(%arg0: i32) -> (i32, i32, i32) {
    %c0_i32 = arith.constant 0 : i32
    %c0_i32_0 = arith.constant 0 : i32
    %c0_i32_1 = arith.constant 0 : i32
    %c0_i32_2 = arith.constant 0 : i32
    return %c0_i32, %c0_i32_0, %c0_i32_1 : i32, i32, i32
  }
  func.func @transform_7(%arg0: i32) -> (i32, i32, i32) {
    %c0_i32 = arith.constant 0 : i32
    %c0_i32_0 = arith.constant 0 : i32
    %c0_i32_1 = arith.constant 0 : i32
    %c0_i32_2 = arith.constant 0 : i32
    return %c0_i32, %c0_i32_0, %c0_i32_1 : i32, i32, i32
  }
  func.func @transform_8(%arg0: i32) -> (i32, i32, i32) {
    %c0_i32 = arith.constant 0 : i32
    %c0_i32_0 = arith.constant 0 : i32
    %c0_i32_1 = arith.constant 0 : i32
    %c0_i32_2 = arith.constant 0 : i32
    return %c0_i32, %c0_i32_0, %c0_i32_1 : i32, i32, i32
  }
  func.func @transform_9(%arg0: i32) -> (i32, i32, i32) {
    %c0_i32 = arith.constant 0 : i32
    %c0_i32_0 = arith.constant 0 : i32
    %c0_i32_1 = arith.constant 0 : i32
    %c0_i32_2 = arith.constant 0 : i32
    return %c0_i32, %c0_i32_0, %c0_i32_1 : i32, i32, i32
  }
  func.func @transform_10(%arg0: i32) -> (i32, i32, i32) {
    %c0_i32 = arith.constant 0 : i32
    %c0_i32_0 = arith.constant 0 : i32
    %c0_i32_1 = arith.constant 0 : i32
    %c0_i32_2 = arith.constant 0 : i32
    return %c0_i32, %c0_i32_0, %c0_i32_1 : i32, i32, i32
  }
  func.func @transform_11(%arg0: i32) -> (i32, i32, i32) {
    %c0_i32 = arith.constant 0 : i32
    %c0_i32_0 = arith.constant 0 : i32
    %c0_i32_1 = arith.constant 0 : i32
    %c0_i32_2 = arith.constant 0 : i32
    return %c0_i32, %c0_i32_0, %c0_i32_1 : i32, i32, i32
  }
  func.func @transform_12(%arg0: i32) -> (i32, i32, i32) {
    %c0_i32 = arith.constant 0 : i32
    %c0_i32_0 = arith.constant 0 : i32
    %c0_i32_1 = arith.constant 0 : i32
    %c0_i32_2 = arith.constant 0 : i32
    return %c0_i32, %c0_i32_0, %c0_i32_1 : i32, i32, i32
  }
  func.func @transform_13(%arg0: i32) -> (i32, i32, i32) {
    %c0_i32 = arith.constant 0 : i32
    %c0_i32_0 = arith.constant 0 : i32
    %c0_i32_1 = arith.constant 0 : i32
    %c0_i32_2 = arith.constant 0 : i32
    return %c0_i32, %c0_i32_0, %c0_i32_1 : i32, i32, i32
  }
  func.func @transform_14(%arg0: i32) -> (i32, i32, i32) {
    %c0_i32 = arith.constant 0 : i32
    %c0_i32_0 = arith.constant 0 : i32
    %c0_i32_1 = arith.constant 0 : i32
    %c0_i32_2 = arith.constant 0 : i32
    return %c0_i32, %c0_i32_0, %c0_i32_1 : i32, i32, i32
  }
  func.func @transform_15(%arg0: i32) -> (i32, i32, i32) {
    %c0_i32 = arith.constant 0 : i32
    %c0_i32_0 = arith.constant 0 : i32
    %c0_i32_1 = arith.constant 0 : i32
    %c0_i32_2 = arith.constant 0 : i32
    return %c0_i32, %c0_i32_0, %c0_i32_1 : i32, i32, i32
  }
  func.func @transform_16(%arg0: i32) -> (i32, i32, i32) {
    %c0_i32 = arith.constant 0 : i32
    %c0_i32_0 = arith.constant 0 : i32
    %c0_i32_1 = arith.constant 0 : i32
    %c0_i32_2 = arith.constant 0 : i32
    return %c0_i32, %c0_i32_0, %c0_i32_1 : i32, i32, i32
  }
  func.func @transform_17(%arg0: i32) -> (i32, i32, i32) {
    %c0_i32 = arith.constant 0 : i32
    %c0_i32_0 = arith.constant 0 : i32
    %c0_i32_1 = arith.constant 0 : i32
    %c0_i32_2 = arith.constant 0 : i32
    return %c0_i32, %c0_i32_0, %c0_i32_1 : i32, i32, i32
  }
  func.func @transform_18(%arg0: i32) -> (i32, i32, i32) {
    %c0_i32 = arith.constant 0 : i32
    %c0_i32_0 = arith.constant 0 : i32
    %c0_i32_1 = arith.constant 0 : i32
    %c0_i32_2 = arith.constant 0 : i32
    return %c0_i32, %c0_i32_0, %c0_i32_1 : i32, i32, i32
  }
  func.func @transform_19(%arg0: i32) -> (i32, i32, i32) {
    %c0_i32 = arith.constant 0 : i32
    %c0_i32_0 = arith.constant 0 : i32
    %c0_i32_1 = arith.constant 0 : i32
    %c0_i32_2 = arith.constant 0 : i32
    return %c0_i32, %c0_i32_0, %c0_i32_1 : i32, i32, i32
  }
  func.func @transform_20(%arg0: i32) -> (i32, i32, i32) {
    %c0_i32 = arith.constant 0 : i32
    %c0_i32_0 = arith.constant 0 : i32
    %c0_i32_1 = arith.constant 0 : i32
    %c0_i32_2 = arith.constant 0 : i32
    return %c0_i32, %c0_i32_0, %c0_i32_1 : i32, i32, i32
  }
  func.func @transform_21(%arg0: i32) -> (i32, i32, i32) {
    %c0_i32 = arith.constant 0 : i32
    %c0_i32_0 = arith.constant 0 : i32
    %c0_i32_1 = arith.constant 0 : i32
    %c0_i32_2 = arith.constant 0 : i32
    return %c0_i32, %c0_i32_0, %c0_i32_1 : i32, i32, i32
  }
  func.func @transform_22(%arg0: i32) -> (i32, i32, i32) {
    %c0_i32 = arith.constant 0 : i32
    %c0_i32_0 = arith.constant 0 : i32
    %c0_i32_1 = arith.constant 0 : i32
    %c0_i32_2 = arith.constant 0 : i32
    return %c0_i32, %c0_i32_0, %c0_i32_1 : i32, i32, i32
  }
  func.func @transform_23(%arg0: i32) -> (i32, i32, i32) {
    %c0_i32 = arith.constant 0 : i32
    %c0_i32_0 = arith.constant 0 : i32
    %c0_i32_1 = arith.constant 0 : i32
    %c0_i32_2 = arith.constant 0 : i32
    return %c0_i32, %c0_i32_0, %c0_i32_1 : i32, i32, i32
  }
  func.func @transform_24(%arg0: i32) -> (i32, i32, i32) {
    %c0_i32 = arith.constant 0 : i32
    %c0_i32_0 = arith.constant 0 : i32
    %c0_i32_1 = arith.constant 0 : i32
    %c0_i32_2 = arith.constant 0 : i32
    return %c0_i32, %c0_i32_0, %c0_i32_1 : i32, i32, i32
  }
  func.func @transform_25(%arg0: i32) -> (i32, i32, i32) {
    %c0_i32 = arith.constant 0 : i32
    %c0_i32_0 = arith.constant 0 : i32
    %c0_i32_1 = arith.constant 0 : i32
    %c0_i32_2 = arith.constant 0 : i32
    return %c0_i32, %c0_i32_0, %c0_i32_1 : i32, i32, i32
  }
  func.func @transform_26(%arg0: i32) -> (i32, i32, i32) {
    %c0_i32 = arith.constant 0 : i32
    %c0_i32_0 = arith.constant 0 : i32
    %c0_i32_1 = arith.constant 0 : i32
    %c0_i32_2 = arith.constant 0 : i32
    return %c0_i32, %c0_i32_0, %c0_i32_1 : i32, i32, i32
  }
  func.func @transform_27(%arg0: i32) -> (i32, i32) {
    %c0_i32 = arith.constant 0 : i32
    %c0_i32_0 = arith.constant 0 : i32
    %c0_i32_1 = arith.constant 0 : i32
    return %c0_i32, %c0_i32_0 : i32, i32
  }
  func.func @transform_28(%arg0: i32) -> (i32, i32) {
    %c0_i32 = arith.constant 0 : i32
    %c0_i32_0 = arith.constant 0 : i32
    return %arg0, %c0_i32 : i32, i32
  }
}

</mosaic_0001>

<llo_original>
// kernel: tpu_custom_call.1
$region0: #{tpu_custom_call.1}
  #allocation0 [shape = 'u32[]', space=smem, size = 0x4, offset = 0x4, fixed_abs, tag = 'smem constant byte address 0x4 - core index']
  #allocation1 [shape = 'u32[72,128]{1,0:T(1,128)}', space=vmem, size = 0x9000, scoped, tag = 'internal scratch']
  #allocation2 [shape = 'f32[32,32]{1,0:T(8,128)}', space=vmem, size = 0x4000, scoped, tag = 'scratch operand']
  %s0 = inlined_call_operand.hbm [shape: f32[16,32], index: 0, kind: input, shape index: {}]
  %s1 = inlined_call_operand.vmem [shape: f32[16,1], index: 1, kind: input, shape index: {}]
  %s2 = inlined_call_operand.hbm [shape: f32[16,16], index: 2, kind: input, shape index: {}]
  %s3 = inlined_call_operand.vmem [shape: bf16[2,32,32], index: 3, kind: input, shape index: {}]
  %s4 = inlined_call_operand.vmem [shape: f32[2,1,32], index: 4, kind: input, shape index: {}]
  %s5 = inlined_call_operand.vmem [shape: f32[2,1,32], index: 5, kind: input, shape index: {}]
  %s6 = inlined_call_operand.hbm [shape: f32[2,1,32], index: 6, kind: input, shape index: {}]
  %s7 = inlined_call_operand.vmem [shape: bf16[2,32,32], index: 7, kind: input, shape index: {}]
  %s8 = inlined_call_operand.vmem [shape: bf16[2,32,32], index: 8, kind: input, shape index: {}]
  %s9 = inlined_call_operand.hbm [shape: f32[2,1,32], index: 9, kind: input, shape index: {}]
  %s10 = inlined_call_operand.hbm [shape: f32[2,1,32], index: 10, kind: input, shape index: {}]
  %s11 = inlined_call_operand.hbm [shape: f32[2,1,32], index: 11, kind: input, shape index: {}]
  %s12 = inlined_call_operand.vmem [shape: bf16[2,32,32], index: 12, kind: input, shape index: {}]
  %s13 = inlined_call_operand.vmem [shape: bf16[2,32,32], index: 13, kind: input, shape index: {}]
  %s14 = inlined_call_operand.hbm [shape: f32[2,1,32], index: 14, kind: input, shape index: {}]
  %s15 = inlined_call_operand.hbm [shape: f32[2,1,32], index: 15, kind: input, shape index: {}]
  %s16 = inlined_call_operand.hbm [shape: f32[2,1,32], index: 16, kind: input, shape index: {}]
  %s17 = inlined_call_operand.hbm [shape: bf16[2,32,128], index: 17, kind: input, shape index: {}]
  %s18 = inlined_call_operand.hbm [shape: bf16[2,32,128], index: 18, kind: input, shape index: {}]
  %s19 = inlined_call_operand.hbm [shape: f32[2,1,128], index: 19, kind: input, shape index: {}]
  %s20 = inlined_call_operand.vmem [shape: bf16[2,128,32], index: 20, kind: input, shape index: {}]
  %s21 = inlined_call_operand.hbm [shape: f32[2,1,32], index: 21, kind: input, shape index: {}]
  %s22 = inlined_call_operand.hbm [shape: bf16[2,32,32], index: 22, kind: input, shape index: {}]
  %s23 = inlined_call_operand.hbm [shape: bf16[2,32,32], index: 23, kind: input, shape index: {}]
  %s24 = inlined_call_operand.vmem [shape: f32[2,1,32], index: 24, kind: input, shape index: {}]
  %s25 = inlined_call_operand.vmem [shape: f32[2,1,32], index: 25, kind: input, shape index: {}]
  %s26 = inlined_call_operand.hbm [shape: bf16[2,32,32], index: 26, kind: input, shape index: {}]
  %s27 = inlined_call_operand.vmem [shape: f32[1,32], index: 27, kind: input, shape index: {}]
  %s28 = inlined_call_operand.hbm [shape: f32[16,32], index: 28, kind: output, shape index: {}]
  %s29 = sld [smem:[#allocation0]]
  $region186: #{tpu_custom_call.1} parent=0
    _
  %s31 = ssub.s32 1, %s29
  %s32 = scalar_select 0, %s31, %s29
  $region1: #{tpu_custom_call.1} parent=0
    #allocation3 [shape = 'u8[8192]{0}', space=vmem, size = 0x2000, scoped, tag = 'input window, operand 0, single buffered']
    #allocation4 [shape = 's32[1]{0}', space=sflag, size = 0x4, scoped, tag = 'scoped memory for tpu_custom_call.1']
    #allocation5 [shape = 's32[1]{0}', space=sflag, size = 0x4, scoped, tag = 'scoped memory for tpu_custom_call.1']
    #allocation6 [shape = 'u8[8192]{0}', space=vmem, size = 0x2000, scoped, tag = 'input window, operand 2, single buffered']
    #allocation7 [shape = 's32[1]{0}', space=sflag, size = 0x4, scoped, tag = 'scoped memory for tpu_custom_call.1']
    #allocation8 [shape = 'u8[1024]{0}', space=vmem, size = 0x400, scoped, tag = 'input window, operand 6, single buffered']
    #allocation9 [shape = 'u8[1024]{0}', space=vmem, size = 0x400, scoped, tag = 'input window, operand 9, single buffered']
    #allocation10 [shape = 's32[1]{0}', space=sflag, size = 0x4, scoped, tag = 'scoped memory for tpu_custom_call.1']
    #allocation11 [shape = 'u8[1024]{0}', space=vmem, size = 0x400, scoped, tag = 'input window, operand 10, single buffered']
    #allocation12 [shape = 'u8[1024]{0}', space=vmem, size = 0x400, scoped, tag = 'input window, operand 11, single buffered']
    #allocation13 [shape = 's32[1]{0}', space=sflag, size = 0x4, scoped, tag = 'scoped memory for tpu_custom_call.1']
    #allocation14 [shape = 'u8[1024]{0}', space=vmem, size = 0x400, scoped, tag = 'input window, operand 14, single buffered']
    #allocation15 [shape = 'u8[1024]{0}', space=vmem, size = 0x400, scoped, tag = 'input window, operand 15, single buffered']
    #allocation16 [shape = 's32[1]{0}', space=sflag, size = 0x4, scoped, tag = 'scoped memory for tpu_custom_call.1']
    #allocation17 [shape = 'u8[1024]{0}', space=vmem, size = 0x400, scoped, tag = 'input window, operand 16, single buffered']
    #allocation18 [shape = 'u8[16384]{0}', space=vmem, size = 0x4000, scoped, tag = 'input window, operand 17, single buffered']
    #allocation19 [shape = 's32[1]{0}', space=sflag, size = 0x4, scoped, tag = 'scoped memory for tpu_custom_call.1']
    #allocation20 [shape = 'u8[16384]{0}', space=vmem, size = 0x4000, scoped, tag = 'input window, operand 18, single buffered']
    #allocation21 [shape = 'u8[1024]{0}', space=vmem, size = 0x400, scoped, tag = 'input window, operand 19, single buffered']
    #allocation22 [shape = 's32[1]{0}', space=sflag, size = 0x4, scoped, tag = 'scoped memory for tpu_custom_call.1']
    #allocation23 [shape = 'u8[1024]{0}', space=vmem, size = 0x400, scoped, tag = 'input window, operand 21, single buffered']
    #allocation24 [shape = 'u8[16384]{0}', space=vmem, size = 0x4000, scoped, tag = 'input window, operand 22, single buffered']
    #allocation25 [shape = 's32[1]{0}', space=sflag, size = 0x4, scoped, tag = 'scoped memory for tpu_custom_call.1']
    #allocation26 [shape = 'u8[16384]{0}', space=vmem, size = 0x4000, scoped, tag = 'input window, operand 23, single buffered']
    #allocation27 [shape = 'u8[16384]{0}', space=vmem, size = 0x4000, scoped, tag = 'input window, operand 26, single buffered']
    #allocation28 [shape = 's32[1]{0}', space=sflag, size = 0x4, scoped, tag = 'scoped memory for tpu_custom_call.1']
    #allocation29 [shape = 'u8[8192]{0}', space=vmem, size = 0x2000, scoped, tag = 'output window, operand 0, single buffered']
    %33 = vsyncpa [#allocation4], 0
    %34 = vsyncpa [#allocation7], 0
    %35 = vsyncpa [#allocation10], 0
    %36 = vsyncpa [#allocation13], 0
    %37 = vsyncpa [#allocation16], 0
    %38 = vsyncpa [#allocation19], 0
    %39 = vsyncpa [#allocation22], 0
    %40 = vsyncpa [#allocation25], 0
    %41 = vsyncpa [#allocation28], 0
    %42 = vsyncpa [#allocation5], 0
    // Predicated region
    $region2: #{tpu_custom_call.1} parent=1 // pred_check
      _
    $region3: #{tpu_custom_call.1} parent=1 // pred_check_branch
      %44 = sbr.rel (0) target = $region5
    $region4: #{tpu_custom_call.1} parent=1 // pred_region
      %46 = vsyncadd [#allocation4], 0
      %s47 = sshll.u32 %s0, 4
      %s48 = int_to_ptr.hbm [resolvable:$true] %s47
      %s49 = sshll.u32 [#allocation3], 4
      %s50 = int_to_ptr.vmem [resolvable:$true] %s49
      %55 = dma.hbm_to_vmem [thread:$0]  %s48, 256, %s50, [#allocation4], 128, 128, 8
    $region5: #{tpu_custom_call.1} parent=1 // pred_fallthru
      _
    // Predicated region
    $region6: #{tpu_custom_call.1} parent=1 // pred_check
      _
    $region7: #{tpu_custom_call.1} parent=1 // pred_check_branch
      %57 = sbr.rel (0) target = $region9
    $region8: #{tpu_custom_call.1} parent=1 // pred_region
      _
    $region9: #{tpu_custom_call.1} parent=1 // pred_fallthru
      _
    // Predicated region
    $region10: #{tpu_custom_call.1} parent=1 // pred_check
      _
    $region11: #{tpu_custom_call.1} parent=1 // pred_check_branch
      %59 = sbr.rel (0) target = $region13
    $region12: #{tpu_custom_call.1} parent=1 // pred_region
      %61 = vsyncadd [#allocation7], 0
      %s62 = sshll.u32 %s2, 4
      %s63 = int_to_ptr.hbm [resolvable:$true] %s62
      %s64 = sshll.u32 [#allocation6], 4
      %s65 = int_to_ptr.vmem [resolvable:$true] %s64
      %70 = dma.hbm_to_vmem [thread:$0]  %s63, 256, %s65, [#allocation7], 128, 128, 8
    $region13: #{tpu_custom_call.1} parent=1 // pred_fallthru
      _
    // Predicated region
    $region14: #{tpu_custom_call.1} parent=1 // pred_check
      _
    $region15: #{tpu_custom_call.1} parent=1 // pred_check_branch
      %72 = sbr.rel (0) target = $region17
    $region16: #{tpu_custom_call.1} parent=1 // pred_region
      _
    $region17: #{tpu_custom_call.1} parent=1 // pred_fallthru
      _
    // Predicated region
    $region18: #{tpu_custom_call.1} parent=1 // pred_check
      _
    $region19: #{tpu_custom_call.1} parent=1 // pred_check_branch
      %74 = sbr.rel (0) target = $region21
    $region20: #{tpu_custom_call.1} parent=1 // pred_region
      _
    $region21: #{tpu_custom_call.1} parent=1 // pred_fallthru
      _
    // Predicated region
    $region22: #{tpu_custom_call.1} parent=1 // pred_check
      _
    $region23: #{tpu_custom_call.1} parent=1 // pred_check_branch
      %76 = sbr.rel (0) target = $region25
    $region24: #{tpu_custom_call.1} parent=1 // pred_region
      _
    $region25: #{tpu_custom_call.1} parent=1 // pred_fallthru
      _
    // Predicated region
    $region26: #{tpu_custom_call.1} parent=1 // pred_check
      _
    $region27: #{tpu_custom_call.1} parent=1 // pred_check_branch
      %78 = sbr.rel (0) target = $region29
    $region28: #{tpu_custom_call.1} parent=1 // pred_region
      %80 = vsyncadd [#allocation7], 0
      %s81 = sshll.u32 %s6, 4
      %s82 = int_to_ptr.hbm [resolvable:$true] %s81
      %s83 = sshll.u32 [#allocation8], 4
      %s84 = int_to_ptr.vmem [resolvable:$true] %s83
      %89 = dma.hbm_to_vmem [thread:$0]  %s82, 32, %s84, [#allocation7], 16, 16, 1
    $region29: #{tpu_custom_call.1} parent=1 // pred_fallthru
      _
    // Predicated region
    $region30: #{tpu_custom_call.1} parent=1 // pred_check
      _
    $region31: #{tpu_custom_call.1} parent=1 // pred_check_branch
      %91 = sbr.rel (0) target = $region33
    $region32: #{tpu_custom_call.1} parent=1 // pred_region
      _
    $region33: #{tpu_custom_call.1} parent=1 // pred_fallthru
      _
    // Predicated region
    $region34: #{tpu_custom_call.1} parent=1 // pred_check
      _
    $region35: #{tpu_custom_call.1} parent=1 // pred_check_branch
      %93 = sbr.rel (0) target = $region37
    $region36: #{tpu_custom_call.1} parent=1 // pred_region
      _
    $region37: #{tpu_custom_call.1} parent=1 // pred_fallthru
      _
    // Predicated region
    $region38: #{tpu_custom_call.1} parent=1 // pred_check
      _
    $region39: #{tpu_custom_call.1} parent=1 // pred_check_branch
      %95 = sbr.rel (0) target = $region41
    $region40: #{tpu_custom_call.1} parent=1 // pred_region
      %97 = vsyncadd [#allocation10], 0
      %s98 = sshll.u32 %s9, 4
      %s99 = int_to_ptr.hbm [resolvable:$true] %s98
      %s100 = sshll.u32 [#allocation9], 4
      %s101 = int_to_ptr.vmem [resolvable:$true] %s100
      %106 = dma.hbm_to_vmem [thread:$0]  %s99, 32, %s101, [#allocation10], 16, 16, 1
    $region41: #{tpu_custom_call.1} parent=1 // pred_fallthru
      _
    // Predicated region
    $region42: #{tpu_custom_call.1} parent=1 // pred_check
      _
    $region43: #{tpu_custom_call.1} parent=1 // pred_check_branch
      %108 = sbr.rel (0) target = $region45
    $region44: #{tpu_custom_call.1} parent=1 // pred_region
      %110 = vsyncadd [#allocation10], 0
      %s111 = sshll.u32 %s10, 4
      %s112 = int_to_ptr.hbm [resolvable:$true] %s111
      %s113 = sshll.u32 [#allocation11], 4
      %s114 = int_to_ptr.vmem [resolvable:$true] %s113
      %119 = dma.hbm_to_vmem [thread:$0]  %s112, 32, %s114, [#allocation10], 16, 16, 1
    $region45: #{tpu_custom_call.1} parent=1 // pred_fallthru
      _
    // Predicated region
    $region46: #{tpu_custom_call.1} parent=1 // pred_check
      _
    $region47: #{tpu_custom_call.1} parent=1 // pred_check_branch
      %121 = sbr.rel (0) target = $region49
    $region48: #{tpu_custom_call.1} parent=1 // pred_region
      %123 = vsyncadd [#allocation13], 0
      %s124 = sshll.u32 %s11, 4
      %s125 = int_to_ptr.hbm [resolvable:$true] %s124
      %s126 = sshll.u32 [#allocation12], 4
      %s127 = int_to_ptr.vmem [resolvable:$true] %s126
      %132 = dma.hbm_to_vmem [thread:$0]  %s125, 32, %s127, [#allocation13], 16, 16, 1
    $region49: #{tpu_custom_call.1} parent=1 // pred_fallthru
      _
    // Predicated region
    $region50: #{tpu_custom_call.1} parent=1 // pred_check
      _
    $region51: #{tpu_custom_call.1} parent=1 // pred_check_branch
      %134 = sbr.rel (0) target = $region53
    $region52: #{tpu_custom_call.1} parent=1 // pred_region
      _
    $region53: #{tpu_custom_call.1} parent=1 // pred_fallthru
      _
    // Predicated region
    $region54: #{tpu_custom_call.1} parent=1 // pred_check
      _
    $region55: #{tpu_custom_call.1} parent=1 // pred_check_branch
      %136 = sbr.rel (0) target = $region57
    $region56: #{tpu_custom_call.1} parent=1 // pred_region
      _
    $region57: #{tpu_custom_call.1} parent=1 // pred_fallthru
      _
    // Predicated region
    $region58: #{tpu_custom_call.1} parent=1 // pred_check
      _
    $region59: #{tpu_custom_call.1} parent=1 // pred_check_branch
      %138 = sbr.rel (0) target = $region61
    $region60: #{tpu_custom_call.1} parent=1 // pred_region
      %140 = vsyncadd [#allocation13], 0
      %s141 = sshll.u32 %s14, 4
      %s142 = int_to_ptr.hbm [resolvable:$true] %s141
      %s143 = sshll.u32 [#allocation14], 4
      %s144 = int_to_ptr.vmem [resolvable:$true] %s143
      %149 = dma.hbm_to_vmem [thread:$0]  %s142, 32, %s144, [#allocation13], 16, 16, 1
    $region61: #{tpu_custom_call.1} parent=1 // pred_fallthru
      _
    // Predicated region
    $region62: #{tpu_custom_call.1} parent=1 // pred_check
      _
    $region63: #{tpu_custom_call.1} parent=1 // pred_check_branch
      %151 = sbr.rel (0) target = $region65
    $region64: #{tpu_custom_call.1} parent=1 // pred_region
      %153 = vsyncadd [#allocation16], 0
      %s154 = sshll.u32 %s15, 4
      %s155 = int_to_ptr.hbm [resolvable:$true] %s154
      %s156 = sshll.u32 [#allocation15], 4
      %s157 = int_to_ptr.vmem [resolvable:$true] %s156
      %162 = dma.hbm_to_vmem [thread:$0]  %s155, 32, %s157, [#allocation16], 16, 16, 1
    $region65: #{tpu_custom_call.1} parent=1 // pred_fallthru
      _
    // Predicated region
    $region66: #{tpu_custom_call.1} parent=1 // pred_check
      _
    $region67: #{tpu_custom_call.1} parent=1 // pred_check_branch
      %164 = sbr.rel (0) target = $region69
    $region68: #{tpu_custom_call.1} parent=1 // pred_region
      %166 = vsyncadd [#allocation16], 0
      %s167 = sshll.u32 %s16, 4
      %s168 = int_to_ptr.hbm [resolvable:$true] %s167
      %s169 = sshll.u32 [#allocation17], 4
      %s170 = int_to_ptr.vmem [resolvable:$true] %s169
      %175 = dma.hbm_to_vmem [thread:$0]  %s168, 32, %s170, [#allocation16], 16, 16, 1
    $region69: #{tpu_custom_call.1} parent=1 // pred_fallthru
      _
    // Predicated region
    $region70: #{tpu_custom_call.1} parent=1 // pred_check
      _
    $region71: #{tpu_custom_call.1} parent=1 // pred_check_branch
      %177 = sbr.rel (0) target = $region73
    $region72: #{tpu_custom_call.1} parent=1 // pred_region
      %179 = vsyncadd [#allocation19], 0
      %s180 = sshll.u32 %s17, 4
      %s181 = int_to_ptr.hbm [resolvable:$true] %s180
      %s182 = sshll.u32 [#allocation18], 4
      %s183 = int_to_ptr.vmem [resolvable:$true] %s182
      %188 = dma.hbm_to_vmem [thread:$0]  %s181, 512, %s183, [#allocation19], 64, 64, 4
    $region73: #{tpu_custom_call.1} parent=1 // pred_fallthru
      _
    // Predicated region
    $region74: #{tpu_custom_call.1} parent=1 // pred_check
      _
    $region75: #{tpu_custom_call.1} parent=1 // pred_check_branch
      %190 = sbr.rel (0) target = $region77
    $region76: #{tpu_custom_call.1} parent=1 // pred_region
      %192 = vsyncadd [#allocation19], 0
      %s193 = sshll.u32 %s18, 4
      %s194 = int_to_ptr.hbm [resolvable:$true] %s193
      %s195 = sshll.u32 [#allocation20], 4
      %s196 = int_to_ptr.vmem [resolvable:$true] %s195
      %201 = dma.hbm_to_vmem [thread:$0]  %s194, 512, %s196, [#allocation19], 64, 64, 4
    $region77: #{tpu_custom_call.1} parent=1 // pred_fallthru
      _
    // Predicated region
    $region78: #{tpu_custom_call.1} parent=1 // pred_check
      _
    $region79: #{tpu_custom_call.1} parent=1 // pred_check_branch
      %203 = sbr.rel (0) target = $region81
    $region80: #{tpu_custom_call.1} parent=1 // pred_region
      %205 = vsyncadd [#allocation22], 0
      %s206 = sshll.u32 %s19, 4
      %s207 = int_to_ptr.hbm [resolvable:$true] %s206
      %s208 = sshll.u32 [#allocation21], 4
      %s209 = int_to_ptr.vmem [resolvable:$true] %s208
      %214 = dma.hbm_to_vmem [thread:$0]  %s207, 32, %s209, [#allocation22], 16, 16, 1
    $region81: #{tpu_custom_call.1} parent=1 // pred_fallthru
      _
    // Predicated region
    $region82: #{tpu_custom_call.1} parent=1 // pred_check
      _
    $region83: #{tpu_custom_call.1} parent=1 // pred_check_branch
      %216 = sbr.rel (0) target = $region85
    $region84: #{tpu_custom_call.1} parent=1 // pred_region
      _
    $region85: #{tpu_custom_call.1} parent=1 // pred_fallthru
      _
    // Predicated region
    $region86: #{tpu_custom_call.1} parent=1 // pred_check
      _
    $region87: #{tpu_custom_call.1} parent=1 // pred_check_branch
      %218 = sbr.rel (0) target = $region89
    $region88: #{tpu_custom_call.1} parent=1 // pred_region
      %220 = vsyncadd [#allocation22], 0
      %s221 = sshll.u32 %s21, 4
      %s222 = int_to_ptr.hbm [resolvable:$true] %s221
      %s223 = sshll.u32 [#allocation23], 4
      %s224 = int_to_ptr.vmem [resolvable:$true] %s223
      %229 = dma.hbm_to_vmem [thread:$0]  %s222, 32, %s224, [#allocation22], 16, 16, 1
    $region89: #{tpu_custom_call.1} parent=1 // pred_fallthru
      _
    // Predicated region
    $region90: #{tpu_custom_call.1} parent=1 // pred_check
      _
    $region91: #{tpu_custom_call.1} parent=1 // pred_check_branch
      %231 = sbr.rel (0) target = $region93
    $region92: #{tpu_custom_call.1} parent=1 // pred_region
      %233 = vsyncadd [#allocation25], 0
      %s234 = sshll.u32 %s22, 4
      %s235 = int_to_ptr.hbm [resolvable:$true] %s234
      %s236 = sshll.u32 [#allocation24], 4
      %s237 = int_to_ptr.vmem [resolvable:$true] %s236
      %242 = dma.hbm_to_vmem [thread:$0]  %s235, 512, %s237, [#allocation25], 64, 64, 4
    $region93: #{tpu_custom_call.1} parent=1 // pred_fallthru
      _
    // Predicated region
    $region94: #{tpu_custom_call.1} parent=1 // pred_check
      _
    $region95: #{tpu_custom_call.1} parent=1 // pred_check_branch
      %244 = sbr.rel (0) target = $region97
    $region96: #{tpu_custom_call.1} parent=1 // pred_region
      %246 = vsyncadd [#allocation25], 0
      %s247 = sshll.u32 %s23, 4
      %s248 = int_to_ptr.hbm [resolvable:$true] %s247
      %s249 = sshll.u32 [#allocation26], 4
      %s250 = int_to_ptr.vmem [resolvable:$true] %s249
      %255 = dma.hbm_to_vmem [thread:$0]  %s248, 512, %s250, [#allocation25], 64, 64, 4
    $region97: #{tpu_custom_call.1} parent=1 // pred_fallthru
      _
    // Predicated region
    $region98: #{tpu_custom_call.1} parent=1 // pred_check
      _
    $region99: #{tpu_custom_call.1} parent=1 // pred_check_branch
      %257 = sbr.rel (0) target = $region101
    $region100: #{tpu_custom_call.1} parent=1 // pred_region
      _
    $region101: #{tpu_custom_call.1} parent=1 // pred_fallthru
      _
    // Predicated region
    $region102: #{tpu_custom_call.1} parent=1 // pred_check
      _
    $region103: #{tpu_custom_call.1} parent=1 // pred_check_branch
      %259 = sbr.rel (0) target = $region105
    $region104: #{tpu_custom_call.1} parent=1 // pred_region
      _
    $region105: #{tpu_custom_call.1} parent=1 // pred_fallthru
      _
    // Predicated region
    $region106: #{tpu_custom_call.1} parent=1 // pred_check
      _
    $region107: #{tpu_custom_call.1} parent=1 // pred_check_branch
      %261 = sbr.rel (0) target = $region109
    $region108: #{tpu_custom_call.1} parent=1 // pred_region
      %263 = vsyncadd [#allocation28], 0
      %s264 = sshll.u32 %s26, 4
      %s265 = int_to_ptr.hbm [resolvable:$true] %s264
      %s266 = sshll.u32 [#allocation27], 4
      %s267 = int_to_ptr.vmem [resolvable:$true] %s266
      %272 = dma.hbm_to_vmem [thread:$0]  %s265, 512, %s267, [#allocation28], 64, 64, 4
    $region109: #{tpu_custom_call.1} parent=1 // pred_fallthru
      _
    // Predicated region
    $region110: #{tpu_custom_call.1} parent=1 // pred_check
      _
    $region111: #{tpu_custom_call.1} parent=1 // pred_check_branch
      %274 = sbr.rel (0) target = $region113
    $region112: #{tpu_custom_call.1} parent=1 // pred_region
      _
    $region113: #{tpu_custom_call.1} parent=1 // pred_fallthru
      _
    // Predicated region
    $region114: #{tpu_custom_call.1} parent=1 // pred_check
      _
    $region115: #{tpu_custom_call.1} parent=1 // pred_check_branch
      %276 = sbr.rel (0) target = $region117
    $region116: #{tpu_custom_call.1} parent=1 // pred_region
      %278 = dma.done [#allocation4], 256
    $region117: #{tpu_custom_call.1} parent=1 // pred_fallthru
      _
    // Predicated region
    $region118: #{tpu_custom_call.1} parent=1 // pred_check
      _
    $region119: #{tpu_custom_call.1} parent=1 // pred_check_branch
      %280 = sbr.rel (0) target = $region121
    $region120: #{tpu_custom_call.1} parent=1 // pred_region
      %282 = dma.done [#allocation7], 256
    $region121: #{tpu_custom_call.1} parent=1 // pred_fallthru
      _
    // Predicated region
    $region122: #{tpu_custom_call.1} parent=1 // pred_check
      _
    $region123: #{tpu_custom_call.1} parent=1 // pred_check_branch
      %284 = sbr.rel (0) target = $region125
    $region124: #{tpu_custom_call.1} parent=1 // pred_region
      %286 = dma.done [#allocation7], 32
    $region125: #{tpu_custom_call.1} parent=1 // pred_fallthru
      _
    // Predicated region
    $region126: #{tpu_custom_call.1} parent=1 // pred_check
      _
    $region127: #{tpu_custom_call.1} parent=1 // pred_check_branch
      %288 = sbr.rel (0) target = $region129
    $region128: #{tpu_custom_call.1} parent=1 // pred_region
      %290 = dma.done [#allocation10], 32
    $region129: #{tpu_custom_call.1} parent=1 // pred_fallthru
      _
    // Predicated region
    $region130: #{tpu_custom_call.1} parent=1 // pred_check
      _
    $region131: #{tpu_custom_call.1} parent=1 // pred_check_branch
      %292 = sbr.rel (0) target = $region133
    $region132: #{tpu_custom_call.1} parent=1 // pred_region
      %294 = dma.done [#allocation10], 32
    $region133: #{tpu_custom_call.1} parent=1 // pred_fallthru
      _
    // Predicated region
    $region134: #{tpu_custom_call.1} parent=1 // pred_check
      _
    $region135: #{tpu_custom_call.1} parent=1 // pred_check_branch
      %296 = sbr.rel (0) target = $region137
    $region136: #{tpu_custom_call.1} parent=1 // pred_region
      %298 = dma.done [#allocation13], 32
    $region137: #{tpu_custom_call.1} parent=1 // pred_fallthru
      _
    // Predicated region
    $region138: #{tpu_custom_call.1} parent=1 // pred_check
      _
    $region139: #{tpu_custom_call.1} parent=1 // pred_check_branch
      %300 = sbr.rel (0) target = $region141
    $region140: #{tpu_custom_call.1} parent=1 // pred_region
      %302 = dma.done [#allocation13], 32
    $region141: #{tpu_custom_call.1} parent=1 // pred_fallthru
      _
    // Predicated region
    $region142: #{tpu_custom_call.1} parent=1 // pred_check
      _
    $region143: #{tpu_custom_call.1} parent=1 // pred_check_branch
      %304 = sbr.rel (0) target = $region145
    $region144: #{tpu_custom_call.1} parent=1 // pred_region
      %306 = dma.done [#allocation16], 32
    $region145: #{tpu_custom_call.1} parent=1 // pred_fallthru
      _
    // Predicated region
    $region146: #{tpu_custom_call.1} parent=1 // pred_check
      _
    $region147: #{tpu_custom_call.1} parent=1 // pred_check_branch
      %308 = sbr.rel (0) target = $region149
    $region148: #{tpu_custom_call.1} parent=1 // pred_region
      %310 = dma.done [#allocation16], 32
    $region149: #{tpu_custom_call.1} parent=1 // pred_fallthru
      _
    // Predicated region
    $region150: #{tpu_custom_call.1} parent=1 // pred_check
      _
    $region151: #{tpu_custom_call.1} parent=1 // pred_check_branch
      %312 = sbr.rel (0) target = $region153
    $region152: #{tpu_custom_call.1} parent=1 // pred_region
      %314 = dma.done [#allocation19], 512
    $region153: #{tpu_custom_call.1} parent=1 // pred_fallthru
      _
    // Predicated region
    $region154: #{tpu_custom_call.1} parent=1 // pred_check
      _
    $region155: #{tpu_custom_call.1} parent=1 // pred_check_branch
      %316 = sbr.rel (0) target = $region157
    $region156: #{tpu_custom_call.1} parent=1 // pred_region
      %318 = dma.done [#allocation19], 512
    $region157: #{tpu_custom_call.1} parent=1 // pred_fallthru
      _
    // Predicated region
    $region158: #{tpu_custom_call.1} parent=1 // pred_check
      _
    $region159: #{tpu_custom_call.1} parent=1 // pred_check_branch
      %320 = sbr.rel (0) target = $region161
    $region160: #{tpu_custom_call.1} parent=1 // pred_region
      %322 = dma.done [#allocation22], 32
    $region161: #{tpu_custom_call.1} parent=1 // pred_fallthru
      _
    // Predicated region
    $region162: #{tpu_custom_call.1} parent=1 // pred_check
      _
    $region163: #{tpu_custom_call.1} parent=1 // pred_check_branch
      %324 = sbr.rel (0) target = $region165
    $region164: #{tpu_custom_call.1} parent=1 // pred_region
      %326 = dma.done [#allocation22], 32
    $region165: #{tpu_custom_call.1} parent=1 // pred_fallthru
      _
    // Predicated region
    $region166: #{tpu_custom_call.1} parent=1 // pred_check
      _
    $region167: #{tpu_custom_call.1} parent=1 // pred_check_branch
      %328 = sbr.rel (0) target = $region169
    $region168: #{tpu_custom_call.1} parent=1 // pred_region
      %330 = dma.done [#allocation25], 512
    $region169: #{tpu_custom_call.1} parent=1 // pred_fallthru
      _
    // Predicated region
    $region170: #{tpu_custom_call.1} parent=1 // pred_check
      _
    $region171: #{tpu_custom_call.1} parent=1 // pred_check_branch
      %332 = sbr.rel (0) target = $region173
    $region172: #{tpu_custom_call.1} parent=1 // pred_region
      %334 = dma.done [#allocation25], 512
    $region173: #{tpu_custom_call.1} parent=1 // pred_fallthru
      _
    // Predicated region
    $region174: #{tpu_custom_call.1} parent=1 // pred_check
      _
    $region175: #{tpu_custom_call.1} parent=1 // pred_check_branch
      %336 = sbr.rel (0) target = $region177
    $region176: #{tpu_custom_call.1} parent=1 // pred_region
      %338 = dma.done [#allocation28], 512
    $region177: #{tpu_custom_call.1} parent=1 // pred_fallthru
      _
    %v340 = vld [vmem:[#allocation3] sm:$0xff]
    %v341 = vld [vmem:[#allocation3 + $0x8] sm:$0xff]
    %v342 = vld [vmem:[%s1] sm:$0xff]
    %v343 = vld [vmem:[%s1 + $0x8] sm:$0xff]
    %v344 = vld [vmem:[#allocation6] sm:$0xff]
    %v345 = vld [vmem:[#allocation6 + $0x8] sm:$0xff]
    %v346 = vlaneseq
    %v347 = vshrl.u32 %v346, 7
    %v348 = vadd.s32 %v347, 8
    %vm349 = vcmp.lt.s32.totalorder %v347, 0
    %v350 = vsub.s32 0, %v347
    %v351 = vsel %vm349, %v350, %v347
    %v352 = vshrl.u32 %v351, 3
    %v353 = vand.u32 %v351, 7
    %v354 = vsub.s32 0, %v353
    %v355 = vsel %vm349, %v354, %v353
    %vm356 = vcmp.lt.s32.totalorder %v348, 0
    %v357 = vsub.s32 0, %v348
    %v358 = vsel %vm356, %v357, %v348
    %v359 = vshrl.u32 %v358, 3
    %v360 = vand.u32 %v358, 7
    %v361 = vsub.s32 0, %v360
    %v362 = vsel %vm356, %v361, %v360
    %vm363 = vcmp.ne.s32.totalorder %v355, 0
    %vm364 = vcmp.ne.s32.totalorder %v362, 0
    %vm365 = vcmp.lt.s32.totalorder %v355, 0
    %vm366 = vcmp.lt.s32.totalorder %v362, 0
    %vm367 = vmand %vm365, %vm363
    %vm368 = vmand %vm366, %vm364
    %v369 = vadd.s32 %v355, 8
    %v370 = vadd.s32 %v362, 8
    %v371 = vsel %vm367, %v369, %v355
    %v372 = vsel %vm368, %v370, %v362
    %vm373 = vcmask 261120
    %374 = vst.msk [vmem:[#allocation2] sm:$0xff] %vm373, 0.0
    %375 = vst.msk [vmem:[#allocation2 + $0x8] sm:$0xff] %vm373, 0.0
    %376 = vst.msk [vmem:[#allocation2 + $0x10] sm:$0xff] %vm373, 0.0
    %377 = vst.msk [vmem:[#allocation2 + $0x18] sm:$0xff] %vm373, 0.0
    %v378 = vpack.c.bf16 %v341, %v340
    %v379 = vld [vmem:[%s3] sm:$0xf]
    %v380 = vld [vmem:[%s3 + $0x4] sm:$0xf]
    %v381 = vld [vmem:[%s3 + $0x8] sm:$0xf]
    %v382 = vld [vmem:[%s3 + $0xc] sm:$0xf]
    %v383 = vld [vmem:[%s4] sm:$0x1]
    %v385 = vperm.slane %v383, 0
    %v391 = vunpack.c.l.b16 %v379
    %v392 = vunpack.c.l.b16 %v380
    %v393 = vunpack.c.l.b16 %v381
    %v394 = vunpack.c.l.b16 %v382
    %v395 = vpack.c.b16 %v392, %v391
    %v396 = vpack.c.b16 %v394, %v393
    %v400 = vsel %vm373, %v378, 0
    %402 = vmatpush.bf16.msra.mxu0 0
    %403 = vmatpush.bf16.msra.mxu0 0
    %404 = vmatpush.bf16.msra.mxu0 0
    %405 = vmatpush.bf16.msra.mxu0 0
    %406 = vmatpush.bf16.msra.mxu0 0
    %407 = vmatpush.bf16.msra.mxu0 0
    %408 = vmatpush.bf16.msra.mxu0 %v396
    %409 = vmatpush.bf16.msra.mxu0 %v395
    %410 = vmatmul.bf16.gmra.mxu0 %v400
    %v411 = vpop.f32.mrf.mxu0
    %v412 = vadd.f32 %v385, %v411
    %v413 = vpop.f32.mrf.mxu0
    %v414 = vadd.f32 %v385, %v413
    %415 = vdwg.mxu0
    %s416 = scalar_lea.vmem %s3, 16
    %v417 = vld [vmem:[%s416] sm:$0xf]
    %v418 = vld [vmem:[%s416 + $0x4] sm:$0xf]
    %v419 = vld [vmem:[%s416 + $0x8] sm:$0xf]
    %v420 = vld [vmem:[%s416 + $0xc] sm:$0xf]
    %s421 = scalar_lea.vmem %s4, 1
    %v422 = vld [vmem:[%s421] sm:$0x1]
    %v424 = vperm.slane %v422, 0
    %v430 = vunpack.c.l.b16 %v417
    %v431 = vunpack.c.l.b16 %v418
    %v432 = vunpack.c.l.b16 %v419
    %v433 = vunpack.c.l.b16 %v420
    %v434 = vpack.c.b16 %v431, %v430
    %v435 = vpack.c.b16 %v433, %v432
    %438 = vmatpush.bf16.msra.mxu0 0
    %439 = vmatpush.bf16.msra.mxu0 0
    %440 = vmatpush.bf16.msra.mxu0 0
    %441 = vmatpush.bf16.msra.mxu0 0
    %442 = vmatpush.bf16.msra.mxu0 0
    %443 = vmatpush.bf16.msra.mxu0 0
    %444 = vmatpush.bf16.msra.mxu0 %v435
    %445 = vmatpush.bf16.msra.mxu0 %v434
    %446 = vmatmul.bf16.gmra.mxu0 %v400
    %v447 = vpop.f32.mrf.mxu0
    %v448 = vadd.f32 %v424, %v447
    %v449 = vpop.f32.mrf.mxu0
    %v450 = vadd.f32 %v424, %v449
    %451 = vdwg.mxu0
    %452 = vst.msk [vmem:[#allocation2 + $0x8] sm:$0xff] %vm373, %v412
    %453 = vst.msk [vmem:[#allocation2 + $0x10] sm:$0xff] %vm373, %v414
    %v454 = vld [vmem:[#allocation2 + $0x7] sm:$0xff]
    %v455 = vld [vmem:[#allocation2 + $0xf] sm:$0xff]
    %vm456 = vcmp.ge.s32.totalorder %v371, 1
    %vm457 = vcmp.ge.s32.totalorder %v372, 1
    %v458 = vsel %vm456, 1, 0
    %v459 = vsel %vm457, 1, 0
    %vm460 = vcmp.eq.s32.totalorder %v458, 1
    %vm461 = vcmp.eq.s32.totalorder %v459, 1
    %v462 = vsel %vm460, %v454, 0.0
    %v463 = vsel %vm461, %v455, 0.0
    %v464 = vadd.f32 %v412, %v462
    %v465 = vadd.f32 %v414, %v463
    %466 = vst.msk [vmem:[#allocation2 + $0x8] sm:$0xff] %vm373, %v464
    %467 = vst.msk [vmem:[#allocation2 + $0x10] sm:$0xff] %vm373, %v465
    %v468 = vld [vmem:[#allocation2 + $0x6] sm:$0xff]
    %v469 = vld [vmem:[#allocation2 + $0xe] sm:$0xff]
    %vm470 = vcmp.ge.s32.totalorder %v371, 2
    %vm471 = vcmp.ge.s32.totalorder %v372, 2
    %v472 = vsel %vm470, 1, 0
    %v473 = vsel %vm471, 1, 0
    %vm474 = vcmp.eq.s32.totalorder %v472, 1
    %vm475 = vcmp.eq.s32.totalorder %v473, 1
    %v476 = vsel %vm474, %v468, 0.0
    %v477 = vsel %vm475, %v469, 0.0
    %v478 = vadd.f32 %v464, %v476
    %v479 = vadd.f32 %v465, %v477
    %480 = vst.msk [vmem:[#allocation2 + $0x8] sm:$0xff] %vm373, %v478
    %481 = vst.msk [vmem:[#allocation2 + $0x10] sm:$0xff] %vm373, %v479
    %v482 = vld [vmem:[#allocation2 + $0x4] sm:$0xff]
    %v483 = vld [vmem:[#allocation2 + $0xc] sm:$0xff]
    %vm484 = vcmp.ge.s32.totalorder %v371, 4
    %vm485 = vcmp.ge.s32.totalorder %v372, 4
    %v486 = vsel %vm484, 1, 0
    %v487 = vsel %vm485, 1, 0
    %vm488 = vcmp.eq.s32.totalorder %v486, 1
    %vm489 = vcmp.eq.s32.totalorder %v487, 1
    %v490 = vsel %vm488, %v482, 0.0
    %v491 = vsel %vm489, %v483, 0.0
    %v492 = vadd.f32 %v478, %v490
    %v493 = vadd.f32 %v479, %v491
    %v494 = vsub.f32 %v492, %v412
    %v495 = vsub.f32 %v493, %v414
    %496 = vst.msk [vmem:[#allocation2 + $0x8] sm:$0xff] %vm373, %v448
    %497 = vst.msk [vmem:[#allocation2 + $0x10] sm:$0xff] %vm373, %v450
    %v498 = vld [vmem:[#allocation2 + $0x9] sm:$0xff]
    %v499 = vld [vmem:[#allocation2 + $0x11] sm:$0xff]
    %vm500 = vcmp.lt.s32.totalorder %v371, 7
    %vm501 = vcmp.lt.s32.totalorder %v372, 7
    %v502 = vsel %vm500, 1, 0
    %v503 = vsel %vm501, 1, 0
    %vm504 = vcmp.eq.s32.totalorder %v502, 1
    %vm505 = vcmp.eq.s32.totalorder %v503, 1
    %v506 = vsel %vm504, %v498, 0.0
    %v507 = vsel %vm505, %v499, 0.0
    %v508 = vadd.f32 %v448, %v506
    %v509 = vadd.f32 %v450, %v507
    %510 = vst.msk [vmem:[#allocation2 + $0x8] sm:$0xff] %vm373, %v508
    %511 = vst.msk [vmem:[#allocation2 + $0x10] sm:$0xff] %vm373, %v509
    %v512 = vld [vmem:[#allocation2 + $0xa] sm:$0xff]
    %v513 = vld [vmem:[#allocation2 + $0x12] sm:$0xff]
    %vm514 = vcmp.lt.s32.totalorder %v371, 6
    %vm515 = vcmp.lt.s32.totalorder %v372, 6
    %v516 = vsel %vm514, 1, 0
    %v517 = vsel %vm515, 1, 0
    %vm518 = vcmp.eq.s32.totalorder %v516, 1
    %vm519 = vcmp.eq.s32.totalorder %v517, 1
    %v520 = vsel %vm518, %v512, 0.0
    %v521 = vsel %vm519, %v513, 0.0
    %v522 = vadd.f32 %v508, %v520
    %v523 = vadd.f32 %v509, %v521
    %524 = vst.msk [vmem:[#allocation2 + $0x8] sm:$0xff] %vm373, %v522
    %525 = vst.msk [vmem:[#allocation2 + $0x10] sm:$0xff] %vm373, %v523
    %v526 = vld [vmem:[#allocation2 + $0xc] sm:$0xff]
    %v527 = vld [vmem:[#allocation2 + $0x14] sm:$0xff]
    %vm528 = vcmp.lt.s32.totalorder %v371, 4
    %vm529 = vcmp.lt.s32.totalorder %v372, 4
    %v530 = vsel %vm528, 1, 0
    %v531 = vsel %vm529, 1, 0
    %vm532 = vcmp.eq.s32.totalorder %v530, 1
    %vm533 = vcmp.eq.s32.totalorder %v531, 1
    %v534 = vsel %vm532, %v526, 0.0
    %v535 = vsel %vm533, %v527, 0.0
    %v536 = vadd.f32 %v522, %v534
    %v537 = vadd.f32 %v523, %v535
    %v538 = vsub.f32 %v536, %v448
    %v539 = vsub.f32 %v537, %v450
    %v540 = vsel %vm373, %v494, 0.0
    %541 = vadd.xlane.f32.xlu0 %v540
    %v542 = vpop.xlane.xlu0 %541
    %v543 = vsel %vm373, %v495, 0.0
    %544 = vadd.xlane.f32.xlu0 %v543
    %v545 = vpop.xlane.xlu0 %544
    %v546 = vmul.f32 %v494, %v494
    %v547 = vmul.f32 %v495, %v495
    %v548 = vsel %vm373, %v546, 0.0
    %549 = vadd.xlane.f32.xlu0 %v548
    %v550 = vpop.xlane.xlu0 %549
    %v551 = vsel %vm373, %v547, 0.0
    %552 = vadd.xlane.f32.xlu0 %v551
    %v553 = vpop.xlane.xlu0 %552
    %v554 = vsel %vm373, %v538, 0.0
    %555 = vadd.xlane.f32.xlu0 %v554
    %v556 = vpop.xlane.xlu0 %555
    %v557 = vsel %vm373, %v539, 0.0
    %558 = vadd.xlane.f32.xlu0 %v557
    %v559 = vpop.xlane.xlu0 %558
    %v560 = vmul.f32 %v538, %v538
    %v561 = vmul.f32 %v539, %v539
    %v562 = vsel %vm373, %v560, 0.0
    %563 = vadd.xlane.f32.xlu0 %v562
    %v564 = vpop.xlane.xlu0 %563
    %v565 = vsel %vm373, %v561, 0.0
    %566 = vadd.xlane.f32.xlu0 %v565
    %v567 = vpop.xlane.xlu0 %566
    %vm568 = vcmask 130048
    %v570 = vsel %vm568, %v344, 0
    %v573 = vsel %vm568, %v345, 0
    %575 = vmatpush.msra.mxu0 0.0
    %576 = vmatpush.msra.mxu0 0.0
    %577 = vmatpush.msra.mxu0 0.0
    %578 = vmatpush.msra.mxu0 0.0
    %579 = vmatpush.msra.mxu0 0.0
    %580 = vmatpush.msra.mxu0 0.0
    %581 = vmatpush.msra.mxu0 0.0
    %582 = vmatpush.msra.mxu0 0.0
    %583 = vmatpush.msra.mxu0 0.0
    %584 = vmatpush.msra.mxu0 0.0
    %585 = vmatpush.msra.mxu0 0.0
    %586 = vmatpush.msra.mxu0 0.0
    %587 = vmatpush.msra.mxu0 0.0
    %588 = vmatpush.msra.mxu0 0.0
    %589 = vmatpush.msra.mxu0 %v559
    %590 = vmatpush.msra.mxu0 %v556
    %591 = vmatmul.f32.gmra.mxu0 %v570
    %v592 = vpop.f32.mrf.mxu0
    %v593 = vadd.f32 0.0, %v592
    %594 = vmatmul.f32.gmra.mxu0 %v573
    %v595 = vpop.f32.mrf.mxu0
    %v596 = vadd.f32 0.0, %v595
    %597 = vdwg.mxu0
    %v598 = vadd.f32 %v542, %v593
    %v599 = vadd.f32 %v545, %v596
    %v600 = vrcp.pop 64.0
    %v601 = vmul.f32 64.0, %v600
    %v602 = vsub.f32 1.0, %v601
    %v603 = vmul.f32 %v600, %v602
    %v604 = vadd.f32 %v600, %v603
    %vm605 = vweird.f32 %v600
    %v606 = vsel %vm605, %v600, %v604
    %v607 = vmul.f32 %v598, %v606
    %v608 = vmul.f32 %v599, %v606
    %609 = vmatpush.msra.mxu0 0.0
    %610 = vmatpush.msra.mxu0 0.0
    %611 = vmatpush.msra.mxu0 0.0
    %612 = vmatpush.msra.mxu0 0.0
    %613 = vmatpush.msra.mxu0 0.0
    %614 = vmatpush.msra.mxu0 0.0
    %615 = vmatpush.msra.mxu0 0.0
    %616 = vmatpush.msra.mxu0 0.0
    %617 = vmatpush.msra.mxu0 0.0
    %618 = vmatpush.msra.mxu0 0.0
    %619 = vmatpush.msra.mxu0 0.0
    %620 = vmatpush.msra.mxu0 0.0
    %621 = vmatpush.msra.mxu0 0.0
    %622 = vmatpush.msra.mxu0 0.0
    %623 = vmatpush.msra.mxu0 %v567
    %624 = vmatpush.msra.mxu0 %v564
    %625 = vmatmul.f32.gmra.mxu0 %v570
    %v626 = vpop.f32.mrf.mxu0
    %v627 = vadd.f32 0.0, %v626
    %628 = vmatmul.f32.gmra.mxu0 %v573
    %v629 = vpop.f32.mrf.mxu0
    %v630 = vadd.f32 0.0, %v629
    %631 = vdwg.mxu0
    %v632 = vadd.f32 %v550, %v627
    %v633 = vadd.f32 %v553, %v630
    %v634 = vmul.f32 %v632, %v606
    %v635 = vmul.f32 %v633, %v606
    %v636 = vmul.f32 %v607, %v607
    %v637 = vmul.f32 %v608, %v608
    %v638 = vsub.f32 %v634, %v636
    %v639 = vsub.f32 %v635, %v637
    %v640 = vmax.f32 %v638, 0.0
    %v641 = vmax.f32 %v639, 0.0
    %v642 = vadd.f32 %v640, 1e-05
    %v643 = vadd.f32 %v641, 1e-05
    %v644 = vrsqrt.pop %v642
    %v645 = vmul.f32 %v644, %v642
    %v646 = vmul.f32 %v645, %v644
    %v647 = vmul.f32 0.5, %v646
    %v648 = vsub.f32 1.5, %v647
    %v649 = vmul.f32 %v644, %v648
    %vm650 = vweird.f32 %v642
    %vm651 = vweird.f32 %v644
    %vm652 = vmor %vm650, %vm651
    %v653 = vsel %vm652, %v644, %v649
    %v654 = vrsqrt.pop %v643
    %v655 = vmul.f32 %v654, %v643
    %v656 = vmul.f32 %v655, %v654
    %v657 = vmul.f32 0.5, %v656
    %v658 = vsub.f32 1.5, %v657
    %v659 = vmul.f32 %v654, %v658
    %vm660 = vweird.f32 %v643
    %vm661 = vweird.f32 %v654
    %vm662 = vmor %vm660, %vm661
    %v663 = vsel %vm662, %v654, %v659
    %664 = vmatpush.msra.mxu0 0.0
    %665 = vmatpush.msra.mxu0 0.0
    %666 = vmatpush.msra.mxu0 0.0
    %667 = vmatpush.msra.mxu0 0.0
    %668 = vmatpush.msra.mxu0 0.0
    %669 = vmatpush.msra.mxu0 0.0
    %670 = vmatpush.msra.mxu0 0.0
    %671 = vmatpush.msra.mxu0 0.0
    %672 = vmatpush.msra.mxu0 0.0
    %673 = vmatpush.msra.mxu0 0.0
    %674 = vmatpush.msra.mxu0 0.0
    %675 = vmatpush.msra.mxu0 0.0
    %676 = vmatpush.msra.mxu0 0.0
    %677 = vmatpush.msra.mxu0 0.0
    %678 = vmatpush.msra.mxu0 %v608
    %679 = vmatpush.msra.mxu0 %v607
    %680 = vmatmul.f32.gmra.mxu0 %v570
    %v681 = vpop.f32.mrf.mxu0
    %v682 = vadd.f32 0.0, %v681
    %683 = vmatmul.f32.gmra.mxu0 %v573
    %v684 = vpop.f32.mrf.mxu0
    %v685 = vadd.f32 0.0, %v684
    %686 = vdwg.mxu0
    %687 = vmatpush.msra.mxu0 0.0
    %688 = vmatpush.msra.mxu0 0.0
    %689 = vmatpush.msra.mxu0 0.0
    %690 = vmatpush.msra.mxu0 0.0
    %691 = vmatpush.msra.mxu0 0.0
    %692 = vmatpush.msra.mxu0 0.0
    %693 = vmatpush.msra.mxu0 0.0
    %694 = vmatpush.msra.mxu0 0.0
    %695 = vmatpush.msra.mxu0 0.0
    %696 = vmatpush.msra.mxu0 0.0
    %697 = vmatpush.msra.mxu0 0.0
    %698 = vmatpush.msra.mxu0 0.0
    %699 = vmatpush.msra.mxu0 0.0
    %700 = vmatpush.msra.mxu0 0.0
    %701 = vmatpush.msra.mxu0 %v663
    %702 = vmatpush.msra.mxu0 %v653
    %703 = vmatmul.f32.gmra.mxu0 %v570
    %v704 = vpop.f32.mrf.mxu0
    %v705 = vadd.f32 0.0, %v704
    %706 = vmatmul.f32.gmra.mxu0 %v573
    %v707 = vpop.f32.mrf.mxu0
    %v708 = vadd.f32 0.0, %v707
    %709 = vdwg.mxu0
    %711 = vset.pattern.permute.xlu0 0
    %712 = vperm.xlu0 %711, %v607
    %v713 = vpop.permute.xlu0 %712
    %716 = vset.pattern.permute.xlu0 0
    %717 = vperm.xlu0 %716, %v608
    %v718 = vpop.permute.xlu0 %717
    %v720 = vsub.f32 %v494, %v713
    %v721 = vsub.f32 %v495, %v718
    %723 = vset.pattern.permute.xlu0 0
    %724 = vperm.xlu0 %723, %v653
    %v725 = vpop.permute.xlu0 %724
    %728 = vset.pattern.permute.xlu0 0
    %729 = vperm.xlu0 %728, %v663
    %v730 = vpop.permute.xlu0 %729
    %v732 = vmul.f32 %v720, %v725
    %v733 = vmul.f32 %v721, %v730
    %v734 = vld [vmem:[%s5] sm:$0x1]
    %v736 = vperm.slane %v734, 0
    %v738 = vmul.f32 %v732, %v736
    %v739 = vmul.f32 %v733, %v736
    %v740 = vld [vmem:[#allocation8] sm:$0x1]
    %v742 = vperm.slane %v740, 0
    %v744 = vadd.f32 %v738, %v742
    %v745 = vadd.f32 %v739, %v742
    %747 = vset.pattern.permute.xlu0 0
    %748 = vperm.xlu0 %747, %v682
    %v749 = vpop.permute.xlu0 %748
    %752 = vset.pattern.permute.xlu0 0
    %753 = vperm.xlu0 %752, %v685
    %v754 = vpop.permute.xlu0 %753
    %v756 = vsub.f32 %v538, %v749
    %v757 = vsub.f32 %v539, %v754
    %759 = vset.pattern.permute.xlu0 0
    %760 = vperm.xlu0 %759, %v705
    %v761 = vpop.permute.xlu0 %760
    %764 = vset.pattern.permute.xlu0 0
    %765 = vperm.xlu0 %764, %v708
    %v766 = vpop.permute.xlu0 %765
    %v768 = vmul.f32 %v756, %v761
    %v769 = vmul.f32 %v757, %v766
    %s770 = scalar_lea.vmem %s5, 1
    %v771 = vld [vmem:[%s770] sm:$0x1]
    %v773 = vperm.slane %v771, 0
    %v775 = vmul.f32 %v768, %v773
    %v776 = vmul.f32 %v769, %v773
    %s777 = scalar_lea.vmem [#allocation8], 1
    %v778 = vld [vmem:[%s777] sm:$0x1]
    %v780 = vperm.slane %v778, 0
    %v782 = vadd.f32 %v775, %v780
    %v783 = vadd.f32 %v776, %v780
    %v784 = vpack.c.bf16 %v414, %v412
    %v785 = vld [vmem:[%s7] sm:$0xf]
    %v786 = vld [vmem:[%s7 + $0x4] sm:$0xf]
    %v787 = vld [vmem:[%s7 + $0x8] sm:$0xf]
    %v788 = vld [vmem:[%s7 + $0xc] sm:$0xf]
    %v789 = vpack.c.bf16 %v745, %v744
    %v790 = vld [vmem:[%s8] sm:$0xf]
    %v791 = vld [vmem:[%s8 + $0x4] sm:$0xf]
    %v792 = vld [vmem:[%s8 + $0x8] sm:$0xf]
    %v793 = vld [vmem:[%s8 + $0xc] sm:$0xf]
    %v798 = vunpack.c.l.b16 %v790
    %v799 = vunpack.c.l.b16 %v791
    %v800 = vunpack.c.l.b16 %v792
    %v801 = vunpack.c.l.b16 %v793
    %v802 = vpack.c.b16 %v799, %v798
    %v803 = vpack.c.b16 %v801, %v800
    %v807 = vsel %vm373, %v789, 0
    %809 = vmatpush.bf16.msra.mxu0 0
    %810 = vmatpush.bf16.msra.mxu0 0
    %811 = vmatpush.bf16.msra.mxu0 0
    %812 = vmatpush.bf16.msra.mxu0 0
    %813 = vmatpush.bf16.msra.mxu0 0
    %814 = vmatpush.bf16.msra.mxu0 0
    %815 = vmatpush.bf16.msra.mxu0 %v803
    %816 = vmatpush.bf16.msra.mxu0 %v802
    %817 = vmatmul.bf16.gmra.mxu0 %v807
    %v818 = vpop.f32.mrf.mxu0
    %v819 = vadd.f32 0.0, %v818
    %v820 = vpop.f32.mrf.mxu0
    %v821 = vadd.f32 0.0, %v820
    %822 = vdwg.mxu0
    %v827 = vunpack.c.l.b16 %v785
    %v828 = vunpack.c.l.b16 %v786
    %v829 = vunpack.c.l.b16 %v787
    %v830 = vunpack.c.l.b16 %v788
    %v831 = vpack.c.b16 %v828, %v827
    %v832 = vpack.c.b16 %v830, %v829
    %v836 = vsel %vm373, %v784, 0
    %838 = vmatpush.bf16.msra.mxu0 0
    %839 = vmatpush.bf16.msra.mxu0 0
    %840 = vmatpush.bf16.msra.mxu0 0
    %841 = vmatpush.bf16.msra.mxu0 0
    %842 = vmatpush.bf16.msra.mxu0 0
    %843 = vmatpush.bf16.msra.mxu0 0
    %844 = vmatpush.bf16.msra.mxu0 %v832
    %845 = vmatpush.bf16.msra.mxu0 %v831
    %846 = vmatmul.bf16.gmra.mxu0 %v836
    %v847 = vpop.f32.mrf.mxu0
    %v848 = vadd.f32 %v819, %v847
    %v849 = vpop.f32.mrf.mxu0
    %v850 = vadd.f32 %v821, %v849
    %851 = vdwg.mxu0
    %v852 = vld [vmem:[#allocation9] sm:$0x1]
    %v854 = vperm.slane %v852, 0
    %v856 = vadd.f32 %v848, %v854
    %v857 = vadd.f32 %v850, %v854
    %v858 = vld [vmem:[%s12] sm:$0xf]
    %v859 = vld [vmem:[%s12 + $0x4] sm:$0xf]
    %v860 = vld [vmem:[%s12 + $0x8] sm:$0xf]
    %v861 = vld [vmem:[%s12 + $0xc] sm:$0xf]
    %v862 = vld [vmem:[%s13] sm:$0xf]
    %v863 = vld [vmem:[%s13 + $0x4] sm:$0xf]
    %v864 = vld [vmem:[%s13 + $0x8] sm:$0xf]
    %v865 = vld [vmem:[%s13 + $0xc] sm:$0xf]
    %v870 = vunpack.c.l.b16 %v862
    %v871 = vunpack.c.l.b16 %v863
    %v872 = vunpack.c.l.b16 %v864
    %v873 = vunpack.c.l.b16 %v865
    %v874 = vpack.c.b16 %v871, %v870
    %v875 = vpack.c.b16 %v873, %v872
    %878 = vmatpush.bf16.msra.mxu0 0
    %879 = vmatpush.bf16.msra.mxu0 0
    %880 = vmatpush.bf16.msra.mxu0 0
    %881 = vmatpush.bf16.msra.mxu0 0
    %882 = vmatpush.bf16.msra.mxu0 0
    %883 = vmatpush.bf16.msra.mxu0 0
    %884 = vmatpush.bf16.msra.mxu0 %v875
    %885 = vmatpush.bf16.msra.mxu0 %v874
    %886 = vmatmul.bf16.gmra.mxu0 %v807
    %v887 = vpop.f32.mrf.mxu0
    %v888 = vadd.f32 0.0, %v887
    %v889 = vpop.f32.mrf.mxu0
    %v890 = vadd.f32 0.0, %v889
    %891 = vdwg.mxu0
    %v896 = vunpack.c.l.b16 %v858
    %v897 = vunpack.c.l.b16 %v859
    %v898 = vunpack.c.l.b16 %v860
    %v899 = vunpack.c.l.b16 %v861
    %v900 = vpack.c.b16 %v897, %v896
    %v901 = vpack.c.b16 %v899, %v898
    %904 = vmatpush.bf16.msra.mxu0 0
    %905 = vmatpush.bf16.msra.mxu0 0
    %906 = vmatpush.bf16.msra.mxu0 0
    %907 = vmatpush.bf16.msra.mxu0 0
    %908 = vmatpush.bf16.msra.mxu0 0
    %909 = vmatpush.bf16.msra.mxu0 0
    %910 = vmatpush.bf16.msra.mxu0 %v901
    %911 = vmatpush.bf16.msra.mxu0 %v900
    %912 = vmatmul.bf16.gmra.mxu0 %v836
    %v913 = vpop.f32.mrf.mxu0
    %v914 = vadd.f32 %v888, %v913
    %v915 = vpop.f32.mrf.mxu0
    %v916 = vadd.f32 %v890, %v915
    %917 = vdwg.mxu0
    %v918 = vld [vmem:[#allocation14] sm:$0x1]
    %v920 = vperm.slane %v918, 0
    %v922 = vadd.f32 %v914, %v920
    %v923 = vadd.f32 %v916, %v920
    %v924 = vpack.c.bf16 %v450, %v448
    %s925 = scalar_lea.vmem %s7, 16
    %v926 = vld [vmem:[%s925] sm:$0xf]
    %v927 = vld [vmem:[%s925 + $0x4] sm:$0xf]
    %v928 = vld [vmem:[%s925 + $0x8] sm:$0xf]
    %v929 = vld [vmem:[%s925 + $0xc] sm:$0xf]
    %v930 = vpack.c.bf16 %v783, %v782
    %s931 = scalar_lea.vmem %s8, 16
    %v932 = vld [vmem:[%s931] sm:$0xf]
    %v933 = vld [vmem:[%s931 + $0x4] sm:$0xf]
    %v934 = vld [vmem:[%s931 + $0x8] sm:$0xf]
    %v935 = vld [vmem:[%s931 + $0xc] sm:$0xf]
    %v940 = vunpack.c.l.b16 %v932
    %v941 = vunpack.c.l.b16 %v933
    %v942 = vunpack.c.l.b16 %v934
    %v943 = vunpack.c.l.b16 %v935
    %v944 = vpack.c.b16 %v941, %v940
    %v945 = vpack.c.b16 %v943, %v942
    %v949 = vsel %vm373, %v930, 0
    %951 = vmatpush.bf16.msra.mxu0 0
    %952 = vmatpush.bf16.msra.mxu0 0
    %953 = vmatpush.bf16.msra.mxu0 0
    %954 = vmatpush.bf16.msra.mxu0 0
    %955 = vmatpush.bf16.msra.mxu0 0
    %956 = vmatpush.bf16.msra.mxu0 0
    %957 = vmatpush.bf16.msra.mxu0 %v945
    %958 = vmatpush.bf16.msra.mxu0 %v944
    %959 = vmatmul.bf16.gmra.mxu0 %v949
    %v960 = vpop.f32.mrf.mxu0
    %v961 = vadd.f32 0.0, %v960
    %v962 = vpop.f32.mrf.mxu0
    %v963 = vadd.f32 0.0, %v962
    %964 = vdwg.mxu0
    %v969 = vunpack.c.l.b16 %v926
    %v970 = vunpack.c.l.b16 %v927
    %v971 = vunpack.c.l.b16 %v928
    %v972 = vunpack.c.l.b16 %v929
    %v973 = vpack.c.b16 %v970, %v969
    %v974 = vpack.c.b16 %v972, %v971
    %v978 = vsel %vm373, %v924, 0
    %980 = vmatpush.bf16.msra.mxu0 0
    %981 = vmatpush.bf16.msra.mxu0 0
    %982 = vmatpush.bf16.msra.mxu0 0
    %983 = vmatpush.bf16.msra.mxu0 0
    %984 = vmatpush.bf16.msra.mxu0 0
    %985 = vmatpush.bf16.msra.mxu0 0
    %986 = vmatpush.bf16.msra.mxu0 %v974
    %987 = vmatpush.bf16.msra.mxu0 %v973
    %988 = vmatmul.bf16.gmra.mxu0 %v978
    %v989 = vpop.f32.mrf.mxu0
    %v990 = vadd.f32 %v961, %v989
    %v991 = vpop.f32.mrf.mxu0
    %v992 = vadd.f32 %v963, %v991
    %993 = vdwg.mxu0
    %s994 = scalar_lea.vmem [#allocation9], 1
    %v995 = vld [vmem:[%s994] sm:$0x1]
    %v997 = vperm.slane %v995, 0
    %v999 = vadd.f32 %v990, %v997
    %v1000 = vadd.f32 %v992, %v997
    %s1001 = scalar_lea.vmem %s12, 16
    %v1002 = vld [vmem:[%s1001] sm:$0xf]
    %v1003 = vld [vmem:[%s1001 + $0x4] sm:$0xf]
    %v1004 = vld [vmem:[%s1001 + $0x8] sm:$0xf]
    %v1005 = vld [vmem:[%s1001 + $0xc] sm:$0xf]
    %s1006 = scalar_lea.vmem %s13, 16
    %v1007 = vld [vmem:[%s1006] sm:$0xf]
    %v1008 = vld [vmem:[%s1006 + $0x4] sm:$0xf]
    %v1009 = vld [vmem:[%s1006 + $0x8] sm:$0xf]
    %v1010 = vld [vmem:[%s1006 + $0xc] sm:$0xf]
    %v1015 = vunpack.c.l.b16 %v1007
    %v1016 = vunpack.c.l.b16 %v1008
    %v1017 = vunpack.c.l.b16 %v1009
    %v1018 = vunpack.c.l.b16 %v1010
    %v1019 = vpack.c.b16 %v1016, %v1015
    %v1020 = vpack.c.b16 %v1018, %v1017
    %1023 = vmatpush.bf16.msra.mxu0 0
    %1024 = vmatpush.bf16.msra.mxu0 0
    %1025 = vmatpush.bf16.msra.mxu0 0
    %1026 = vmatpush.bf16.msra.mxu0 0
    %1027 = vmatpush.bf16.msra.mxu0 0
    %1028 = vmatpush.bf16.msra.mxu0 0
    %1029 = vmatpush.bf16.msra.mxu0 %v1020
    %1030 = vmatpush.bf16.msra.mxu0 %v1019
    %1031 = vmatmul.bf16.gmra.mxu0 %v949
    %v1032 = vpop.f32.mrf.mxu0
    %v1033 = vadd.f32 0.0, %v1032
    %v1034 = vpop.f32.mrf.mxu0
    %v1035 = vadd.f32 0.0, %v1034
    %1036 = vdwg.mxu0
    %v1041 = vunpack.c.l.b16 %v1002
    %v1042 = vunpack.c.l.b16 %v1003
    %v1043 = vunpack.c.l.b16 %v1004
    %v1044 = vunpack.c.l.b16 %v1005
    %v1045 = vpack.c.b16 %v1042, %v1041
    %v1046 = vpack.c.b16 %v1044, %v1043
    %1049 = vmatpush.bf16.msra.mxu0 0
    %1050 = vmatpush.bf16.msra.mxu0 0
    %1051 = vmatpush.bf16.msra.mxu0 0
    %1052 = vmatpush.bf16.msra.mxu0 0
    %1053 = vmatpush.bf16.msra.mxu0 0
    %1054 = vmatpush.bf16.msra.mxu0 0
    %1055 = vmatpush.bf16.msra.mxu0 %v1046
    %1056 = vmatpush.bf16.msra.mxu0 %v1045
    %1057 = vmatmul.bf16.gmra.mxu0 %v978
    %v1058 = vpop.f32.mrf.mxu0
    %v1059 = vadd.f32 %v1033, %v1058
    %v1060 = vpop.f32.mrf.mxu0
    %v1061 = vadd.f32 %v1035, %v1060
    %1062 = vdwg.mxu0
    %s1063 = scalar_lea.vmem [#allocation14], 1
    %v1064 = vld [vmem:[%s1063] sm:$0x1]
    %v1066 = vperm.slane %v1064, 0
    %v1068 = vadd.f32 %v1059, %v1066
    %v1069 = vadd.f32 %v1061, %v1066
    %v1070 = vsel %vm373, %v856, 0.0
    %1071 = vadd.xlane.f32.xlu0 %v1070
    %v1072 = vpop.xlane.xlu0 %1071
    %v1073 = vsel %vm373, %v857, 0.0
    %1074 = vadd.xlane.f32.xlu0 %v1073
    %v1075 = vpop.xlane.xlu0 %1074
    %v1076 = vsel %vm373, %v922, 0.0
    %1077 = vadd.xlane.f32.xlu0 %v1076
    %v1078 = vpop.xlane.xlu0 %1077
    %v1079 = vsel %vm373, %v923, 0.0
    %1080 = vadd.xlane.f32.xlu0 %v1079
    %v1081 = vpop.xlane.xlu0 %1080
    %v1082 = vadd.f32 %v1072, %v1078
    %v1083 = vadd.f32 %v1075, %v1081
    %v1084 = vmul.f32 %v856, %v856
    %v1085 = vmul.f32 %v857, %v857
    %v1086 = vsel %vm373, %v1084, 0.0
    %1087 = vadd.xlane.f32.xlu0 %v1086
    %v1088 = vpop.xlane.xlu0 %1087
    %v1089 = vsel %vm373, %v1085, 0.0
    %1090 = vadd.xlane.f32.xlu0 %v1089
    %v1091 = vpop.xlane.xlu0 %1090
    %v1092 = vmul.f32 %v922, %v922
    %v1093 = vmul.f32 %v923, %v923
    %v1094 = vsel %vm373, %v1092, 0.0
    %1095 = vadd.xlane.f32.xlu0 %v1094
    %v1096 = vpop.xlane.xlu0 %1095
    %v1097 = vsel %vm373, %v1093, 0.0
    %1098 = vadd.xlane.f32.xlu0 %v1097
    %v1099 = vpop.xlane.xlu0 %1098
    %v1100 = vadd.f32 %v1088, %v1096
    %v1101 = vadd.f32 %v1091, %v1099
    %v1102 = vsel %vm373, %v999, 0.0
    %1103 = vadd.xlane.f32.xlu0 %v1102
    %v1104 = vpop.xlane.xlu0 %1103
    %v1105 = vsel %vm373, %v1000, 0.0
    %1106 = vadd.xlane.f32.xlu0 %v1105
    %v1107 = vpop.xlane.xlu0 %1106
    %v1108 = vsel %vm373, %v1068, 0.0
    %1109 = vadd.xlane.f32.xlu0 %v1108
    %v1110 = vpop.xlane.xlu0 %1109
    %v1111 = vsel %vm373, %v1069, 0.0
    %1112 = vadd.xlane.f32.xlu0 %v1111
    %v1113 = vpop.xlane.xlu0 %1112
    %v1114 = vadd.f32 %v1104, %v1110
    %v1115 = vadd.f32 %v1107, %v1113
    %v1116 = vmul.f32 %v999, %v999
    %v1117 = vmul.f32 %v1000, %v1000
    %v1118 = vsel %vm373, %v1116, 0.0
    %1119 = vadd.xlane.f32.xlu0 %v1118
    %v1120 = vpop.xlane.xlu0 %1119
    %v1121 = vsel %vm373, %v1117, 0.0
    %1122 = vadd.xlane.f32.xlu0 %v1121
    %v1123 = vpop.xlane.xlu0 %1122
    %v1124 = vmul.f32 %v1068, %v1068
    %v1125 = vmul.f32 %v1069, %v1069
    %v1126 = vsel %vm373, %v1124, 0.0
    %1127 = vadd.xlane.f32.xlu0 %v1126
    %v1128 = vpop.xlane.xlu0 %1127
    %v1129 = vsel %vm373, %v1125, 0.0
    %1130 = vadd.xlane.f32.xlu0 %v1129
    %v1131 = vpop.xlane.xlu0 %1130
    %v1132 = vadd.f32 %v1120, %v1128
    %v1133 = vadd.f32 %v1123, %v1131
    %1134 = vmatpush.msra.mxu0 0.0
    %1135 = vmatpush.msra.mxu0 0.0
    %1136 = vmatpush.msra.mxu0 0.0
    %1137 = vmatpush.msra.mxu0 0.0
    %1138 = vmatpush.msra.mxu0 0.0
    %1139 = vmatpush.msra.mxu0 0.0
    %1140 = vmatpush.msra.mxu0 0.0
    %1141 = vmatpush.msra.mxu0 0.0
    %1142 = vmatpush.msra.mxu0 0.0
    %1143 = vmatpush.msra.mxu0 0.0
    %1144 = vmatpush.msra.mxu0 0.0
    %1145 = vmatpush.msra.mxu0 0.0
    %1146 = vmatpush.msra.mxu0 0.0
    %1147 = vmatpush.msra.mxu0 0.0
    %1148 = vmatpush.msra.mxu0 %v1115
    %1149 = vmatpush.msra.mxu0 %v1114
    %1150 = vmatmul.f32.gmra.mxu0 %v570
    %v1151 = vpop.f32.mrf.mxu0
    %v1152 = vadd.f32 0.0, %v1151
    %1153 = vmatmul.f32.gmra.mxu0 %v573
    %v1154 = vpop.f32.mrf.mxu0
    %v1155 = vadd.f32 0.0, %v1154
    %1156 = vdwg.mxu0
    %v1157 = vadd.f32 %v1082, %v1152
    %v1158 = vadd.f32 %v1083, %v1155
    %v1159 = vrcp.pop 128.0
    %v1160 = vmul.f32 128.0, %v1159
    %v1161 = vsub.f32 1.0, %v1160
    %v1162 = vmul.f32 %v1159, %v1161
    %v1163 = vadd.f32 %v1159, %v1162
    %vm1164 = vweird.f32 %v1159
    %v1165 = vsel %vm1164, %v1159, %v1163
    %v1166 = vmul.f32 %v1157, %v1165
    %v1167 = vmul.f32 %v1158, %v1165
    %1168 = vmatpush.msra.mxu0 0.0
    %1169 = vmatpush.msra.mxu0 0.0
    %1170 = vmatpush.msra.mxu0 0.0
    %1171 = vmatpush.msra.mxu0 0.0
    %1172 = vmatpush.msra.mxu0 0.0
    %1173 = vmatpush.msra.mxu0 0.0
    %1174 = vmatpush.msra.mxu0 0.0
    %1175 = vmatpush.msra.mxu0 0.0
    %1176 = vmatpush.msra.mxu0 0.0
    %1177 = vmatpush.msra.mxu0 0.0
    %1178 = vmatpush.msra.mxu0 0.0
    %1179 = vmatpush.msra.mxu0 0.0
    %1180 = vmatpush.msra.mxu0 0.0
    %1181 = vmatpush.msra.mxu0 0.0
    %1182 = vmatpush.msra.mxu0 %v1133
    %1183 = vmatpush.msra.mxu0 %v1132
    %1184 = vmatmul.f32.gmra.mxu0 %v570
    %v1185 = vpop.f32.mrf.mxu0
    %v1186 = vadd.f32 0.0, %v1185
    %1187 = vmatmul.f32.gmra.mxu0 %v573
    %v1188 = vpop.f32.mrf.mxu0
    %v1189 = vadd.f32 0.0, %v1188
    %1190 = vdwg.mxu0
    %v1191 = vadd.f32 %v1100, %v1186
    %v1192 = vadd.f32 %v1101, %v1189
    %v1193 = vmul.f32 %v1191, %v1165
    %v1194 = vmul.f32 %v1192, %v1165
    %v1195 = vmul.f32 %v1166, %v1166
    %v1196 = vmul.f32 %v1167, %v1167
    %v1197 = vsub.f32 %v1193, %v1195
    %v1198 = vsub.f32 %v1194, %v1196
    %v1199 = vmax.f32 %v1197, 0.0
    %v1200 = vmax.f32 %v1198, 0.0
    %v1201 = vadd.f32 %v1199, 1e-05
    %v1202 = vadd.f32 %v1200, 1e-05
    %v1203 = vrsqrt.pop %v1201
    %v1204 = vmul.f32 %v1203, %v1201
    %v1205 = vmul.f32 %v1204, %v1203
    %v1206 = vmul.f32 0.5, %v1205
    %v1207 = vsub.f32 1.5, %v1206
    %v1208 = vmul.f32 %v1203, %v1207
    %vm1209 = vweird.f32 %v1201
    %vm1210 = vweird.f32 %v1203
    %vm1211 = vmor %vm1209, %vm1210
    %v1212 = vsel %vm1211, %v1203, %v1208
    %v1213 = vrsqrt.pop %v1202
    %v1214 = vmul.f32 %v1213, %v1202
    %v1215 = vmul.f32 %v1214, %v1213
    %v1216 = vmul.f32 0.5, %v1215
    %v1217 = vsub.f32 1.5, %v1216
    %v1218 = vmul.f32 %v1213, %v1217
    %vm1219 = vweird.f32 %v1202
    %vm1220 = vweird.f32 %v1213
    %vm1221 = vmor %vm1219, %vm1220
    %v1222 = vsel %vm1221, %v1213, %v1218
    %1223 = vmatpush.msra.mxu0 0.0
    %1224 = vmatpush.msra.mxu0 0.0
    %1225 = vmatpush.msra.mxu0 0.0
    %1226 = vmatpush.msra.mxu0 0.0
    %1227 = vmatpush.msra.mxu0 0.0
    %1228 = vmatpush.msra.mxu0 0.0
    %1229 = vmatpush.msra.mxu0 0.0
    %1230 = vmatpush.msra.mxu0 0.0
    %1231 = vmatpush.msra.mxu0 0.0
    %1232 = vmatpush.msra.mxu0 0.0
    %1233 = vmatpush.msra.mxu0 0.0
    %1234 = vmatpush.msra.mxu0 0.0
    %1235 = vmatpush.msra.mxu0 0.0
    %1236 = vmatpush.msra.mxu0 0.0
    %1237 = vmatpush.msra.mxu0 %v1167
    %1238 = vmatpush.msra.mxu0 %v1166
    %1239 = vmatmul.f32.gmra.mxu0 %v570
    %v1240 = vpop.f32.mrf.mxu0
    %v1241 = vadd.f32 0.0, %v1240
    %1242 = vmatmul.f32.gmra.mxu0 %v573
    %v1243 = vpop.f32.mrf.mxu0
    %v1244 = vadd.f32 0.0, %v1243
    %1245 = vdwg.mxu0
    %1246 = vmatpush.msra.mxu0 0.0
    %1247 = vmatpush.msra.mxu0 0.0
    %1248 = vmatpush.msra.mxu0 0.0
    %1249 = vmatpush.msra.mxu0 0.0
    %1250 = vmatpush.msra.mxu0 0.0
    %1251 = vmatpush.msra.mxu0 0.0
    %1252 = vmatpush.msra.mxu0 0.0
    %1253 = vmatpush.msra.mxu0 0.0
    %1254 = vmatpush.msra.mxu0 0.0
    %1255 = vmatpush.msra.mxu0 0.0
    %1256 = vmatpush.msra.mxu0 0.0
    %1257 = vmatpush.msra.mxu0 0.0
    %1258 = vmatpush.msra.mxu0 0.0
    %1259 = vmatpush.msra.mxu0 0.0
    %1260 = vmatpush.msra.mxu0 %v1222
    %1261 = vmatpush.msra.mxu0 %v1212
    %1262 = vmatmul.f32.gmra.mxu0 %v570
    %v1263 = vpop.f32.mrf.mxu0
    %v1264 = vadd.f32 0.0, %v1263
    %1265 = vmatmul.f32.gmra.mxu0 %v573
    %v1266 = vpop.f32.mrf.mxu0
    %v1267 = vadd.f32 0.0, %v1266
    %1268 = vdwg.mxu0
    %1270 = vset.pattern.permute.xlu0 0
    %1271 = vperm.xlu0 %1270, %v1166
    %v1272 = vpop.permute.xlu0 %1271
    %1275 = vset.pattern.permute.xlu0 0
    %1276 = vperm.xlu0 %1275, %v1167
    %v1277 = vpop.permute.xlu0 %1276
    %v1279 = vsub.f32 %v856, %v1272
    %v1280 = vsub.f32 %v857, %v1277
    %1282 = vset.pattern.permute.xlu0 0
    %1283 = vperm.xlu0 %1282, %v1212
    %v1284 = vpop.permute.xlu0 %1283
    %1287 = vset.pattern.permute.xlu0 0
    %1288 = vperm.xlu0 %1287, %v1222
    %v1289 = vpop.permute.xlu0 %1288
    %v1291 = vmul.f32 %v1279, %v1284
    %v1292 = vmul.f32 %v1280, %v1289
    %v1293 = vld [vmem:[#allocation11] sm:$0x1]
    %v1295 = vperm.slane %v1293, 0
    %v1297 = vmul.f32 %v1291, %v1295
    %v1298 = vmul.f32 %v1292, %v1295
    %v1299 = vld [vmem:[#allocation12] sm:$0x1]
    %v1301 = vperm.slane %v1299, 0
    %v1303 = vadd.f32 %v1297, %v1301
    %v1304 = vadd.f32 %v1298, %v1301
    %v1305 = vxor.u32 %v1303, 2147483648
    %v1306 = vxor.u32 %v1304, 2147483648
    %v1307 = vmul.f32 %v1305, 1.442695
    %v1308 = vpow.pop %v1307
    %v1309 = vmul.f32 %v1306, 1.442695
    %v1310 = vpow.pop %v1309
    %v1311 = vadd.f32 %v1308, 1.0
    %v1312 = vadd.f32 %v1310, 1.0
    %v1313 = vrcp.pop %v1311
    %v1314 = vmul.f32 %v1311, %v1313
    %v1315 = vsub.f32 1.0, %v1314
    %v1316 = vmul.f32 %v1313, %v1315
    %v1317 = vadd.f32 %v1313, %v1316
    %vm1318 = vweird.f32 %v1311
    %vm1319 = vweird.f32 %v1313
    %vm1320 = vmor %vm1318, %vm1319
    %v1321 = vsel %vm1320, %v1313, %v1317
    %v1322 = vand.u32 2147483647, %v1311
    %vm1323 = vcmp.eq.f32.partialorder %v1322, 8.507059e+37
    %v1324 = vand.u32 %v1311, 2147483648
    %v1325 = vor.u32 1.1754944e-38, %v1324
    %v1326 = vsel %vm1323, %v1325, %v1321
    %v1327 = vmul.f32 1.0, %v1326
    %v1328 = vrcp.pop %v1312
    %v1329 = vmul.f32 %v1312, %v1328
    %v1330 = vsub.f32 1.0, %v1329
    %v1331 = vmul.f32 %v1328, %v1330
    %v1332 = vadd.f32 %v1328, %v1331
    %vm1333 = vweird.f32 %v1312
    %vm1334 = vweird.f32 %v1328
    %vm1335 = vmor %vm1333, %vm1334
    %v1336 = vsel %vm1335, %v1328, %v1332
    %v1337 = vand.u32 2147483647, %v1312
    %vm1338 = vcmp.eq.f32.partialorder %v1337, 8.507059e+37
    %v1339 = vand.u32 %v1312, 2147483648
    %v1340 = vor.u32 1.1754944e-38, %v1339
    %v1341 = vsel %vm1338, %v1340, %v1336
    %v1342 = vmul.f32 1.0, %v1341
    %v1343 = vsub.f32 %v922, %v1272
    %v1344 = vsub.f32 %v923, %v1277
    %v1345 = vmul.f32 %v1343, %v1284
    %v1346 = vmul.f32 %v1344, %v1289
    %v1347 = vld [vmem:[#allocation15] sm:$0x1]
    %v1349 = vperm.slane %v1347, 0
    %v1351 = vmul.f32 %v1345, %v1349
    %v1352 = vmul.f32 %v1346, %v1349
    %v1353 = vld [vmem:[#allocation17] sm:$0x1]
    %v1355 = vperm.slane %v1353, 0
    %v1357 = vadd.f32 %v1351, %v1355
    %v1358 = vadd.f32 %v1352, %v1355
    %v1359 = vxor.u32 %v1357, 2147483648
    %v1360 = vxor.u32 %v1358, 2147483648
    %v1361 = vmul.f32 %v1359, 1.442695
    %v1362 = vpow.pop %v1361
    %v1363 = vmul.f32 %v1360, 1.442695
    %v1364 = vpow.pop %v1363
    %v1365 = vadd.f32 %v1362, 1.0
    %v1366 = vadd.f32 %v1364, 1.0
    %v1367 = vrcp.pop %v1365
    %v1368 = vmul.f32 %v1365, %v1367
    %v1369 = vsub.f32 1.0, %v1368
    %v1370 = vmul.f32 %v1367, %v1369
    %v1371 = vadd.f32 %v1367, %v1370
    %vm1372 = vweird.f32 %v1365
    %vm1373 = vweird.f32 %v1367
    %vm1374 = vmor %vm1372, %vm1373
    %v1375 = vsel %vm1374, %v1367, %v1371
    %v1376 = vand.u32 2147483647, %v1365
    %vm1377 = vcmp.eq.f32.partialorder %v1376, 8.507059e+37
    %v1378 = vand.u32 %v1365, 2147483648
    %v1379 = vor.u32 1.1754944e-38, %v1378
    %v1380 = vsel %vm1377, %v1379, %v1375
    %v1381 = vmul.f32 1.0, %v1380
    %v1382 = vrcp.pop %v1366
    %v1383 = vmul.f32 %v1366, %v1382
    %v1384 = vsub.f32 1.0, %v1383
    %v1385 = vmul.f32 %v1382, %v1384
    %v1386 = vadd.f32 %v1382, %v1385
    %vm1387 = vweird.f32 %v1366
    %vm1388 = vweird.f32 %v1382
    %vm1389 = vmor %vm1387, %vm1388
    %v1390 = vsel %vm1389, %v1382, %v1386
    %v1391 = vand.u32 2147483647, %v1366
    %vm1392 = vcmp.eq.f32.partialorder %v1391, 8.507059e+37
    %v1393 = vand.u32 %v1366, 2147483648
    %v1394 = vor.u32 1.1754944e-38, %v1393
    %v1395 = vsel %vm1392, %v1394, %v1390
    %v1396 = vmul.f32 1.0, %v1395
    %1398 = vset.pattern.permute.xlu0 0
    %1399 = vperm.xlu0 %1398, %v1241
    %v1400 = vpop.permute.xlu0 %1399
    %1403 = vset.pattern.permute.xlu0 0
    %1404 = vperm.xlu0 %1403, %v1244
    %v1405 = vpop.permute.xlu0 %1404
    %v1407 = vsub.f32 %v999, %v1400
    %v1408 = vsub.f32 %v1000, %v1405
    %1410 = vset.pattern.permute.xlu0 0
    %1411 = vperm.xlu0 %1410, %v1264
    %v1412 = vpop.permute.xlu0 %1411
    %1415 = vset.pattern.permute.xlu0 0
    %1416 = vperm.xlu0 %1415, %v1267
    %v1417 = vpop.permute.xlu0 %1416
    %v1419 = vmul.f32 %v1407, %v1412
    %v1420 = vmul.f32 %v1408, %v1417
    %s1421 = scalar_lea.vmem [#allocation11], 1
    %v1422 = vld [vmem:[%s1421] sm:$0x1]
    %v1424 = vperm.slane %v1422, 0
    %v1426 = vmul.f32 %v1419, %v1424
    %v1427 = vmul.f32 %v1420, %v1424
    %s1428 = scalar_lea.vmem [#allocation12], 1
    %v1429 = vld [vmem:[%s1428] sm:$0x1]
    %v1431 = vperm.slane %v1429, 0
    %v1433 = vadd.f32 %v1426, %v1431
    %v1434 = vadd.f32 %v1427, %v1431
    %v1435 = vxor.u32 %v1433, 2147483648
    %v1436 = vxor.u32 %v1434, 2147483648
    %v1437 = vmul.f32 %v1435, 1.442695
    %v1438 = vpow.pop %v1437
    %v1439 = vmul.f32 %v1436, 1.442695
    %v1440 = vpow.pop %v1439
    %v1441 = vadd.f32 %v1438, 1.0
    %v1442 = vadd.f32 %v1440, 1.0
    %v1443 = vrcp.pop %v1441
    %v1444 = vmul.f32 %v1441, %v1443
    %v1445 = vsub.f32 1.0, %v1444
    %v1446 = vmul.f32 %v1443, %v1445
    %v1447 = vadd.f32 %v1443, %v1446
    %vm1448 = vweird.f32 %v1441
    %vm1449 = vweird.f32 %v1443
    %vm1450 = vmor %vm1448, %vm1449
    %v1451 = vsel %vm1450, %v1443, %v1447
    %v1452 = vand.u32 2147483647, %v1441
    %vm1453 = vcmp.eq.f32.partialorder %v1452, 8.507059e+37
    %v1454 = vand.u32 %v1441, 2147483648
    %v1455 = vor.u32 1.1754944e-38, %v1454
    %v1456 = vsel %vm1453, %v1455, %v1451
    %v1457 = vmul.f32 1.0, %v1456
    %v1458 = vrcp.pop %v1442
    %v1459 = vmul.f32 %v1442, %v1458
    %v1460 = vsub.f32 1.0, %v1459
    %v1461 = vmul.f32 %v1458, %v1460
    %v1462 = vadd.f32 %v1458, %v1461
    %vm1463 = vweird.f32 %v1442
    %vm1464 = vweird.f32 %v1458
    %vm1465 = vmor %vm1463, %vm1464
    %v1466 = vsel %vm1465, %v1458, %v1462
    %v1467 = vand.u32 2147483647, %v1442
    %vm1468 = vcmp.eq.f32.partialorder %v1467, 8.507059e+37
    %v1469 = vand.u32 %v1442, 2147483648
    %v1470 = vor.u32 1.1754944e-38, %v1469
    %v1471 = vsel %vm1468, %v1470, %v1466
    %v1472 = vmul.f32 1.0, %v1471
    %v1473 = vsub.f32 %v1068, %v1400
    %v1474 = vsub.f32 %v1069, %v1405
    %v1475 = vmul.f32 %v1473, %v1412
    %v1476 = vmul.f32 %v1474, %v1417
    %s1477 = scalar_lea.vmem [#allocation15], 1
    %v1478 = vld [vmem:[%s1477] sm:$0x1]
    %v1480 = vperm.slane %v1478, 0
    %v1482 = vmul.f32 %v1475, %v1480
    %v1483 = vmul.f32 %v1476, %v1480
    %s1484 = scalar_lea.vmem [#allocation17], 1
    %v1485 = vld [vmem:[%s1484] sm:$0x1]
    %v1487 = vperm.slane %v1485, 0
    %v1489 = vadd.f32 %v1482, %v1487
    %v1490 = vadd.f32 %v1483, %v1487
    %v1491 = vxor.u32 %v1489, 2147483648
    %v1492 = vxor.u32 %v1490, 2147483648
    %v1493 = vmul.f32 %v1491, 1.442695
    %v1494 = vpow.pop %v1493
    %v1495 = vmul.f32 %v1492, 1.442695
    %v1496 = vpow.pop %v1495
    %v1497 = vadd.f32 %v1494, 1.0
    %v1498 = vadd.f32 %v1496, 1.0
    %v1499 = vrcp.pop %v1497
    %v1500 = vmul.f32 %v1497, %v1499
    %v1501 = vsub.f32 1.0, %v1500
    %v1502 = vmul.f32 %v1499, %v1501
    %v1503 = vadd.f32 %v1499, %v1502
    %vm1504 = vweird.f32 %v1497
    %vm1505 = vweird.f32 %v1499
    %vm1506 = vmor %vm1504, %vm1505
    %v1507 = vsel %vm1506, %v1499, %v1503
    %v1508 = vand.u32 2147483647, %v1497
    %vm1509 = vcmp.eq.f32.partialorder %v1508, 8.507059e+37
    %v1510 = vand.u32 %v1497, 2147483648
    %v1511 = vor.u32 1.1754944e-38, %v1510
    %v1512 = vsel %vm1509, %v1511, %v1507
    %v1513 = vmul.f32 1.0, %v1512
    %v1514 = vrcp.pop %v1498
    %v1515 = vmul.f32 %v1498, %v1514
    %v1516 = vsub.f32 1.0, %v1515
    %v1517 = vmul.f32 %v1514, %v1516
    %v1518 = vadd.f32 %v1514, %v1517
    %vm1519 = vweird.f32 %v1498
    %vm1520 = vweird.f32 %v1514
    %vm1521 = vmor %vm1519, %vm1520
    %v1522 = vsel %vm1521, %v1514, %v1518
    %v1523 = vand.u32 2147483647, %v1498
    %vm1524 = vcmp.eq.f32.partialorder %v1523, 8.507059e+37
    %v1525 = vand.u32 %v1498, 2147483648
    %v1526 = vor.u32 1.1754944e-38, %v1525
    %v1527 = vsel %vm1524, %v1526, %v1522
    %v1528 = vmul.f32 1.0, %v1527
    %v1529 = vld [vmem:[#allocation18] sm:$0xf]
    %v1530 = vld [vmem:[#allocation18 + $0x4] sm:$0xf]
    %v1531 = vld [vmem:[#allocation18 + $0x8] sm:$0xf]
    %v1532 = vld [vmem:[#allocation18 + $0xc] sm:$0xf]
    %v1533 = vld [vmem:[#allocation20] sm:$0xf]
    %v1534 = vld [vmem:[#allocation20 + $0x4] sm:$0xf]
    %v1535 = vld [vmem:[#allocation20 + $0x8] sm:$0xf]
    %v1536 = vld [vmem:[#allocation20 + $0xc] sm:$0xf]
    %v1541 = vunpack.c.l.b16 %v1533
    %v1542 = vunpack.c.l.b16 %v1534
    %v1543 = vunpack.c.l.b16 %v1535
    %v1544 = vunpack.c.l.b16 %v1536
    %v1545 = vpack.c.b16 %v1542, %v1541
    %v1546 = vpack.c.b16 %v1544, %v1543
    %1549 = vmatpush.bf16.msra.mxu0 0
    %1550 = vmatpush.bf16.msra.mxu0 0
    %1551 = vmatpush.bf16.msra.mxu0 0
    %1552 = vmatpush.bf16.msra.mxu0 0
    %1553 = vmatpush.bf16.msra.mxu0 0
    %1554 = vmatpush.bf16.msra.mxu0 0
    %1555 = vmatpush.bf16.msra.mxu0 %v1546
    %1556 = vmatpush.bf16.msra.mxu0 %v1545
    %1557 = vmatmul.bf16.gmra.mxu0 %v807
    %v1558 = vpop.f32.mrf.mxu0
    %v1559 = vadd.f32 0.0, %v1558
    %v1560 = vpop.f32.mrf.mxu0
    %v1561 = vadd.f32 0.0, %v1560
    %1562 = vdwg.mxu0
    %v1567 = vunpack.c.l.b16 %v1529
    %v1568 = vunpack.c.l.b16 %v1530
    %v1569 = vunpack.c.l.b16 %v1531
    %v1570 = vunpack.c.l.b16 %v1532
    %v1571 = vpack.c.b16 %v1568, %v1567
    %v1572 = vpack.c.b16 %v1570, %v1569
    %1575 = vmatpush.bf16.msra.mxu0 0
    %1576 = vmatpush.bf16.msra.mxu0 0
    %1577 = vmatpush.bf16.msra.mxu0 0
    %1578 = vmatpush.bf16.msra.mxu0 0
    %1579 = vmatpush.bf16.msra.mxu0 0
    %1580 = vmatpush.bf16.msra.mxu0 0
    %1581 = vmatpush.bf16.msra.mxu0 %v1572
    %1582 = vmatpush.bf16.msra.mxu0 %v1571
    %1583 = vmatmul.bf16.gmra.mxu0 %v836
    %v1584 = vpop.f32.mrf.mxu0
    %v1585 = vadd.f32 %v1559, %v1584
    %v1586 = vpop.f32.mrf.mxu0
    %v1587 = vadd.f32 %v1561, %v1586
    %1588 = vdwg.mxu0
    %v1589 = vld [vmem:[#allocation21] sm:$0x1]
    %v1591 = vperm.slane %v1589, 0
    %v1593 = vadd.f32 %v1585, %v1591
    %v1594 = vadd.f32 %v1587, %v1591
    %v1595 = vmax.f32 %v1593, 0.0
    %v1596 = vmax.f32 %v1594, 0.0
    %s1597 = scalar_lea.vmem [#allocation18], 16
    %v1598 = vld [vmem:[%s1597] sm:$0xf]
    %v1599 = vld [vmem:[%s1597 + $0x4] sm:$0xf]
    %v1600 = vld [vmem:[%s1597 + $0x8] sm:$0xf]
    %v1601 = vld [vmem:[%s1597 + $0xc] sm:$0xf]
    %s1602 = scalar_lea.vmem [#allocation20], 16
    %v1603 = vld [vmem:[%s1602] sm:$0xf]
    %v1604 = vld [vmem:[%s1602 + $0x4] sm:$0xf]
    %v1605 = vld [vmem:[%s1602 + $0x8] sm:$0xf]
    %v1606 = vld [vmem:[%s1602 + $0xc] sm:$0xf]
    %v1611 = vunpack.c.l.b16 %v1603
    %v1612 = vunpack.c.l.b16 %v1604
    %v1613 = vunpack.c.l.b16 %v1605
    %v1614 = vunpack.c.l.b16 %v1606
    %v1615 = vpack.c.b16 %v1612, %v1611
    %v1616 = vpack.c.b16 %v1614, %v1613
    %1619 = vmatpush.bf16.msra.mxu0 0
    %1620 = vmatpush.bf16.msra.mxu0 0
    %1621 = vmatpush.bf16.msra.mxu0 0
    %1622 = vmatpush.bf16.msra.mxu0 0
    %1623 = vmatpush.bf16.msra.mxu0 0
    %1624 = vmatpush.bf16.msra.mxu0 0
    %1625 = vmatpush.bf16.msra.mxu0 %v1616
    %1626 = vmatpush.bf16.msra.mxu0 %v1615
    %1627 = vmatmul.bf16.gmra.mxu0 %v949
    %v1628 = vpop.f32.mrf.mxu0
    %v1629 = vadd.f32 0.0, %v1628
    %v1630 = vpop.f32.mrf.mxu0
    %v1631 = vadd.f32 0.0, %v1630
    %1632 = vdwg.mxu0
    %v1637 = vunpack.c.l.b16 %v1598
    %v1638 = vunpack.c.l.b16 %v1599
    %v1639 = vunpack.c.l.b16 %v1600
    %v1640 = vunpack.c.l.b16 %v1601
    %v1641 = vpack.c.b16 %v1638, %v1637
    %v1642 = vpack.c.b16 %v1640, %v1639
    %1645 = vmatpush.bf16.msra.mxu0 0
    %1646 = vmatpush.bf16.msra.mxu0 0
    %1647 = vmatpush.bf16.msra.mxu0 0
    %1648 = vmatpush.bf16.msra.mxu0 0
    %1649 = vmatpush.bf16.msra.mxu0 0
    %1650 = vmatpush.bf16.msra.mxu0 0
    %1651 = vmatpush.bf16.msra.mxu0 %v1642
    %1652 = vmatpush.bf16.msra.mxu0 %v1641
    %1653 = vmatmul.bf16.gmra.mxu0 %v978
    %v1654 = vpop.f32.mrf.mxu0
    %v1655 = vadd.f32 %v1629, %v1654
    %v1656 = vpop.f32.mrf.mxu0
    %v1657 = vadd.f32 %v1631, %v1656
    %1658 = vdwg.mxu0
    %s1659 = scalar_lea.vmem [#allocation21], 1
    %v1660 = vld [vmem:[%s1659] sm:$0x1]
    %v1662 = vperm.slane %v1660, 0
    %v1664 = vadd.f32 %v1655, %v1662
    %v1665 = vadd.f32 %v1657, %v1662
    %v1666 = vmax.f32 %v1664, 0.0
    %v1667 = vmax.f32 %v1665, 0.0
    %v1668 = vpack.c.bf16 %v1596, %v1595
    %v1669 = vld [vmem:[%s20] sm:$0xf]
    %v1670 = vld [vmem:[%s20 + $0x4] sm:$0xf]
    %v1671 = vld [vmem:[%s20 + $0x8] sm:$0xf]
    %v1672 = vld [vmem:[%s20 + $0xc] sm:$0xf]
    %v1673 = vld [vmem:[%s20 + $0x10] sm:$0xf]
    %v1674 = vld [vmem:[%s20 + $0x14] sm:$0xf]
    %v1675 = vld [vmem:[%s20 + $0x18] sm:$0xf]
    %v1676 = vld [vmem:[%s20 + $0x1c] sm:$0xf]
    %v1677 = vld [vmem:[%s20 + $0x20] sm:$0xf]
    %v1678 = vld [vmem:[%s20 + $0x24] sm:$0xf]
    %v1679 = vld [vmem:[%s20 + $0x28] sm:$0xf]
    %v1680 = vld [vmem:[%s20 + $0x2c] sm:$0xf]
    %v1681 = vld [vmem:[%s20 + $0x30] sm:$0xf]
    %v1682 = vld [vmem:[%s20 + $0x34] sm:$0xf]
    %v1683 = vld [vmem:[%s20 + $0x38] sm:$0xf]
    %v1684 = vld [vmem:[%s20 + $0x3c] sm:$0xf]
    %v1685 = vld [vmem:[#allocation23] sm:$0x1]
    %v1687 = vperm.slane %v1685, 0
    %v1705 = vunpack.c.l.b16 %v1669
    %v1706 = vunpack.c.l.b16 %v1670
    %v1707 = vunpack.c.l.b16 %v1671
    %v1708 = vunpack.c.l.b16 %v1672
    %v1709 = vunpack.c.l.b16 %v1673
    %v1710 = vunpack.c.l.b16 %v1674
    %v1711 = vunpack.c.l.b16 %v1675
    %v1712 = vunpack.c.l.b16 %v1676
    %v1713 = vunpack.c.l.b16 %v1677
    %v1714 = vunpack.c.l.b16 %v1678
    %v1715 = vunpack.c.l.b16 %v1679
    %v1716 = vunpack.c.l.b16 %v1680
    %v1717 = vunpack.c.l.b16 %v1681
    %v1718 = vunpack.c.l.b16 %v1682
    %v1719 = vunpack.c.l.b16 %v1683
    %v1720 = vunpack.c.l.b16 %v1684
    %v1721 = vpack.c.b16 %v1706, %v1705
    %v1722 = vpack.c.b16 %v1708, %v1707
    %v1723 = vpack.c.b16 %v1710, %v1709
    %v1724 = vpack.c.b16 %v1712, %v1711
    %v1725 = vpack.c.b16 %v1714, %v1713
    %v1726 = vpack.c.b16 %v1716, %v1715
    %v1727 = vpack.c.b16 %v1718, %v1717
    %v1728 = vpack.c.b16 %v1720, %v1719
    %1737 = vmatpush.bf16.msra.mxu0 %v1728
    %1738 = vmatpush.bf16.msra.mxu0 %v1727
    %1739 = vmatpush.bf16.msra.mxu0 %v1726
    %1740 = vmatpush.bf16.msra.mxu0 %v1725
    %1741 = vmatpush.bf16.msra.mxu0 %v1724
    %1742 = vmatpush.bf16.msra.mxu0 %v1723
    %1743 = vmatpush.bf16.msra.mxu0 %v1722
    %1744 = vmatpush.bf16.msra.mxu0 %v1721
    %1745 = vmatmul.bf16.gmra.mxu0 %v1668
    %v1746 = vpop.f32.mrf.mxu0
    %v1747 = vadd.f32 %v1687, %v1746
    %v1748 = vpop.f32.mrf.mxu0
    %v1749 = vadd.f32 %v1687, %v1748
    %1750 = vdwg.mxu0
    %v1751 = vpack.c.bf16 %v1667, %v1666
    %s1752 = scalar_lea.vmem %s20, 64
    %v1753 = vld [vmem:[%s1752] sm:$0xf]
    %v1754 = vld [vmem:[%s1752 + $0x4] sm:$0xf]
    %v1755 = vld [vmem:[%s1752 + $0x8] sm:$0xf]
    %v1756 = vld [vmem:[%s1752 + $0xc] sm:$0xf]
    %v1757 = vld [vmem:[%s1752 + $0x10] sm:$0xf]
    %v1758 = vld [vmem:[%s1752 + $0x14] sm:$0xf]
    %v1759 = vld [vmem:[%s1752 + $0x18] sm:$0xf]
    %v1760 = vld [vmem:[%s1752 + $0x1c] sm:$0xf]
    %v1761 = vld [vmem:[%s1752 + $0x20] sm:$0xf]
    %v1762 = vld [vmem:[%s1752 + $0x24] sm:$0xf]
    %v1763 = vld [vmem:[%s1752 + $0x28] sm:$0xf]
    %v1764 = vld [vmem:[%s1752 + $0x2c] sm:$0xf]
    %v1765 = vld [vmem:[%s1752 + $0x30] sm:$0xf]
    %v1766 = vld [vmem:[%s1752 + $0x34] sm:$0xf]
    %v1767 = vld [vmem:[%s1752 + $0x38] sm:$0xf]
    %v1768 = vld [vmem:[%s1752 + $0x3c] sm:$0xf]
    %s1769 = scalar_lea.vmem [#allocation23], 1
    %v1770 = vld [vmem:[%s1769] sm:$0x1]
    %v1772 = vperm.slane %v1770, 0
    %v1790 = vunpack.c.l.b16 %v1753
    %v1791 = vunpack.c.l.b16 %v1754
    %v1792 = vunpack.c.l.b16 %v1755
    %v1793 = vunpack.c.l.b16 %v1756
    %v1794 = vunpack.c.l.b16 %v1757
    %v1795 = vunpack.c.l.b16 %v1758
    %v1796 = vunpack.c.l.b16 %v1759
    %v1797 = vunpack.c.l.b16 %v1760
    %v1798 = vunpack.c.l.b16 %v1761
    %v1799 = vunpack.c.l.b16 %v1762
    %v1800 = vunpack.c.l.b16 %v1763
    %v1801 = vunpack.c.l.b16 %v1764
    %v1802 = vunpack.c.l.b16 %v1765
    %v1803 = vunpack.c.l.b16 %v1766
    %v1804 = vunpack.c.l.b16 %v1767
    %v1805 = vunpack.c.l.b16 %v1768
    %v1806 = vpack.c.b16 %v1791, %v1790
    %v1807 = vpack.c.b16 %v1793, %v1792
    %v1808 = vpack.c.b16 %v1795, %v1794
    %v1809 = vpack.c.b16 %v1797, %v1796
    %v1810 = vpack.c.b16 %v1799, %v1798
    %v1811 = vpack.c.b16 %v1801, %v1800
    %v1812 = vpack.c.b16 %v1803, %v1802
    %v1813 = vpack.c.b16 %v1805, %v1804
    %1822 = vmatpush.bf16.msra.mxu0 %v1813
    %1823 = vmatpush.bf16.msra.mxu0 %v1812
    %1824 = vmatpush.bf16.msra.mxu0 %v1811
    %1825 = vmatpush.bf16.msra.mxu0 %v1810
    %1826 = vmatpush.bf16.msra.mxu0 %v1809
    %1827 = vmatpush.bf16.msra.mxu0 %v1808
    %1828 = vmatpush.bf16.msra.mxu0 %v1807
    %1829 = vmatpush.bf16.msra.mxu0 %v1806
    %1830 = vmatmul.bf16.gmra.mxu0 %v1751
    %v1831 = vpop.f32.mrf.mxu0
    %v1832 = vadd.f32 %v1772, %v1831
    %v1833 = vpop.f32.mrf.mxu0
    %v1834 = vadd.f32 %v1772, %v1833
    %1835 = vdwg.mxu0
    %v1836 = vmul.f32 %v1327, %v1747
    %v1837 = vmul.f32 %v1342, %v1749
    %v1838 = vmul.f32 %v1457, %v1832
    %v1839 = vmul.f32 %v1472, %v1834
    %1841 = vset.pattern.permute.xlu0 0
    %1842 = vperm.xlu0 %1841, %v342
    %v1843 = vpop.permute.xlu0 %1842
    %1846 = vset.pattern.permute.xlu0 0
    %1847 = vperm.xlu0 %1846, %v343
    %v1848 = vpop.permute.xlu0 %1847
    %v1850 = vmul.f32 %v1513, %v1843
    %v1851 = vmul.f32 %v1528, %v1848
    %v1852 = vsub.f32 1.0, %v342
    %v1853 = vsub.f32 1.0, %v343
    %1855 = vset.pattern.permute.xlu0 0
    %1856 = vperm.xlu0 %1855, %v1852
    %v1857 = vpop.permute.xlu0 %1856
    %1860 = vset.pattern.permute.xlu0 0
    %1861 = vperm.xlu0 %1860, %v1853
    %v1862 = vpop.permute.xlu0 %1861
    %v1864 = vadd.f32 %v1850, %v1857
    %v1865 = vadd.f32 %v1851, %v1862
    %v1866 = vmul.f32 %v1838, %v1843
    %v1867 = vmul.f32 %v1839, %v1848
    %1868 = vst.msk [vmem:[#allocation2 + $0x8] sm:$0xff] %vm373, %v1381
    %1869 = vst.msk [vmem:[#allocation2 + $0x10] sm:$0xff] %vm373, %v1396
    %v1870 = vld [vmem:[#allocation2 + $0x7] sm:$0xff]
    %v1871 = vld [vmem:[#allocation2 + $0xf] sm:$0xff]
    %1872 = vst.msk [vmem:[#allocation2 + $0x8] sm:$0xff] %vm373, %v1836
    %1873 = vst.msk [vmem:[#allocation2 + $0x10] sm:$0xff] %vm373, %v1837
    %v1874 = vld [vmem:[#allocation2 + $0x7] sm:$0xff]
    %v1875 = vld [vmem:[#allocation2 + $0xf] sm:$0xff]
    %v1876 = vmul.f32 %v1381, %v1874
    %v1877 = vmul.f32 %v1396, %v1875
    %v1878 = vadd.f32 %v1836, %v1876
    %v1879 = vadd.f32 %v1837, %v1877
    %v1880 = vsel %vm460, %v1878, %v1836
    %v1881 = vsel %vm461, %v1879, %v1837
    %v1882 = vmul.f32 %v1381, %v1870
    %v1883 = vmul.f32 %v1396, %v1871
    %v1884 = vsel %vm460, %v1882, %v1381
    %v1885 = vsel %vm461, %v1883, %v1396
    %1886 = vst.msk [vmem:[#allocation2 + $0x8] sm:$0xff] %vm373, %v1884
    %1887 = vst.msk [vmem:[#allocation2 + $0x10] sm:$0xff] %vm373, %v1885
    %v1888 = vld [vmem:[#allocation2 + $0x6] sm:$0xff]
    %v1889 = vld [vmem:[#allocation2 + $0xe] sm:$0xff]
    %1890 = vst.msk [vmem:[#allocation2 + $0x8] sm:$0xff] %vm373, %v1880
    %1891 = vst.msk [vmem:[#allocation2 + $0x10] sm:$0xff] %vm373, %v1881
    %v1892 = vld [vmem:[#allocation2 + $0x6] sm:$0xff]
    %v1893 = vld [vmem:[#allocation2 + $0xe] sm:$0xff]
    %v1894 = vmul.f32 %v1884, %v1892
    %v1895 = vmul.f32 %v1885, %v1893
    %v1896 = vadd.f32 %v1880, %v1894
    %v1897 = vadd.f32 %v1881, %v1895
    %v1898 = vsel %vm474, %v1896, %v1880
    %v1899 = vsel %vm475, %v1897, %v1881
    %v1900 = vmul.f32 %v1884, %v1888
    %v1901 = vmul.f32 %v1885, %v1889
    %v1902 = vsel %vm474, %v1900, %v1884
    %v1903 = vsel %vm475, %v1901, %v1885
    %1904 = vst.msk [vmem:[#allocation2 + $0x8] sm:$0xff] %vm373, %v1902
    %1905 = vst.msk [vmem:[#allocation2 + $0x10] sm:$0xff] %vm373, %v1903
    %v1906 = vld [vmem:[#allocation2 + $0x4] sm:$0xff]
    %v1907 = vld [vmem:[#allocation2 + $0xc] sm:$0xff]
    %1908 = vst.msk [vmem:[#allocation2 + $0x8] sm:$0xff] %vm373, %v1898
    %1909 = vst.msk [vmem:[#allocation2 + $0x10] sm:$0xff] %vm373, %v1899
    %v1910 = vld [vmem:[#allocation2 + $0x4] sm:$0xff]
    %v1911 = vld [vmem:[#allocation2 + $0xc] sm:$0xff]
    %v1912 = vmul.f32 %v1902, %v1910
    %v1913 = vmul.f32 %v1903, %v1911
    %v1914 = vadd.f32 %v1898, %v1912
    %v1915 = vadd.f32 %v1899, %v1913
    %v1916 = vsel %vm488, %v1914, %v1898
    %v1917 = vsel %vm489, %v1915, %v1899
    %v1918 = vmul.f32 %v1902, %v1906
    %v1919 = vmul.f32 %v1903, %v1907
    %v1920 = vsel %vm488, %v1918, %v1902
    %v1921 = vsel %vm489, %v1919, %v1903
    %1922 = vst.msk [vmem:[#allocation2 + $0x8] sm:$0xff] %vm373, %v1864
    %1923 = vst.msk [vmem:[#allocation2 + $0x10] sm:$0xff] %vm373, %v1865
    %v1924 = vld [vmem:[#allocation2 + $0x9] sm:$0xff]
    %v1925 = vld [vmem:[#allocation2 + $0x11] sm:$0xff]
    %1926 = vst.msk [vmem:[#allocation2 + $0x8] sm:$0xff] %vm373, %v1866
    %1927 = vst.msk [vmem:[#allocation2 + $0x10] sm:$0xff] %vm373, %v1867
    %v1928 = vld [vmem:[#allocation2 + $0x9] sm:$0xff]
    %v1929 = vld [vmem:[#allocation2 + $0x11] sm:$0xff]
    %v1930 = vmul.f32 %v1864, %v1928
    %v1931 = vmul.f32 %v1865, %v1929
    %v1932 = vadd.f32 %v1866, %v1930
    %v1933 = vadd.f32 %v1867, %v1931
    %v1934 = vsel %vm504, %v1932, %v1866
    %v1935 = vsel %vm505, %v1933, %v1867
    %v1936 = vmul.f32 %v1864, %v1924
    %v1937 = vmul.f32 %v1865, %v1925
    %v1938 = vsel %vm504, %v1936, %v1864
    %v1939 = vsel %vm505, %v1937, %v1865
    %1940 = vst.msk [vmem:[#allocation2 + $0x8] sm:$0xff] %vm373, %v1938
    %1941 = vst.msk [vmem:[#allocation2 + $0x10] sm:$0xff] %vm373, %v1939
    %v1942 = vld [vmem:[#allocation2 + $0xa] sm:$0xff]
    %v1943 = vld [vmem:[#allocation2 + $0x12] sm:$0xff]
    %1944 = vst.msk [vmem:[#allocation2 + $0x8] sm:$0xff] %vm373, %v1934
    %1945 = vst.msk [vmem:[#allocation2 + $0x10] sm:$0xff] %vm373, %v1935
    %v1946 = vld [vmem:[#allocation2 + $0xa] sm:$0xff]
    %v1947 = vld [vmem:[#allocation2 + $0x12] sm:$0xff]
    %v1948 = vmul.f32 %v1938, %v1946
    %v1949 = vmul.f32 %v1939, %v1947
    %v1950 = vadd.f32 %v1934, %v1948
    %v1951 = vadd.f32 %v1935, %v1949
    %v1952 = vsel %vm518, %v1950, %v1934
    %v1953 = vsel %vm519, %v1951, %v1935
    %v1954 = vmul.f32 %v1938, %v1942
    %v1955 = vmul.f32 %v1939, %v1943
    %v1956 = vsel %vm518, %v1954, %v1938
    %v1957 = vsel %vm519, %v1955, %v1939
    %1958 = vst.msk [vmem:[#allocation2 + $0x8] sm:$0xff] %vm373, %v1956
    %1959 = vst.msk [vmem:[#allocation2 + $0x10] sm:$0xff] %vm373, %v1957
    %v1960 = vld [vmem:[#allocation2 + $0xc] sm:$0xff]
    %v1961 = vld [vmem:[#allocation2 + $0x14] sm:$0xff]
    %1962 = vst.msk [vmem:[#allocation2 + $0x8] sm:$0xff] %vm373, %v1952
    %1963 = vst.msk [vmem:[#allocation2 + $0x10] sm:$0xff] %vm373, %v1953
    %v1964 = vld [vmem:[#allocation2 + $0xc] sm:$0xff]
    %v1965 = vld [vmem:[#allocation2 + $0x14] sm:$0xff]
    %v1966 = vmul.f32 %v1956, %v1964
    %v1967 = vmul.f32 %v1957, %v1965
    %v1968 = vadd.f32 %v1952, %v1966
    %v1969 = vadd.f32 %v1953, %v1967
    %v1970 = vsel %vm532, %v1968, %v1952
    %v1971 = vsel %vm533, %v1969, %v1953
    %v1972 = vmul.f32 %v1956, %v1960
    %v1973 = vmul.f32 %v1957, %v1961
    %v1974 = vsel %vm532, %v1972, %v1956
    %v1975 = vsel %vm533, %v1973, %v1957
    %v1976 = vld [vmem:[%s25] sm:$0x1]
    %v1978 = vperm.slane %v1976, 0
    %v1980 = vmul.f32 %v1920, %v1978
    %v1981 = vmul.f32 %v1921, %v1978
    %v1982 = vadd.f32 %v1916, %v1980
    %v1983 = vadd.f32 %v1917, %v1981
    %s1984 = scalar_lea.vmem %s25, 1
    %v1985 = vld [vmem:[%s1984] sm:$0x1]
    %v1987 = vperm.slane %v1985, 0
    %v1989 = vmul.f32 %v1974, %v1987
    %v1990 = vmul.f32 %v1975, %v1987
    %v1991 = vadd.f32 %v1970, %v1989
    %v1992 = vadd.f32 %v1971, %v1990
    %v1993 = vld [vmem:[#allocation24] sm:$0xf]
    %v1994 = vld [vmem:[#allocation24 + $0x4] sm:$0xf]
    %v1995 = vld [vmem:[#allocation24 + $0x8] sm:$0xf]
    %v1996 = vld [vmem:[#allocation24 + $0xc] sm:$0xf]
    %v1997 = vpack.c.bf16 %v1983, %v1982
    %v1998 = vld [vmem:[#allocation26] sm:$0xf]
    %v1999 = vld [vmem:[#allocation26 + $0x4] sm:$0xf]
    %v2000 = vld [vmem:[#allocation26 + $0x8] sm:$0xf]
    %v2001 = vld [vmem:[#allocation26 + $0xc] sm:$0xf]
    %v2006 = vunpack.c.l.b16 %v1998
    %v2007 = vunpack.c.l.b16 %v1999
    %v2008 = vunpack.c.l.b16 %v2000
    %v2009 = vunpack.c.l.b16 %v2001
    %v2010 = vpack.c.b16 %v2007, %v2006
    %v2011 = vpack.c.b16 %v2009, %v2008
    %v2015 = vsel %vm373, %v1997, 0
    %2017 = vmatpush.bf16.msra.mxu0 0
    %2018 = vmatpush.bf16.msra.mxu0 0
    %2019 = vmatpush.bf16.msra.mxu0 0
    %2020 = vmatpush.bf16.msra.mxu0 0
    %2021 = vmatpush.bf16.msra.mxu0 0
    %2022 = vmatpush.bf16.msra.mxu0 0
    %2023 = vmatpush.bf16.msra.mxu0 %v2011
    %2024 = vmatpush.bf16.msra.mxu0 %v2010
    %2025 = vmatmul.bf16.gmra.mxu0 %v2015
    %v2026 = vpop.f32.mrf.mxu0
    %v2027 = vadd.f32 0.0, %v2026
    %v2028 = vpop.f32.mrf.mxu0
    %v2029 = vadd.f32 0.0, %v2028
    %2030 = vdwg.mxu0
    %v2035 = vunpack.c.l.b16 %v1993
    %v2036 = vunpack.c.l.b16 %v1994
    %v2037 = vunpack.c.l.b16 %v1995
    %v2038 = vunpack.c.l.b16 %v1996
    %v2039 = vpack.c.b16 %v2036, %v2035
    %v2040 = vpack.c.b16 %v2038, %v2037
    %2043 = vmatpush.bf16.msra.mxu0 0
    %2044 = vmatpush.bf16.msra.mxu0 0
    %2045 = vmatpush.bf16.msra.mxu0 0
    %2046 = vmatpush.bf16.msra.mxu0 0
    %2047 = vmatpush.bf16.msra.mxu0 0
    %2048 = vmatpush.bf16.msra.mxu0 0
    %2049 = vmatpush.bf16.msra.mxu0 %v2040
    %2050 = vmatpush.bf16.msra.mxu0 %v2039
    %2051 = vmatmul.bf16.gmra.mxu0 %v836
    %v2052 = vpop.f32.mrf.mxu0
    %v2053 = vadd.f32 %v2027, %v2052
    %v2054 = vpop.f32.mrf.mxu0
    %v2055 = vadd.f32 %v2029, %v2054
    %2056 = vdwg.mxu0
    %v2057 = vld [vmem:[%s24] sm:$0x1]
    %v2059 = vperm.slane %v2057, 0
    %v2061 = vadd.f32 %v2053, %v2059
    %v2062 = vadd.f32 %v2055, %v2059
    %v2063 = vxor.u32 %v2061, 2147483648
    %v2064 = vxor.u32 %v2062, 2147483648
    %v2065 = vmul.f32 %v2063, 1.442695
    %v2066 = vpow.pop %v2065
    %v2067 = vmul.f32 %v2064, 1.442695
    %v2068 = vpow.pop %v2067
    %v2069 = vadd.f32 %v2066, 1.0
    %v2070 = vadd.f32 %v2068, 1.0
    %v2071 = vrcp.pop %v2069
    %v2072 = vmul.f32 %v2069, %v2071
    %v2073 = vsub.f32 1.0, %v2072
    %v2074 = vmul.f32 %v2071, %v2073
    %v2075 = vadd.f32 %v2071, %v2074
    %vm2076 = vweird.f32 %v2069
    %vm2077 = vweird.f32 %v2071
    %vm2078 = vmor %vm2076, %vm2077
    %v2079 = vsel %vm2078, %v2071, %v2075
    %v2080 = vand.u32 2147483647, %v2069
    %vm2081 = vcmp.eq.f32.partialorder %v2080, 8.507059e+37
    %v2082 = vand.u32 %v2069, 2147483648
    %v2083 = vor.u32 1.1754944e-38, %v2082
    %v2084 = vsel %vm2081, %v2083, %v2079
    %v2085 = vmul.f32 1.0, %v2084
    %v2086 = vrcp.pop %v2070
    %v2087 = vmul.f32 %v2070, %v2086
    %v2088 = vsub.f32 1.0, %v2087
    %v2089 = vmul.f32 %v2086, %v2088
    %v2090 = vadd.f32 %v2086, %v2089
    %vm2091 = vweird.f32 %v2070
    %vm2092 = vweird.f32 %v2086
    %vm2093 = vmor %vm2091, %vm2092
    %v2094 = vsel %vm2093, %v2086, %v2090
    %v2095 = vand.u32 2147483647, %v2070
    %vm2096 = vcmp.eq.f32.partialorder %v2095, 8.507059e+37
    %v2097 = vand.u32 %v2070, 2147483648
    %v2098 = vor.u32 1.1754944e-38, %v2097
    %v2099 = vsel %vm2096, %v2098, %v2094
    %v2100 = vmul.f32 1.0, %v2099
    %s2101 = scalar_lea.vmem [#allocation24], 16
    %v2102 = vld [vmem:[%s2101] sm:$0xf]
    %v2103 = vld [vmem:[%s2101 + $0x4] sm:$0xf]
    %v2104 = vld [vmem:[%s2101 + $0x8] sm:$0xf]
    %v2105 = vld [vmem:[%s2101 + $0xc] sm:$0xf]
    %v2106 = vpack.c.bf16 %v1992, %v1991
    %s2107 = scalar_lea.vmem [#allocation26], 16
    %v2108 = vld [vmem:[%s2107] sm:$0xf]
    %v2109 = vld [vmem:[%s2107 + $0x4] sm:$0xf]
    %v2110 = vld [vmem:[%s2107 + $0x8] sm:$0xf]
    %v2111 = vld [vmem:[%s2107 + $0xc] sm:$0xf]
    %v2116 = vunpack.c.l.b16 %v2108
    %v2117 = vunpack.c.l.b16 %v2109
    %v2118 = vunpack.c.l.b16 %v2110
    %v2119 = vunpack.c.l.b16 %v2111
    %v2120 = vpack.c.b16 %v2117, %v2116
    %v2121 = vpack.c.b16 %v2119, %v2118
    %v2125 = vsel %vm373, %v2106, 0
    %2127 = vmatpush.bf16.msra.mxu0 0
    %2128 = vmatpush.bf16.msra.mxu0 0
    %2129 = vmatpush.bf16.msra.mxu0 0
    %2130 = vmatpush.bf16.msra.mxu0 0
    %2131 = vmatpush.bf16.msra.mxu0 0
    %2132 = vmatpush.bf16.msra.mxu0 0
    %2133 = vmatpush.bf16.msra.mxu0 %v2121
    %2134 = vmatpush.bf16.msra.mxu0 %v2120
    %2135 = vmatmul.bf16.gmra.mxu0 %v2125
    %v2136 = vpop.f32.mrf.mxu0
    %v2137 = vadd.f32 0.0, %v2136
    %v2138 = vpop.f32.mrf.mxu0
    %v2139 = vadd.f32 0.0, %v2138
    %2140 = vdwg.mxu0
    %v2145 = vunpack.c.l.b16 %v2102
    %v2146 = vunpack.c.l.b16 %v2103
    %v2147 = vunpack.c.l.b16 %v2104
    %v2148 = vunpack.c.l.b16 %v2105
    %v2149 = vpack.c.b16 %v2146, %v2145
    %v2150 = vpack.c.b16 %v2148, %v2147
    %2153 = vmatpush.bf16.msra.mxu0 0
    %2154 = vmatpush.bf16.msra.mxu0 0
    %2155 = vmatpush.bf16.msra.mxu0 0
    %2156 = vmatpush.bf16.msra.mxu0 0
    %2157 = vmatpush.bf16.msra.mxu0 0
    %2158 = vmatpush.bf16.msra.mxu0 0
    %2159 = vmatpush.bf16.msra.mxu0 %v2150
    %2160 = vmatpush.bf16.msra.mxu0 %v2149
    %2161 = vmatmul.bf16.gmra.mxu0 %v978
    %v2162 = vpop.f32.mrf.mxu0
    %v2163 = vadd.f32 %v2137, %v2162
    %v2164 = vpop.f32.mrf.mxu0
    %v2165 = vadd.f32 %v2139, %v2164
    %2166 = vdwg.mxu0
    %s2167 = scalar_lea.vmem %s24, 1
    %v2168 = vld [vmem:[%s2167] sm:$0x1]
    %v2170 = vperm.slane %v2168, 0
    %v2172 = vadd.f32 %v2163, %v2170
    %v2173 = vadd.f32 %v2165, %v2170
    %v2174 = vxor.u32 %v2172, 2147483648
    %v2175 = vxor.u32 %v2173, 2147483648
    %v2176 = vmul.f32 %v2174, 1.442695
    %v2177 = vpow.pop %v2176
    %v2178 = vmul.f32 %v2175, 1.442695
    %v2179 = vpow.pop %v2178
    %v2180 = vadd.f32 %v2177, 1.0
    %v2181 = vadd.f32 %v2179, 1.0
    %v2182 = vrcp.pop %v2180
    %v2183 = vmul.f32 %v2180, %v2182
    %v2184 = vsub.f32 1.0, %v2183
    %v2185 = vmul.f32 %v2182, %v2184
    %v2186 = vadd.f32 %v2182, %v2185
    %vm2187 = vweird.f32 %v2180
    %vm2188 = vweird.f32 %v2182
    %vm2189 = vmor %vm2187, %vm2188
    %v2190 = vsel %vm2189, %v2182, %v2186
    %v2191 = vand.u32 2147483647, %v2180
    %vm2192 = vcmp.eq.f32.partialorder %v2191, 8.507059e+37
    %v2193 = vand.u32 %v2180, 2147483648
    %v2194 = vor.u32 1.1754944e-38, %v2193
    %v2195 = vsel %vm2192, %v2194, %v2190
    %v2196 = vmul.f32 1.0, %v2195
    %v2197 = vrcp.pop %v2181
    %v2198 = vmul.f32 %v2181, %v2197
    %v2199 = vsub.f32 1.0, %v2198
    %v2200 = vmul.f32 %v2197, %v2199
    %v2201 = vadd.f32 %v2197, %v2200
    %vm2202 = vweird.f32 %v2181
    %vm2203 = vweird.f32 %v2197
    %vm2204 = vmor %vm2202, %vm2203
    %v2205 = vsel %vm2204, %v2197, %v2201
    %v2206 = vand.u32 2147483647, %v2181
    %vm2207 = vcmp.eq.f32.partialorder %v2206, 8.507059e+37
    %v2208 = vand.u32 %v2181, 2147483648
    %v2209 = vor.u32 1.1754944e-38, %v2208
    %v2210 = vsel %vm2207, %v2209, %v2205
    %v2211 = vmul.f32 1.0, %v2210
    %v2212 = vmul.f32 %v2085, %v1982
    %v2213 = vmul.f32 %v2100, %v1983
    %v2214 = vmul.f32 %v2196, %v1991
    %v2215 = vmul.f32 %v2211, %v1992
    %v2216 = vpack.c.bf16 %v2213, %v2212
    %v2217 = vld [vmem:[#allocation27] sm:$0xf]
    %v2218 = vld [vmem:[#allocation27 + $0x4] sm:$0xf]
    %v2219 = vld [vmem:[#allocation27 + $0x8] sm:$0xf]
    %v2220 = vld [vmem:[#allocation27 + $0xc] sm:$0xf]
    %v2221 = vpack.c.bf16 %v2215, %v2214
    %s2222 = scalar_lea.vmem [#allocation27], 16
    %v2223 = vld [vmem:[%s2222] sm:$0xf]
    %v2224 = vld [vmem:[%s2222 + $0x4] sm:$0xf]
    %v2225 = vld [vmem:[%s2222 + $0x8] sm:$0xf]
    %v2226 = vld [vmem:[%s2222 + $0xc] sm:$0xf]
    %v2231 = vunpack.c.l.b16 %v2223
    %v2232 = vunpack.c.l.b16 %v2224
    %v2233 = vunpack.c.l.b16 %v2225
    %v2234 = vunpack.c.l.b16 %v2226
    %v2235 = vpack.c.b16 %v2232, %v2231
    %v2236 = vpack.c.b16 %v2234, %v2233
    %v2240 = vsel %vm373, %v2221, 0
    %2242 = vmatpush.bf16.msra.mxu0 0
    %2243 = vmatpush.bf16.msra.mxu0 0
    %2244 = vmatpush.bf16.msra.mxu0 0
    %2245 = vmatpush.bf16.msra.mxu0 0
    %2246 = vmatpush.bf16.msra.mxu0 0
    %2247 = vmatpush.bf16.msra.mxu0 0
    %2248 = vmatpush.bf16.msra.mxu0 %v2236
    %2249 = vmatpush.bf16.msra.mxu0 %v2235
    %2250 = vmatmul.bf16.gmra.mxu0 %v2240
    %v2251 = vpop.f32.mrf.mxu0
    %v2252 = vadd.f32 0.0, %v2251
    %v2253 = vpop.f32.mrf.mxu0
    %v2254 = vadd.f32 0.0, %v2253
    %2255 = vdwg.mxu0
    %v2260 = vunpack.c.l.b16 %v2217
    %v2261 = vunpack.c.l.b16 %v2218
    %v2262 = vunpack.c.l.b16 %v2219
    %v2263 = vunpack.c.l.b16 %v2220
    %v2264 = vpack.c.b16 %v2261, %v2260
    %v2265 = vpack.c.b16 %v2263, %v2262
    %v2269 = vsel %vm373, %v2216, 0
    %2271 = vmatpush.bf16.msra.mxu0 0
    %2272 = vmatpush.bf16.msra.mxu0 0
    %2273 = vmatpush.bf16.msra.mxu0 0
    %2274 = vmatpush.bf16.msra.mxu0 0
    %2275 = vmatpush.bf16.msra.mxu0 0
    %2276 = vmatpush.bf16.msra.mxu0 0
    %2277 = vmatpush.bf16.msra.mxu0 %v2265
    %2278 = vmatpush.bf16.msra.mxu0 %v2264
    %2279 = vmatmul.bf16.gmra.mxu0 %v2269
    %v2280 = vpop.f32.mrf.mxu0
    %v2281 = vadd.f32 %v2252, %v2280
    %v2282 = vpop.f32.mrf.mxu0
    %v2283 = vadd.f32 %v2254, %v2282
    %2284 = vdwg.mxu0
    %v2285 = vld [vmem:[%s27] sm:$0x1]
    %v2287 = vperm.slane %v2285, 0
    %v2289 = vadd.f32 %v2281, %v2287
    %v2290 = vadd.f32 %v2283, %v2287
    %v2291 = vadd.f32 %v2289, %v340
    %v2292 = vadd.f32 %v2290, %v341
    %2293 = vst.msk [vmem:[#allocation29] sm:$0xff] %vm373, %v2291
    %2294 = vst.msk [vmem:[#allocation29 + $0x8] sm:$0xff] %vm373, %v2292
    // Predicated region
    $region178: #{tpu_custom_call.1} parent=1 // pred_check
      _
    $region179: #{tpu_custom_call.1} parent=1 // pred_check_branch
      %2296 = sbr.rel (0) target = $region181
    $region180: #{tpu_custom_call.1} parent=1 // pred_region
      %2298 = vsyncadd [#allocation5], 0
      %s2299 = sshll.u32 [#allocation29], 4
      %s2300 = int_to_ptr.vmem [resolvable:$true] %s2299
      %s2301 = sshll.u32 %s28, 4
      %s2302 = int_to_ptr.hbm [resolvable:$true] %s2301
      %2307 = dma.vmem_to_hbm [thread:$0]  %s2300, 256, %s2302, [#allocation5], 128, 128, 8
    $region181: #{tpu_custom_call.1} parent=1 // pred_fallthru
      _
    // Predicated region
    $region182: #{tpu_custom_call.1} parent=1 // pred_check
      _
    $region183: #{tpu_custom_call.1} parent=1 // pred_check_branch
      %2309 = sbr.rel (0) target = $region185
    $region184: #{tpu_custom_call.1} parent=1 // pred_region
      %2311 = dma.done [#allocation5], 256
    $region185: #{tpu_custom_call.1} parent=1 // pred_fallthru
      _
    %2312 = vsyncpa [#allocation4], 1
    %2313 = vsyncpa [#allocation7], 1
    %2314 = vsyncpa [#allocation10], 1
    %2315 = vsyncpa [#allocation13], 1
    %2316 = vsyncpa [#allocation16], 1
    %2317 = vsyncpa [#allocation19], 1
    %2318 = vsyncpa [#allocation22], 1
    %2319 = vsyncpa [#allocation25], 1
    %2320 = vsyncpa [#allocation28], 1
    %2321 = vsyncpa [#allocation5], 1

</llo_original>
